<compile_context>
chip_gen: v7x
topology: tpu7x:2x2x1
jax: 0.10.0
libtpu: 0.0.40
codegen_flags: <defaults>
</compile_context>

<pallas_src>
import math
import functools
import numpy as np

import jax
import jax.numpy as jnp
from jax import lax
from jax.experimental import pallas as pl
from jax.experimental.pallas import tpu as pltpu

EPS = 1e-5


# ----------------------------------------------------------------------------
# Gaussian kernel (identical formula to the PyTorch module)
# ----------------------------------------------------------------------------
def gaussian_kernel_np(size: int, sigma: float) -> np.ndarray:
    vals = np.array(
        [[1.0 / (2 * math.pi * sigma ** 2)
          * math.exp(-(x ** 2 + y ** 2) / (2 * sigma ** 2))
          for x in range(-size // 2 + 1, size // 2 + 1)]
         for y in range(-size // 2 + 1, size // 2 + 1)],
        dtype=np.float32)
    return vals / vals.sum()


def _fold_bn(gamma, beta, mean, var, conv_bias=None):
    scale = gamma / jnp.sqrt(var + EPS)
    shift = beta - mean * scale
    if conv_bias is not None:
        shift = shift + conv_bias * scale
    return scale, shift


def _pick_h_tile(H, Wp, row_bytes, budget=24 << 20):
    # Largest divisor of H whose tile fits the (conservative, v7x-safe) VMEM budget and
    # keeps the output block lane-aligned (TH*Wp % 128 == 0) unless it is the whole image.
    cands = [th for th in range(1, H + 1)
             if H % th == 0 and (th == H or (th * Wp) % 128 == 0)]
    fitting = [th for th in cands if (th + 6) * row_bytes <= budget]
    return max(fitting) if fitting else min(cands)


# ----------------------------------------------------------------------------
# Fused kernel: gaussian+bn0+relu+residual and the whole Conv_Extra chain
# ----------------------------------------------------------------------------
def _ega_fused_kernel(xwin_ref, colmask_ref, s0_ref, sh0_ref,
                      w1t_ref, a1_ref, c1_ref,
                      w2t_ref, a2_ref, c2_ref,
                      w3t_ref, a3_ref, c3_ref,
                      out_ref,
                      h1buf_ref, im2col_ref,
                      *, gw, k, p, Wp, TH, Cmid):
    th_ext = TH + 2                 # h1 rows: one halo row above / below the tile
    Lt = th_ext * Wp                # Stage-A / conv1 spatial extent (row stride Wp)
    Lo = TH * Wp                    # conv2 / conv3 / output spatial extent

    # ---- Stage A: k x k depthwise gaussian + bn0 + relu + residual (f32, VPU) -------
    # Channel-major, flattened spatial on the lane axis; all tap offsets are static.
    c_off = p * Wp + p
    center = xwin_ref[0, 0, :, c_off:c_off + Lt]                  # (Cp, Lt) == x itself
    acc = center * gw[p * k + p]
    for dy in range(k):
        for dx in range(k):
            if dy == p and dx == p:
                continue
            off = dy * Wp + dx
            acc = acc + xwin_ref[0, 0, :, off:off + Lt] * gw[dy * k + dx]
    gauss = jnp.maximum(acc * s0_ref[...] + sh0_ref[...], 0.0)    # folded bn0 + ReLU
    t = center + gauss                                            # residual, (Cp, Lt)

    # ---- conv1 1x1 (Cp -> Cmid) + bn1 + relu.  K <= 8 is tiny; the MXU is idle until
    #      conv2, so keep this one f32 (keeps the bf16 error chain short). -------------
    h1 = jnp.dot(w1t_ref[...], t, preferred_element_type=jnp.float32,
                 precision=jax.lax.Precision.HIGHEST)             # (Cmid, Lt)
    h1 = jnp.maximum(h1 * a1_ref[...] + c1_ref[...], 0.0)

    # zero the positions that must act as the 3x3 conv's zero padding:
    #   * the horizontal pad columns of the row-stride-Wp layout (precomputed colmask)
    #   * the halo rows that fall outside the image (first / last row tile only)
    lane = lax.broadcasted_iota(jnp.int32, (1, Lt), 1)
    i = pl.program_id(1)
    not_first = i > 0
    not_last = i < pl.num_programs(1) - 1
    row_ok = jnp.logical_and(jnp.logical_or(not_first, lane >= Wp),
                             jnp.logical_or(not_last, lane < (th_ext - 1) * Wp))
    mask = jnp.where(row_ok, colmask_ref[...], 0.0)               # (1, Lt)
    h1buf_ref[:, 1:1 + Lt] = (h1 * mask).astype(jnp.bfloat16)

    # ---- conv2 3x3 (Cmid -> Cmid) as ONE bf16 MXU matmul over a TRANSPOSED im2col
    #      matrix: spatial on lanes, (tap, cin) on sublanes -> every tap store is a
    #      full-lane, sublane-aligned slab; h2 lands already in (Cmid, spatial). -------
    for dy in range(3):
        for dx in range(3):
            tap = dy * 3 + dx
            off = dy * Wp + dx
            im2col_ref[tap * Cmid:(tap + 1) * Cmid, :] = h1buf_ref[:, off:off + Lo]
    h2 = jnp.dot(w2t_ref[...], im2col_ref[...],
                 preferred_element_type=jnp.float32)              # (Cmid, Lo) f32 acc
    h2 = jnp.maximum(h2 * a2_ref[...] + c2_ref[...], 0.0).astype(jnp.bfloat16)

    # ---- conv3 1x1 (Cmid -> C) + bn3; already channel-major and lane-dense -----------
    o = jnp.dot(w3t_ref[...], h2, preferred_element_type=jnp.float32)   # (C, Lo)
    out_ref[0] = o * a3_ref[...] + c3_ref[...]


# ----------------------------------------------------------------------------
# Wrapper
# ----------------------------------------------------------------------------
def edge_gaussian_aggregation(x_nchw, params, *, size, sigma):
    """x_nchw: (B, C, H, W) float32. Returns (B, C, H, W) float32."""
    B, C, H, W = x_nchw.shape
    k = size
    p = size // 2
    pe = p + 1                       # gaussian halo + 1 extra row for the 3x3-on-h1 halo
    Wp = W + 2 * p                   # row stride of the padded / flattened layout
    Hp = H + 2 * pe
    Cmid = params["w1"].shape[1]
    Cp = ((C + 7) // 8) * 8          # pad channels to full sublanes / safe matmul K

    row_bytes = (9 * Cmid * Wp + Cmid * Wp) * 2 + (Cp + 2 * C) * Wp * 4 * 2
    TH = _pick_h_tile(H, Wp, row_bytes)
    nht = H // TH
    th_ext = TH + 2
    nrows = th_ext + 2 * p
    Lt = th_ext * Wp
    Lo = TH * Wp
    LW = nrows * Wp + 2 * p          # per-tile flattened input window (with halos)

    # channel-major (NCHW), zero padded, channels padded to Cp, spatial flattened.
    xp = jnp.pad(x_nchw, ((0, 0), (0, Cp - C), (pe, pe), (p, p)))        # (B,Cp,Hp,Wp)
    xflat = jnp.pad(xp.reshape(B, Cp, Hp * Wp), ((0, 0), (0, 0), (p, p)))
    if nht == 1:
        xwin = xflat[:, None]                                            # (B,1,Cp,LW)
    else:
        # TODO(synk): for large frames, keep xflat in pl.ANY and double-buffer the halo
        #             window with pltpu.make_async_copy instead of materializing
        #             overlapping windows in HBM.
        xwin = jnp.stack(
            [lax.dynamic_slice_in_dim(xflat, i * TH * Wp, LW, axis=2)
             for i in range(nht)], axis=1)                               # (B,nht,Cp,LW)

    # fixed (non-trainable) gaussian taps -> compile-time constants
    gw = tuple(float(v) for v in gaussian_kernel_np(size, sigma).reshape(-1))

    # folded BatchNorm (eval) affines; conv biases folded in
    s0, sh0 = _fold_bn(params["g0"], params["b0"], params["m0"], params["v0"])
    a1, c1 = _fold_bn(params["g1"], params["bn1b"], params["m1"], params["v1"],
                      conv_bias=params["b1"])
    a2, c2 = _fold_bn(params["g2"], params["bn2b"], params["m2"], params["v2"])
    a3, c3 = _fold_bn(params["g3"], params["bn3b"], params["m3"], params["v3"],
                      conv_bias=params["b3"])

    def padc(v):                     # zero-pad per-channel vectors to Cp
        return jnp.pad(v, (0, Cp - C))

    w1t = jnp.pad(params["w1"].T, ((0, 0), (0, Cp - C)))                 # (Cmid, Cp) f32
    w2t = params["w2"].reshape(9 * Cmid, Cmid).T.astype(jnp.bfloat16)    # (Cmid, 9*Cmid)
    w3t = params["w3"].T.astype(jnp.bfloat16)                            # (C, Cmid)

    # columns of the row-stride-Wp layout that are real image columns
    col = jnp.arange(Lt, dtype=jnp.int32) % Wp
    colmask = ((col >= p) & (col < p + W)).astype(jnp.float32).reshape(1, Lt)

    c2d = lambda b, i: (0, 0)
    in_specs = [
        pl.BlockSpec((1, 1, Cp, LW), lambda b, i: (b, i, 0, 0)),  # per-tile halo window
        pl.BlockSpec((1, Lt), c2d),            # column-validity mask
        pl.BlockSpec((Cp, 1), c2d),            # bn0 scale
        pl.BlockSpec((Cp, 1), c2d),            # bn0 shift
        pl.BlockSpec((Cmid, Cp), c2d),         # w1^T
        pl.BlockSpec((Cmid, 1), c2d),          # bn1 scale
        pl.BlockSpec((Cmid, 1), c2d),          # bn1 shift (+bias)
        pl.BlockSpec((Cmid, 9 * Cmid), c2d),   # w2^T (transposed im2col layout)
        pl.BlockSpec((Cmid, 1), c2d),          # bn2 scale
        pl.BlockSpec((Cmid, 1), c2d),          # bn2 shift
        pl.BlockSpec((C, Cmid), c2d),          # w3^T
        pl.BlockSpec((C, 1), c2d),             # bn3 scale
        pl.BlockSpec((C, 1), c2d),             # bn3 shift (+bias)
    ]
    out_spec = pl.BlockSpec((1, C, Lo), lambda b, i: (b, 0, i))

    flops = 2 * B * H * W * (C * k * k + Cp * Cmid + 9 * Cmid * Cmid + Cmid * C)
    bytes_accessed = (4 * (int(np.prod(xwin.shape)) + B * C * H * Wp)
                      + 2 * (9 * Cmid * Cmid + Cmid * Cp + Cmid * C))
    cost = pl.CostEstimate(flops=int(flops), transcendentals=0,
                           bytes_accessed=int(bytes_accessed))

    kernel = functools.partial(_ega_fused_kernel, gw=gw, k=k, p=p,
                               Wp=Wp, TH=TH, Cmid=Cmid)

    out = pl.pallas_call(
        kernel,
        out_shape=jax.ShapeDtypeStruct((B, C, H * Wp), jnp.float32),
        grid_spec=pltpu.PrefetchScalarGridSpec(
            num_scalar_prefetch=0,
            grid=(B, nht),
            in_specs=in_specs,
            out_specs=out_spec,
            scratch_shapes=[
                pltpu.VMEM((Cmid, Lt + 2), jnp.bfloat16),    # zero-masked h1 (bf16)
                pltpu.VMEM((9 * Cmid, Lo), jnp.bfloat16),    # transposed im2col (bf16)
            ]),
        compiler_params=pltpu.CompilerParams(
            dimension_semantics=("parallel", "parallel"),
            vmem_limit_bytes=48 * 1024 * 1024),
        cost_estimate=cost,
    )(xwin, colmask,
      padc(s0).reshape(Cp, 1), padc(sh0).reshape(Cp, 1),
      w1t, a1.reshape(Cmid, 1), c1.reshape(Cmid, 1),
      w2t, a2.reshape(Cmid, 1), c2.reshape(Cmid, 1),
      w3t, a3.reshape(C, 1), c3.reshape(C, 1))

    # drop the horizontal pad columns of the row-stride-Wp layout; already NCHW.
    return out.reshape(B, C, H, Wp)[:, :, :, p:p + W]


# ----------------------------------------------------------------------------
# Pure-JAX reference (direct transcription of the PyTorch forward)
# ----------------------------------------------------------------------------
def reference_forward(x_nchw, params, *, size):
    PH = jax.lax.Precision.HIGHEST
    x = jnp.transpose(x_nchw, (0, 2, 3, 1))  # NHWC
    B, H, W, C = x.shape
    p = size // 2

    def bn(v, g, b, m, var):
        return (v - m) / jnp.sqrt(var + EPS) * g + b

    gk = params["gauss2d"]
    dw = jnp.tile(gk[:, :, None, None], (1, 1, 1, C))  # HWIO, I=1, O=C
    edges = lax.conv_general_dilated(
        x, dw, window_strides=(1, 1), padding=[(p, p), (p, p)],
        dimension_numbers=("NHWC", "HWIO", "NHWC"), feature_group_count=C,
        precision=PH)
    gauss = jax.nn.relu(bn(edges, params["g0"], params["b0"],
                           params["m0"], params["v0"]))
    t = x + gauss

    h1 = jnp.einsum("bhwc,cd->bhwd", t, params["w1"], precision=PH) + params["b1"]
    h1 = jax.nn.relu(bn(h1, params["g1"], params["bn1b"],
                        params["m1"], params["v1"]))
    h2 = lax.conv_general_dilated(
        h1, params["w2"], window_strides=(1, 1), padding=[(1, 1), (1, 1)],
        dimension_numbers=("NHWC", "HWIO", "NHWC"), precision=PH)
    h2 = jax.nn.relu(bn(h2, params["g2"], params["bn2b"],
                        params["m2"], params["v2"]))
    o = jnp.einsum("bhwd,dc->bhwc", h2, params["w3"], precision=PH) + params["b3"]
    o = bn(o, params["g3"], params["bn3b"], params["m3"], params["v3"])
    return jnp.transpose(o, (0, 3, 1, 2))


# ----------------------------------------------------------------------------
# Deterministic synthetic parameters
# ----------------------------------------------------------------------------
def make_params(key, dim, size, sigma, mid=64):
    ks = jax.random.split(key, 24)

    def nrm(k, shape, s=0.1):
        return s * jax.random.normal(k, shape, jnp.float32)

    def uni(k, shape):
        return jax.random.uniform(k, shape, jnp.float32, 0.5, 1.5)

    gauss2d = jnp.asarray(gaussian_kernel_np(size, sigma))
    params = dict(
        gauss2d=gauss2d,
        # norm0 (BatchNorm over dim channels)
        g0=1.0 + nrm(ks[0], (dim,)), b0=nrm(ks[1], (dim,)),
        m0=nrm(ks[2], (dim,)), v0=uni(ks[3], (dim,)),
        # Conv_Extra: conv1 (1x1 dim->mid, bias) + bn1
        w1=nrm(ks[4], (dim, mid)), b1=nrm(ks[5], (mid,)),
        g1=1.0 + nrm(ks[6], (mid,)), bn1b=nrm(ks[7], (mid,)),
        m1=nrm(ks[8], (mid,)), v1=uni(ks[9], (mid,)),
        # conv2 (3x3 mid->mid, no bias, HWIO) + bn2
        w2=nrm(ks[10], (3, 3, mid, mid), 0.05),
        g2=1.0 + nrm(ks[11], (mid,)), bn2b=nrm(ks[12], (mid,)),
        m2=nrm(ks[13], (mid,)), v2=uni(ks[14], (mid,)),
        # conv3 (1x1 mid->dim, bias) + bn3
        w3=nrm(ks[15], (mid, dim)), b3=nrm(ks[16], (dim,)),
        g3=1.0 + nrm(ks[17], (dim,)), bn3b=nrm(ks[18], (dim,)),
        m3=nrm(ks[19], (dim,)), v3=uni(ks[20], (dim,)),
    )
    return params


# ----------------------------------------------------------------------------
if __name__ == "__main__":
    B, C, H, W = 2, 4, 16, 16
    size, sigma = 3, 1.0

    key = jax.random.PRNGKey(0)
    kx, kp = jax.random.split(key)
    x = jax.random.normal(kx, (B, C, H, W), jnp.float32)
    params = make_params(kp, C, size, sigma)

    out = jax.block_until_ready(
        edge_gaussian_aggregation(x, params, size=size, sigma=sigma))
    ref = jax.block_until_ready(reference_forward(x, params, size=size))

    # conv2 / conv3 run with bf16 operands (f32 accumulate) -> relaxed tolerance.
    np.testing.assert_allclose(np.asarray(out), np.asarray(ref),
                               rtol=2e-2, atol=2e-2)
    assert out.shape == (B, C, H, W)
    print("KERNEL_OK")
</pallas_src>

<mosaic_0001>
module attributes {stable_mosaic.version = 11 : i64} {
  func.func @_ega_fused_kernel(%arg0: i32, %arg1: i32, %arg2: memref<1x1x8x362xf32, #tpu.memory_space<vmem>>, %arg3: memref<1x324xf32, #tpu.memory_space<vmem>>, %arg4: memref<8x1xf32, #tpu.memory_space<vmem>>, %arg5: memref<8x1xf32, #tpu.memory_space<vmem>>, %arg6: memref<64x8xf32, #tpu.memory_space<vmem>>, %arg7: memref<64x1xf32, #tpu.memory_space<vmem>>, %arg8: memref<64x1xf32, #tpu.memory_space<vmem>>, %arg9: memref<64x576xbf16, #tpu.memory_space<vmem>>, %arg10: memref<64x1xf32, #tpu.memory_space<vmem>>, %arg11: memref<64x1xf32, #tpu.memory_space<vmem>>, %arg12: memref<4x64xbf16, #tpu.memory_space<vmem>>, %arg13: memref<4x1xf32, #tpu.memory_space<vmem>>, %arg14: memref<4x1xf32, #tpu.memory_space<vmem>>, %arg15: memref<1x4x288xf32, #tpu.memory_space<vmem>>, %arg16: memref<64x326xbf16, #tpu.memory_space<vmem>>, %arg17: memref<576x288xbf16, #tpu.memory_space<vmem>>) attributes {dimension_semantics = [#tpu.dimension_semantics<parallel>, #tpu.dimension_semantics<parallel>], iteration_bounds = array<i64: 2, 1>, scalar_prefetch = 0 : i64, scratch_operands = 2 : i64, tpu.core_type = #tpu.core_type<tc>, window_params = [{transform_indices = @transform_0, window_bounds = array<i64: 1, 1, 8, 362>}, {pipeline_mode = #tpu.pipeline_mode<synchronous>, transform_indices = @transform_1, window_bounds = array<i64: 1, 324>}, {pipeline_mode = #tpu.pipeline_mode<synchronous>, transform_indices = @transform_2, window_bounds = array<i64: 8, 1>}, {pipeline_mode = #tpu.pipeline_mode<synchronous>, transform_indices = @transform_3, window_bounds = array<i64: 8, 1>}, {pipeline_mode = #tpu.pipeline_mode<synchronous>, transform_indices = @transform_4, window_bounds = array<i64: 64, 8>}, {pipeline_mode = #tpu.pipeline_mode<synchronous>, transform_indices = @transform_5, window_bounds = array<i64: 64, 1>}, {pipeline_mode = #tpu.pipeline_mode<synchronous>, transform_indices = @transform_6, window_bounds = array<i64: 64, 1>}, {pipeline_mode = #tpu.pipeline_mode<synchronous>, transform_indices = @transform_7, window_bounds = array<i64: 64, 576>}, {pipeline_mode = #tpu.pipeline_mode<synchronous>, transform_indices = @transform_8, window_bounds = array<i64: 64, 1>}, {pipeline_mode = #tpu.pipeline_mode<synchronous>, transform_indices = @transform_9, window_bounds = array<i64: 64, 1>}, {pipeline_mode = #tpu.pipeline_mode<synchronous>, transform_indices = @transform_10, window_bounds = array<i64: 4, 64>}, {pipeline_mode = #tpu.pipeline_mode<synchronous>, transform_indices = @transform_11, window_bounds = array<i64: 4, 1>}, {pipeline_mode = #tpu.pipeline_mode<synchronous>, transform_indices = @transform_12, window_bounds = array<i64: 4, 1>}, {transform_indices = @transform_13, window_bounds = array<i64: 1, 4, 288>}]} {
    %c0 = arith.constant 0 : index
    %c0_0 = arith.constant 0 : index
    %c0_1 = arith.constant 0 : index
    %c19 = arith.constant 19 : index
    %0 = vector.load %arg2[%c0, %c0_0, %c0_1, %c19] : memref<1x1x8x362xf32, #tpu.memory_space<vmem>>, vector<1x1x8x324xf32>
    %1 = vector.shape_cast %0 : vector<1x1x8x324xf32> to vector<8x324xf32>
    %cst = arith.constant 0.204179958 : f32
    %2 = vector.broadcast %cst : f32 to vector<8x324xf32>
    %3 = arith.mulf %1, %2 : vector<8x324xf32>
    %c0_2 = arith.constant 0 : index
    %c0_3 = arith.constant 0 : index
    %c0_4 = arith.constant 0 : index
    %c0_5 = arith.constant 0 : index
    %4 = vector.load %arg2[%c0_2, %c0_3, %c0_4, %c0_5] : memref<1x1x8x362xf32, #tpu.memory_space<vmem>>, vector<1x1x8x324xf32>
    %5 = vector.shape_cast %4 : vector<1x1x8x324xf32> to vector<8x324xf32>
    %cst_6 = arith.constant 0.0751136169 : f32
    %6 = vector.broadcast %cst_6 : f32 to vector<8x324xf32>
    %7 = arith.mulf %5, %6 : vector<8x324xf32>
    %8 = arith.addf %3, %7 : vector<8x324xf32>
    %c0_7 = arith.constant 0 : index
    %c0_8 = arith.constant 0 : index
    %c0_9 = arith.constant 0 : index
    %c1 = arith.constant 1 : index
    %9 = vector.load %arg2[%c0_7, %c0_8, %c0_9, %c1] : memref<1x1x8x362xf32, #tpu.memory_space<vmem>>, vector<1x1x8x324xf32>
    %10 = vector.shape_cast %9 : vector<1x1x8x324xf32> to vector<8x324xf32>
    %cst_10 = arith.constant 0.123841412 : f32
    %11 = vector.broadcast %cst_10 : f32 to vector<8x324xf32>
    %12 = arith.mulf %10, %11 : vector<8x324xf32>
    %13 = arith.addf %8, %12 : vector<8x324xf32>
    %c0_11 = arith.constant 0 : index
    %c0_12 = arith.constant 0 : index
    %c0_13 = arith.constant 0 : index
    %c2 = arith.constant 2 : index
    %14 = vector.load %arg2[%c0_11, %c0_12, %c0_13, %c2] : memref<1x1x8x362xf32, #tpu.memory_space<vmem>>, vector<1x1x8x324xf32>
    %15 = vector.shape_cast %14 : vector<1x1x8x324xf32> to vector<8x324xf32>
    %cst_14 = arith.constant 0.0751136169 : f32
    %16 = vector.broadcast %cst_14 : f32 to vector<8x324xf32>
    %17 = arith.mulf %15, %16 : vector<8x324xf32>
    %18 = arith.addf %13, %17 : vector<8x324xf32>
    %c0_15 = arith.constant 0 : index
    %c0_16 = arith.constant 0 : index
    %c0_17 = arith.constant 0 : index
    %c18 = arith.constant 18 : index
    %19 = vector.load %arg2[%c0_15, %c0_16, %c0_17, %c18] : memref<1x1x8x362xf32, #tpu.memory_space<vmem>>, vector<1x1x8x324xf32>
    %20 = vector.shape_cast %19 : vector<1x1x8x324xf32> to vector<8x324xf32>
    %cst_18 = arith.constant 0.123841412 : f32
    %21 = vector.broadcast %cst_18 : f32 to vector<8x324xf32>
    %22 = arith.mulf %20, %21 : vector<8x324xf32>
    %23 = arith.addf %18, %22 : vector<8x324xf32>
    %c0_19 = arith.constant 0 : index
    %c0_20 = arith.constant 0 : index
    %c0_21 = arith.constant 0 : index
    %c20 = arith.constant 20 : index
    %24 = vector.load %arg2[%c0_19, %c0_20, %c0_21, %c20] : memref<1x1x8x362xf32, #tpu.memory_space<vmem>>, vector<1x1x8x324xf32>
    %25 = vector.shape_cast %24 : vector<1x1x8x324xf32> to vector<8x324xf32>
    %cst_22 = arith.constant 0.123841412 : f32
    %26 = vector.broadcast %cst_22 : f32 to vector<8x324xf32>
    %27 = arith.mulf %25, %26 : vector<8x324xf32>
    %28 = arith.addf %23, %27 : vector<8x324xf32>
    %c0_23 = arith.constant 0 : index
    %c0_24 = arith.constant 0 : index
    %c0_25 = arith.constant 0 : index
    %c36 = arith.constant 36 : index
    %29 = vector.load %arg2[%c0_23, %c0_24, %c0_25, %c36] : memref<1x1x8x362xf32, #tpu.memory_space<vmem>>, vector<1x1x8x324xf32>
    %30 = vector.shape_cast %29 : vector<1x1x8x324xf32> to vector<8x324xf32>
    %cst_26 = arith.constant 0.0751136169 : f32
    %31 = vector.broadcast %cst_26 : f32 to vector<8x324xf32>
    %32 = arith.mulf %30, %31 : vector<8x324xf32>
    %33 = arith.addf %28, %32 : vector<8x324xf32>
    %c0_27 = arith.constant 0 : index
    %c0_28 = arith.constant 0 : index
    %c0_29 = arith.constant 0 : index
    %c37 = arith.constant 37 : index
    %34 = vector.load %arg2[%c0_27, %c0_28, %c0_29, %c37] : memref<1x1x8x362xf32, #tpu.memory_space<vmem>>, vector<1x1x8x324xf32>
    %35 = vector.shape_cast %34 : vector<1x1x8x324xf32> to vector<8x324xf32>
    %cst_30 = arith.constant 0.123841412 : f32
    %36 = vector.broadcast %cst_30 : f32 to vector<8x324xf32>
    %37 = arith.mulf %35, %36 : vector<8x324xf32>
    %38 = arith.addf %33, %37 : vector<8x324xf32>
    %c0_31 = arith.constant 0 : index
    %c0_32 = arith.constant 0 : index
    %c0_33 = arith.constant 0 : index
    %c38 = arith.constant 38 : index
    %39 = vector.load %arg2[%c0_31, %c0_32, %c0_33, %c38] : memref<1x1x8x362xf32, #tpu.memory_space<vmem>>, vector<1x1x8x324xf32>
    %40 = vector.shape_cast %39 : vector<1x1x8x324xf32> to vector<8x324xf32>
    %cst_34 = arith.constant 0.0751136169 : f32
    %41 = vector.broadcast %cst_34 : f32 to vector<8x324xf32>
    %42 = arith.mulf %40, %41 : vector<8x324xf32>
    %43 = arith.addf %38, %42 : vector<8x324xf32>
    %c0_35 = arith.constant 0 : index
    %c0_36 = arith.constant 0 : index
    %44 = vector.load %arg4[%c0_35, %c0_36] : memref<8x1xf32, #tpu.memory_space<vmem>>, vector<8x1xf32>
    %45 = vector.broadcast %44 : vector<8x1xf32> to vector<8x324xf32>
    %46 = arith.mulf %43, %45 : vector<8x324xf32>
    %c0_37 = arith.constant 0 : index
    %c0_38 = arith.constant 0 : index
    %47 = vector.load %arg5[%c0_37, %c0_38] : memref<8x1xf32, #tpu.memory_space<vmem>>, vector<8x1xf32>
    %48 = vector.broadcast %47 : vector<8x1xf32> to vector<8x324xf32>
    %49 = arith.addf %46, %48 : vector<8x324xf32>
    %cst_39 = arith.constant 0.000000e+00 : f32
    %50 = vector.broadcast %cst_39 : f32 to vector<8x324xf32>
    %51 = arith.maximumf %49, %50 : vector<8x324xf32>
    %52 = arith.addf %1, %51 : vector<8x324xf32>
    %c0_40 = arith.constant 0 : index
    %c0_41 = arith.constant 0 : index
    %53 = vector.load %arg6[%c0_40, %c0_41] : memref<64x8xf32, #tpu.memory_space<vmem>>, vector<64x8xf32>
    %cst_42 = arith.constant dense<0.000000e+00> : vector<64x324xf32>
    %54 = tpu.matmul %53, %52, %cst_42 {dimension_numbers = #tpu.dot_dimension_numbers<[1], [0], [0], [1], [0, 0, 1, 1], [], []>, precision = #tpu.contract_precision<fp32>} : vector<64x8xf32>, vector<8x324xf32>, vector<64x324xf32> -> vector<64x324xf32>
    %c0_43 = arith.constant 0 : index
    %c0_44 = arith.constant 0 : index
    %55 = vector.load %arg7[%c0_43, %c0_44] : memref<64x1xf32, #tpu.memory_space<vmem>>, vector<64x1xf32>
    %56 = vector.broadcast %55 : vector<64x1xf32> to vector<64x324xf32>
    %57 = arith.mulf %54, %56 : vector<64x324xf32>
    %c0_45 = arith.constant 0 : index
    %c0_46 = arith.constant 0 : index
    %58 = vector.load %arg8[%c0_45, %c0_46] : memref<64x1xf32, #tpu.memory_space<vmem>>, vector<64x1xf32>
    %59 = vector.broadcast %58 : vector<64x1xf32> to vector<64x324xf32>
    %60 = arith.addf %57, %59 : vector<64x324xf32>
    %cst_47 = arith.constant 0.000000e+00 : f32
    %61 = vector.broadcast %cst_47 : f32 to vector<64x324xf32>
    %62 = arith.maximumf %60, %61 : vector<64x324xf32>
    %63 = tpu.iota {dimensions = array<i32: 1>} : vector<1x324xi32>
    %c0_i32 = arith.constant 0 : i32
    %64 = arith.cmpi sgt, %arg1, %c0_i32 : i32
    %c0_i32_48 = arith.constant 0 : i32
    %65 = arith.cmpi slt, %arg1, %c0_i32_48 : i32
    %c18_i32 = arith.constant 18 : i32
    %66 = vector.broadcast %c18_i32 : i32 to vector<1x324xi32>
    %67 = arith.cmpi sge, %63, %66 : vector<1x324xi32>
    %68 = vector.broadcast %64 : i1 to vector<1x324xi1>
    %69 = arith.ori %68, %67 : vector<1x324xi1>
    %c306_i32 = arith.constant 306 : i32
    %70 = vector.broadcast %c306_i32 : i32 to vector<1x324xi32>
    %71 = arith.cmpi slt, %63, %70 : vector<1x324xi32>
    %72 = vector.broadcast %65 : i1 to vector<1x324xi1>
    %73 = arith.ori %72, %71 : vector<1x324xi1>
    %74 = arith.andi %69, %73 : vector<1x324xi1>
    %c0_49 = arith.constant 0 : index
    %c0_50 = arith.constant 0 : index
    %75 = vector.load %arg3[%c0_49, %c0_50] : memref<1x324xf32, #tpu.memory_space<vmem>>, vector<1x324xf32>
    %cst_51 = arith.constant 0.000000e+00 : f32
    %76 = vector.broadcast %cst_51 : f32 to vector<1x324xf32>
    %77 = arith.select %74, %75, %76 : vector<1x324xi1>, vector<1x324xf32>
    %78 = vector.broadcast %77 : vector<1x324xf32> to vector<64x324xf32>
    %79 = arith.mulf %62, %78 : vector<64x324xf32>
    %80 = arith.truncf %79 : vector<64x324xf32> to vector<64x324xbf16>
    %c0_52 = arith.constant 0 : index
    %c1_53 = arith.constant 1 : index
    %81 = vector.load %arg16[%c0_52, %c1_53] : memref<64x326xbf16, #tpu.memory_space<vmem>>, vector<64x324xbf16>
    tpu.vector_store %arg16[%c0_52, %c1_53], %80 {strides = array<i32>} : memref<64x326xbf16, #tpu.memory_space<vmem>>, vector<64x324xbf16>,
    %c0_54 = arith.constant 0 : index
    %c0_55 = arith.constant 0 : index
    %82 = vector.load %arg16[%c0_54, %c0_55] : memref<64x326xbf16, #tpu.memory_space<vmem>>, vector<64x288xbf16>
    %c0_56 = arith.constant 0 : index
    %c0_57 = arith.constant 0 : index
    %83 = vector.load %arg17[%c0_56, %c0_57] : memref<576x288xbf16, #tpu.memory_space<vmem>>, vector<64x288xbf16>
    tpu.vector_store %arg17[%c0_56, %c0_57], %82 {strides = array<i32>} : memref<576x288xbf16, #tpu.memory_space<vmem>>, vector<64x288xbf16>,
    %c0_58 = arith.constant 0 : index
    %c1_59 = arith.constant 1 : index
    %84 = vector.load %arg16[%c0_58, %c1_59] : memref<64x326xbf16, #tpu.memory_space<vmem>>, vector<64x288xbf16>
    %c64 = arith.constant 64 : index
    %c0_60 = arith.constant 0 : index
    %85 = vector.load %arg17[%c64, %c0_60] : memref<576x288xbf16, #tpu.memory_space<vmem>>, vector<64x288xbf16>
    tpu.vector_store %arg17[%c64, %c0_60], %84 {strides = array<i32>} : memref<576x288xbf16, #tpu.memory_space<vmem>>, vector<64x288xbf16>,
    %c0_61 = arith.constant 0 : index
    %c2_62 = arith.constant 2 : index
    %86 = vector.load %arg16[%c0_61, %c2_62] : memref<64x326xbf16, #tpu.memory_space<vmem>>, vector<64x288xbf16>
    %c128 = arith.constant 128 : index
    %c0_63 = arith.constant 0 : index
    %87 = vector.load %arg17[%c128, %c0_63] : memref<576x288xbf16, #tpu.memory_space<vmem>>, vector<64x288xbf16>
    tpu.vector_store %arg17[%c128, %c0_63], %86 {strides = array<i32>} : memref<576x288xbf16, #tpu.memory_space<vmem>>, vector<64x288xbf16>,
    %c0_64 = arith.constant 0 : index
    %c18_65 = arith.constant 18 : index
    %88 = vector.load %arg16[%c0_64, %c18_65] : memref<64x326xbf16, #tpu.memory_space<vmem>>, vector<64x288xbf16>
    %c192 = arith.constant 192 : index
    %c0_66 = arith.constant 0 : index
    %89 = vector.load %arg17[%c192, %c0_66] : memref<576x288xbf16, #tpu.memory_space<vmem>>, vector<64x288xbf16>
    tpu.vector_store %arg17[%c192, %c0_66], %88 {strides = array<i32>} : memref<576x288xbf16, #tpu.memory_space<vmem>>, vector<64x288xbf16>,
    %c0_67 = arith.constant 0 : index
    %c19_68 = arith.constant 19 : index
    %90 = vector.load %arg16[%c0_67, %c19_68] : memref<64x326xbf16, #tpu.memory_space<vmem>>, vector<64x288xbf16>
    %c256 = arith.constant 256 : index
    %c0_69 = arith.constant 0 : index
    %91 = vector.load %arg17[%c256, %c0_69] : memref<576x288xbf16, #tpu.memory_space<vmem>>, vector<64x288xbf16>
    tpu.vector_store %arg17[%c256, %c0_69], %90 {strides = array<i32>} : memref<576x288xbf16, #tpu.memory_space<vmem>>, vector<64x288xbf16>,
    %c0_70 = arith.constant 0 : index
    %c20_71 = arith.constant 20 : index
    %92 = vector.load %arg16[%c0_70, %c20_71] : memref<64x326xbf16, #tpu.memory_space<vmem>>, vector<64x288xbf16>
    %c320 = arith.constant 320 : index
    %c0_72 = arith.constant 0 : index
    %93 = vector.load %arg17[%c320, %c0_72] : memref<576x288xbf16, #tpu.memory_space<vmem>>, vector<64x288xbf16>
    tpu.vector_store %arg17[%c320, %c0_72], %92 {strides = array<i32>} : memref<576x288xbf16, #tpu.memory_space<vmem>>, vector<64x288xbf16>,
    %c0_73 = arith.constant 0 : index
    %c36_74 = arith.constant 36 : index
    %94 = vector.load %arg16[%c0_73, %c36_74] : memref<64x326xbf16, #tpu.memory_space<vmem>>, vector<64x288xbf16>
    %c384 = arith.constant 384 : index
    %c0_75 = arith.constant 0 : index
    %95 = vector.load %arg17[%c384, %c0_75] : memref<576x288xbf16, #tpu.memory_space<vmem>>, vector<64x288xbf16>
    tpu.vector_store %arg17[%c384, %c0_75], %94 {strides = array<i32>} : memref<576x288xbf16, #tpu.memory_space<vmem>>, vector<64x288xbf16>,
    %c0_76 = arith.constant 0 : index
    %c37_77 = arith.constant 37 : index
    %96 = vector.load %arg16[%c0_76, %c37_77] : memref<64x326xbf16, #tpu.memory_space<vmem>>, vector<64x288xbf16>
    %c448 = arith.constant 448 : index
    %c0_78 = arith.constant 0 : index
    %97 = vector.load %arg17[%c448, %c0_78] : memref<576x288xbf16, #tpu.memory_space<vmem>>, vector<64x288xbf16>
    tpu.vector_store %arg17[%c448, %c0_78], %96 {strides = array<i32>} : memref<576x288xbf16, #tpu.memory_space<vmem>>, vector<64x288xbf16>,
    %c0_79 = arith.constant 0 : index
    %c38_80 = arith.constant 38 : index
    %98 = vector.load %arg16[%c0_79, %c38_80] : memref<64x326xbf16, #tpu.memory_space<vmem>>, vector<64x288xbf16>
    %c512 = arith.constant 512 : index
    %c0_81 = arith.constant 0 : index
    %99 = vector.load %arg17[%c512, %c0_81] : memref<576x288xbf16, #tpu.memory_space<vmem>>, vector<64x288xbf16>
    tpu.vector_store %arg17[%c512, %c0_81], %98 {strides = array<i32>} : memref<576x288xbf16, #tpu.memory_space<vmem>>, vector<64x288xbf16>,
    %c0_82 = arith.constant 0 : index
    %c0_83 = arith.constant 0 : index
    %100 = vector.load %arg9[%c0_82, %c0_83] : memref<64x576xbf16, #tpu.memory_space<vmem>>, vector<64x576xbf16>
    %c0_84 = arith.constant 0 : index
    %c0_85 = arith.constant 0 : index
    %101 = vector.load %arg17[%c0_84, %c0_85] : memref<576x288xbf16, #tpu.memory_space<vmem>>, vector<576x288xbf16>
    %cst_86 = arith.constant dense<0.000000e+00> : vector<64x288xf32>
    %102 = tpu.matmul %100, %101, %cst_86 {dimension_numbers = #tpu.dot_dimension_numbers<[1], [0], [0], [1], [0, 0, 1, 1], [], []>} : vector<64x576xbf16>, vector<576x288xbf16>, vector<64x288xf32> -> vector<64x288xf32>
    %c0_87 = arith.constant 0 : index
    %c0_88 = arith.constant 0 : index
    %103 = vector.load %arg10[%c0_87, %c0_88] : memref<64x1xf32, #tpu.memory_space<vmem>>, vector<64x1xf32>
    %104 = vector.broadcast %103 : vector<64x1xf32> to vector<64x288xf32>
    %105 = arith.mulf %102, %104 : vector<64x288xf32>
    %c0_89 = arith.constant 0 : index
    %c0_90 = arith.constant 0 : index
    %106 = vector.load %arg11[%c0_89, %c0_90] : memref<64x1xf32, #tpu.memory_space<vmem>>, vector<64x1xf32>
    %107 = vector.broadcast %106 : vector<64x1xf32> to vector<64x288xf32>
    %108 = arith.addf %105, %107 : vector<64x288xf32>
    %cst_91 = arith.constant 0.000000e+00 : f32
    %109 = vector.broadcast %cst_91 : f32 to vector<64x288xf32>
    %110 = arith.maximumf %108, %109 : vector<64x288xf32>
    %111 = arith.truncf %110 : vector<64x288xf32> to vector<64x288xbf16>
    %c0_92 = arith.constant 0 : index
    %c0_93 = arith.constant 0 : index
    %112 = vector.load %arg12[%c0_92, %c0_93] : memref<4x64xbf16, #tpu.memory_space<vmem>>, vector<4x64xbf16>
    %cst_94 = arith.constant dense<0.000000e+00> : vector<4x288xf32>
    %113 = tpu.matmul %112, %111, %cst_94 {dimension_numbers = #tpu.dot_dimension_numbers<[1], [0], [0], [1], [0, 0, 1, 1], [], []>} : vector<4x64xbf16>, vector<64x288xbf16>, vector<4x288xf32> -> vector<4x288xf32>
    %c0_95 = arith.constant 0 : index
    %c0_96 = arith.constant 0 : index
    %114 = vector.load %arg13[%c0_95, %c0_96] : memref<4x1xf32, #tpu.memory_space<vmem>>, vector<4x1xf32>
    %115 = vector.broadcast %114 : vector<4x1xf32> to vector<4x288xf32>
    %116 = arith.mulf %113, %115 : vector<4x288xf32>
    %c0_97 = arith.constant 0 : index
    %c0_98 = arith.constant 0 : index
    %117 = vector.load %arg14[%c0_97, %c0_98] : memref<4x1xf32, #tpu.memory_space<vmem>>, vector<4x1xf32>
    %118 = vector.broadcast %117 : vector<4x1xf32> to vector<4x288xf32>
    %119 = arith.addf %116, %118 : vector<4x288xf32>
    %c0_99 = arith.constant 0 : index
    %c0_100 = arith.constant 0 : index
    %c0_101 = arith.constant 0 : index
    %120 = vector.load %arg15[%c0_99, %c0_100, %c0_101] : memref<1x4x288xf32, #tpu.memory_space<vmem>>, vector<1x4x288xf32>
    %121 = vector.shape_cast %120 : vector<1x4x288xf32> to vector<4x288xf32>
    %122 = vector.shape_cast %119 : vector<4x288xf32> to vector<1x4x288xf32>
    tpu.vector_store %arg15[%c0_99, %c0_100, %c0_101], %122 {strides = array<i32>} : memref<1x4x288xf32, #tpu.memory_space<vmem>>, vector<1x4x288xf32>,
    return
  }
  func.func @transform_0(%arg0: i32, %arg1: i32) -> (i32, i32, i32, i32) {
    %c0_i32 = arith.constant 0 : i32
    %c0_i32_0 = arith.constant 0 : i32
    %c0_i32_1 = arith.constant 0 : i32
    return %arg0, %arg1, %c0_i32, %c0_i32_0 : i32, i32, i32, i32
  }
  func.func @transform_1(%arg0: i32, %arg1: i32) -> (i32, i32) {
    %c0_i32 = arith.constant 0 : i32
    %c0_i32_0 = arith.constant 0 : i32
    %c0_i32_1 = arith.constant 0 : i32
    return %c0_i32, %c0_i32_0 : i32, i32
  }
  func.func @transform_2(%arg0: i32, %arg1: i32) -> (i32, i32) {
    %c0_i32 = arith.constant 0 : i32
    %c0_i32_0 = arith.constant 0 : i32
    %c0_i32_1 = arith.constant 0 : i32
    return %c0_i32, %c0_i32_0 : i32, i32
  }
  func.func @transform_3(%arg0: i32, %arg1: i32) -> (i32, i32) {
    %c0_i32 = arith.constant 0 : i32
    %c0_i32_0 = arith.constant 0 : i32
    %c0_i32_1 = arith.constant 0 : i32
    return %c0_i32, %c0_i32_0 : i32, i32
  }
  func.func @transform_4(%arg0: i32, %arg1: i32) -> (i32, i32) {
    %c0_i32 = arith.constant 0 : i32
    %c0_i32_0 = arith.constant 0 : i32
    %c0_i32_1 = arith.constant 0 : i32
    return %c0_i32, %c0_i32_0 : i32, i32
  }
  func.func @transform_5(%arg0: i32, %arg1: i32) -> (i32, i32) {
    %c0_i32 = arith.constant 0 : i32
    %c0_i32_0 = arith.constant 0 : i32
    %c0_i32_1 = arith.constant 0 : i32
    return %c0_i32, %c0_i32_0 : i32, i32
  }
  func.func @transform_6(%arg0: i32, %arg1: i32) -> (i32, i32) {
    %c0_i32 = arith.constant 0 : i32
    %c0_i32_0 = arith.constant 0 : i32
    %c0_i32_1 = arith.constant 0 : i32
    return %c0_i32, %c0_i32_0 : i32, i32
  }
  func.func @transform_7(%arg0: i32, %arg1: i32) -> (i32, i32) {
    %c0_i32 = arith.constant 0 : i32
    %c0_i32_0 = arith.constant 0 : i32
    %c0_i32_1 = arith.constant 0 : i32
    return %c0_i32, %c0_i32_0 : i32, i32
  }
  func.func @transform_8(%arg0: i32, %arg1: i32) -> (i32, i32) {
    %c0_i32 = arith.constant 0 : i32
    %c0_i32_0 = arith.constant 0 : i32
    %c0_i32_1 = arith.constant 0 : i32
    return %c0_i32, %c0_i32_0 : i32, i32
  }
  func.func @transform_9(%arg0: i32, %arg1: i32) -> (i32, i32) {
    %c0_i32 = arith.constant 0 : i32
    %c0_i32_0 = arith.constant 0 : i32
    %c0_i32_1 = arith.constant 0 : i32
    return %c0_i32, %c0_i32_0 : i32, i32
  }
  func.func @transform_10(%arg0: i32, %arg1: i32) -> (i32, i32) {
    %c0_i32 = arith.constant 0 : i32
    %c0_i32_0 = arith.constant 0 : i32
    %c0_i32_1 = arith.constant 0 : i32
    return %c0_i32, %c0_i32_0 : i32, i32
  }
  func.func @transform_11(%arg0: i32, %arg1: i32) -> (i32, i32) {
    %c0_i32 = arith.constant 0 : i32
    %c0_i32_0 = arith.constant 0 : i32
    %c0_i32_1 = arith.constant 0 : i32
    return %c0_i32, %c0_i32_0 : i32, i32
  }
  func.func @transform_12(%arg0: i32, %arg1: i32) -> (i32, i32) {
    %c0_i32 = arith.constant 0 : i32
    %c0_i32_0 = arith.constant 0 : i32
    %c0_i32_1 = arith.constant 0 : i32
    return %c0_i32, %c0_i32_0 : i32, i32
  }
  func.func @transform_13(%arg0: i32, %arg1: i32) -> (i32, i32, i32) {
    %c0_i32 = arith.constant 0 : i32
    %c0_i32_0 = arith.constant 0 : i32
    return %arg0, %c0_i32, %arg1 : i32, i32, i32
  }
}

</mosaic_0001>

<llo_original>
// kernel: tpu_custom_call.1
$region0: #{tpu_custom_call.1}
  #allocation0 [shape = 'u32[]', space=smem, size = 0x4, offset = 0x4, fixed_abs, tag = 'smem constant byte address 0x4 - core index']
  #allocation1 [shape = 'u32[144,128]{1,0:T(1,128)}', space=vmem, size = 0x12000, scoped, tag = 'internal scratch']
  #allocation2 [shape = 'bf16[64,326]{1,0:T(16,128)(2,1)}', space=vmem, size = 0xc000, scoped, tag = 'scratch operand']
  #allocation3 [shape = 'bf16[576,288]{1,0:T(16,128)(2,1)}', space=vmem, size = 0x6c000, scoped, tag = 'scratch operand']
  %s0 = inlined_call_operand.vmem [shape: f32[2,1,8,362], index: 0, kind: input, shape index: {}]
  %s1 = inlined_call_operand.vmem [shape: f32[1,324], index: 1, kind: input, shape index: {}]
  %s2 = inlined_call_operand.vmem [shape: f32[8,1], index: 2, kind: input, shape index: {}]
  %s3 = inlined_call_operand.vmem [shape: f32[8,1], index: 3, kind: input, shape index: {}]
  %s4 = inlined_call_operand.vmem [shape: f32[64,8], index: 4, kind: input, shape index: {}]
  %s5 = inlined_call_operand.vmem [shape: f32[64,1], index: 5, kind: input, shape index: {}]
  %s6 = inlined_call_operand.vmem [shape: f32[64,1], index: 6, kind: input, shape index: {}]
  %s7 = inlined_call_operand.vmem [shape: bf16[64,576], index: 7, kind: input, shape index: {}]
  %s8 = inlined_call_operand.vmem [shape: f32[64,1], index: 8, kind: input, shape index: {}]
  %s9 = inlined_call_operand.vmem [shape: f32[64,1], index: 9, kind: input, shape index: {}]
  %s10 = inlined_call_operand.vmem [shape: bf16[4,64], index: 10, kind: input, shape index: {}]
  %s11 = inlined_call_operand.vmem [shape: f32[4,1], index: 11, kind: input, shape index: {}]
  %s12 = inlined_call_operand.vmem [shape: f32[4,1], index: 12, kind: input, shape index: {}]
  %s13 = inlined_call_operand.hbm [shape: f32[2,4,288], index: 13, kind: output, shape index: {}]
  %s14 = sld [smem:[#allocation0]]
  $region85: #{tpu_custom_call.1} parent=0
    _
  %s16 = ssub.s32 1, %s14
  %s17 = scalar_select 0, %s16, %s14
  $region1: #{tpu_custom_call.1} parent=0
    #allocation4 [shape = 'u8[12288]{0}', space=vmem, size = 0x3000, scoped, tag = 'output window, operand 0']
    #allocation5 [shape = 's32[2]{0}', space=sflag, size = 0x8, scoped, tag = 'scoped memory for tpu_custom_call.1']
    %18 = vsyncpa [#allocation5], 0
    %s19 = scalar_lea.sflag [#allocation5], 1
    %20 = vsyncpa %s19, 0
    loop: start=0, step=1, limit=4
    $region2: #{tpu_custom_call.1} parent=1 // loop_pre_header
      _
    $region3: #{tpu_custom_call.1} parent=1 // loop_header
      %s22 = sphi 0, %s26
      %p23 = scmp.ge.s32.totalorder %s22, 4
      %s29 = sphi 0, %s41
      %s30 = sphi 0, %s37
      %s31 = sphi 0, %s29
      %s32 = sphi 0, %s30
      %s33 = sphi 0, %s31
      %s34 = sphi 0, %s32
      %s46 = sphi 0, %s48
      %s49 = sphi 0, %s46
      %s50 = sphi 0, %s49
      %s66 = sphi 0, %s50
      %s70 = sphi 0, %s70
      %s72 = sphi 0, %s70
      %s73 = sphi 0, %s72
      %s87 = sphi 0, %s73
      %s91 = sphi 0, %s91
      %s93 = sphi 0, %s91
      %s94 = sphi 0, %s93
      %s108 = sphi 0, %s94
      %s112 = sphi 0, %s112
      %s114 = sphi 0, %s112
      %s115 = sphi 0, %s114
      %s129 = sphi 0, %s115
      %s133 = sphi 0, %s133
      %s135 = sphi 0, %s133
      %s136 = sphi 0, %s135
      %s150 = sphi 0, %s136
      %s154 = sphi 0, %s154
      %s156 = sphi 0, %s154
      %s157 = sphi 0, %s156
      %s171 = sphi 0, %s157
      %s175 = sphi 0, %s175
      %s177 = sphi 0, %s175
      %s178 = sphi 0, %s177
      %s192 = sphi 0, %s178
      %s196 = sphi 0, %s196
      %s198 = sphi 0, %s196
      %s199 = sphi 0, %s198
      %s213 = sphi 0, %s199
      %s217 = sphi 0, %s217
      %s219 = sphi 0, %s217
      %s220 = sphi 0, %s219
      %s234 = sphi 0, %s220
      %s238 = sphi 0, %s238
      %s240 = sphi 0, %s238
      %s241 = sphi 0, %s240
      %s255 = sphi 0, %s241
      %s259 = sphi 0, %s259
      %s261 = sphi 0, %s259
      %s262 = sphi 0, %s261
      %s276 = sphi 0, %s262
      %s280 = sphi 0, %s280
      %s282 = sphi 0, %s280
      %s283 = sphi 0, %s282
      %s297 = sphi 0, %s283
      %s301 = sphi 0, %s301
      %s303 = sphi 0, %s301
      %s304 = sphi 0, %s303
      %s318 = sphi 0, %s304
      %s326 = sphi 0, %s328
      %s329 = sphi 0, %s326
      %s330 = sphi 0, %s329
      %s346 = sphi 0, %s330
    $region4: #{tpu_custom_call.1} parent=1 // loop_header_branch
      %25 = sbr.rel (%p23) target = $region8
    $region5: #{tpu_custom_call.1} parent=1 // loop_body
      %s27 = ssub.s32 %s22, 1
      %s28 = ssub.s32 %s22, 2
      %s35 = sadd.s32 1, %s30
      %p36 = scmp.ge.s32.totalorder %s35, 1
      %s37 = scalar_select %p36, 0, %s35
      %s38 = sadd.s32 1, %s29
      %s39 = scalar_select %p36, %s38, %s29
      %p40 = scmp.ge.s32.totalorder %s39, 2
      %s41 = scalar_select %p40, 0, %s39
      %s42 = ssub.s32 %s29, %s41
      %s43 = ssub.s32 %s30, %s37
      %s44 = sor.u32 %s42, %s43
      %p45 = scmp.eq.s32.totalorder %s44, 0
      %s47 = sadd.s32 %s46, 1
      %s48 = scalar_select %p45, %s46, %s47
      %p51 = pneg %p45
      %p52 = scmp.eq.s32.totalorder %s22, 1
      %p53 = por %p51, %p52
      %p54 = scmp.ne.s32.totalorder %s46, %s49
      %p55 = scmp.eq.s32.totalorder %s22, 0
      %p56 = por %p54, %p55
      %p57 = scmp.ne.s32.totalorder %s46, %s49
      %p58 = scmp.eq.s32.totalorder %s27, 1
      %p59 = por %p57, %p58
      %p60 = scmp.ne.s32.totalorder %s49, %s50
      %p61 = scmp.eq.s32.totalorder %s27, 0
      %p62 = por %p60, %p61
      %p63 = scmp.ne.s32.totalorder %s49, %s50
      %p64 = scmp.eq.s32.totalorder %s28, 1
      %p65 = por %p63, %p64
      %p67 = scmp.ne.s32.totalorder %s50, %s66
      %p68 = scmp.eq.s32.totalorder %s28, 0
      %p69 = por %p67, %p68
      %s71 = sadd.s32 %s70, 1
      %p74 = scmp.eq.s32.totalorder %s22, 1
      %p75 = scmp.ne.s32.totalorder %s70, %s72
      %p76 = scmp.eq.s32.totalorder %s22, 0
      %p77 = por %p75, %p76
      %p78 = scmp.ne.s32.totalorder %s70, %s72
      %p79 = scmp.eq.s32.totalorder %s27, 1
      %p80 = por %p78, %p79
      %p81 = scmp.ne.s32.totalorder %s72, %s73
      %p82 = scmp.eq.s32.totalorder %s27, 0
      %p83 = por %p81, %p82
      %p84 = scmp.ne.s32.totalorder %s72, %s73
      %p85 = scmp.eq.s32.totalorder %s28, 1
      %p86 = por %p84, %p85
      %p88 = scmp.ne.s32.totalorder %s73, %s87
      %p89 = scmp.eq.s32.totalorder %s28, 0
      %p90 = por %p88, %p89
      %s92 = sadd.s32 %s91, 1
      %p95 = scmp.eq.s32.totalorder %s22, 1
      %p96 = scmp.ne.s32.totalorder %s91, %s93
      %p97 = scmp.eq.s32.totalorder %s22, 0
      %p98 = por %p96, %p97
      %p99 = scmp.ne.s32.totalorder %s91, %s93
      %p100 = scmp.eq.s32.totalorder %s27, 1
      %p101 = por %p99, %p100
      %p102 = scmp.ne.s32.totalorder %s93, %s94
      %p103 = scmp.eq.s32.totalorder %s27, 0
      %p104 = por %p102, %p103
      %p105 = scmp.ne.s32.totalorder %s93, %s94
      %p106 = scmp.eq.s32.totalorder %s28, 1
      %p107 = por %p105, %p106
      %p109 = scmp.ne.s32.totalorder %s94, %s108
      %p110 = scmp.eq.s32.totalorder %s28, 0
      %p111 = por %p109, %p110
      %s113 = sadd.s32 %s112, 1
      %p116 = scmp.eq.s32.totalorder %s22, 1
      %p117 = scmp.ne.s32.totalorder %s112, %s114
      %p118 = scmp.eq.s32.totalorder %s22, 0
      %p119 = por %p117, %p118
      %p120 = scmp.ne.s32.totalorder %s112, %s114
      %p121 = scmp.eq.s32.totalorder %s27, 1
      %p122 = por %p120, %p121
      %p123 = scmp.ne.s32.totalorder %s114, %s115
      %p124 = scmp.eq.s32.totalorder %s27, 0
      %p125 = por %p123, %p124
      %p126 = scmp.ne.s32.totalorder %s114, %s115
      %p127 = scmp.eq.s32.totalorder %s28, 1
      %p128 = por %p126, %p127
      %p130 = scmp.ne.s32.totalorder %s115, %s129
      %p131 = scmp.eq.s32.totalorder %s28, 0
      %p132 = por %p130, %p131
      %s134 = sadd.s32 %s133, 1
      %p137 = scmp.eq.s32.totalorder %s22, 1
      %p138 = scmp.ne.s32.totalorder %s133, %s135
      %p139 = scmp.eq.s32.totalorder %s22, 0
      %p140 = por %p138, %p139
      %p141 = scmp.ne.s32.totalorder %s133, %s135
      %p142 = scmp.eq.s32.totalorder %s27, 1
      %p143 = por %p141, %p142
      %p144 = scmp.ne.s32.totalorder %s135, %s136
      %p145 = scmp.eq.s32.totalorder %s27, 0
      %p146 = por %p144, %p145
      %p147 = scmp.ne.s32.totalorder %s135, %s136
      %p148 = scmp.eq.s32.totalorder %s28, 1
      %p149 = por %p147, %p148
      %p151 = scmp.ne.s32.totalorder %s136, %s150
      %p152 = scmp.eq.s32.totalorder %s28, 0
      %p153 = por %p151, %p152
      %s155 = sadd.s32 %s154, 1
      %p158 = scmp.eq.s32.totalorder %s22, 1
      %p159 = scmp.ne.s32.totalorder %s154, %s156
      %p160 = scmp.eq.s32.totalorder %s22, 0
      %p161 = por %p159, %p160
      %p162 = scmp.ne.s32.totalorder %s154, %s156
      %p163 = scmp.eq.s32.totalorder %s27, 1
      %p164 = por %p162, %p163
      %p165 = scmp.ne.s32.totalorder %s156, %s157
      %p166 = scmp.eq.s32.totalorder %s27, 0
      %p167 = por %p165, %p166
      %p168 = scmp.ne.s32.totalorder %s156, %s157
      %p169 = scmp.eq.s32.totalorder %s28, 1
      %p170 = por %p168, %p169
      %p172 = scmp.ne.s32.totalorder %s157, %s171
      %p173 = scmp.eq.s32.totalorder %s28, 0
      %p174 = por %p172, %p173
      %s176 = sadd.s32 %s175, 1
      %p179 = scmp.eq.s32.totalorder %s22, 1
      %p180 = scmp.ne.s32.totalorder %s175, %s177
      %p181 = scmp.eq.s32.totalorder %s22, 0
      %p182 = por %p180, %p181
      %p183 = scmp.ne.s32.totalorder %s175, %s177
      %p184 = scmp.eq.s32.totalorder %s27, 1
      %p185 = por %p183, %p184
      %p186 = scmp.ne.s32.totalorder %s177, %s178
      %p187 = scmp.eq.s32.totalorder %s27, 0
      %p188 = por %p186, %p187
      %p189 = scmp.ne.s32.totalorder %s177, %s178
      %p190 = scmp.eq.s32.totalorder %s28, 1
      %p191 = por %p189, %p190
      %p193 = scmp.ne.s32.totalorder %s178, %s192
      %p194 = scmp.eq.s32.totalorder %s28, 0
      %p195 = por %p193, %p194
      %s197 = sadd.s32 %s196, 1
      %p200 = scmp.eq.s32.totalorder %s22, 1
      %p201 = scmp.ne.s32.totalorder %s196, %s198
      %p202 = scmp.eq.s32.totalorder %s22, 0
      %p203 = por %p201, %p202
      %p204 = scmp.ne.s32.totalorder %s196, %s198
      %p205 = scmp.eq.s32.totalorder %s27, 1
      %p206 = por %p204, %p205
      %p207 = scmp.ne.s32.totalorder %s198, %s199
      %p208 = scmp.eq.s32.totalorder %s27, 0
      %p209 = por %p207, %p208
      %p210 = scmp.ne.s32.totalorder %s198, %s199
      %p211 = scmp.eq.s32.totalorder %s28, 1
      %p212 = por %p210, %p211
      %p214 = scmp.ne.s32.totalorder %s199, %s213
      %p215 = scmp.eq.s32.totalorder %s28, 0
      %p216 = por %p214, %p215
      %s218 = sadd.s32 %s217, 1
      %p221 = scmp.eq.s32.totalorder %s22, 1
      %p222 = scmp.ne.s32.totalorder %s217, %s219
      %p223 = scmp.eq.s32.totalorder %s22, 0
      %p224 = por %p222, %p223
      %p225 = scmp.ne.s32.totalorder %s217, %s219
      %p226 = scmp.eq.s32.totalorder %s27, 1
      %p227 = por %p225, %p226
      %p228 = scmp.ne.s32.totalorder %s219, %s220
      %p229 = scmp.eq.s32.totalorder %s27, 0
      %p230 = por %p228, %p229
      %p231 = scmp.ne.s32.totalorder %s219, %s220
      %p232 = scmp.eq.s32.totalorder %s28, 1
      %p233 = por %p231, %p232
      %p235 = scmp.ne.s32.totalorder %s220, %s234
      %p236 = scmp.eq.s32.totalorder %s28, 0
      %p237 = por %p235, %p236
      %s239 = sadd.s32 %s238, 1
      %p242 = scmp.eq.s32.totalorder %s22, 1
      %p243 = scmp.ne.s32.totalorder %s238, %s240
      %p244 = scmp.eq.s32.totalorder %s22, 0
      %p245 = por %p243, %p244
      %p246 = scmp.ne.s32.totalorder %s238, %s240
      %p247 = scmp.eq.s32.totalorder %s27, 1
      %p248 = por %p246, %p247
      %p249 = scmp.ne.s32.totalorder %s240, %s241
      %p250 = scmp.eq.s32.totalorder %s27, 0
      %p251 = por %p249, %p250
      %p252 = scmp.ne.s32.totalorder %s240, %s241
      %p253 = scmp.eq.s32.totalorder %s28, 1
      %p254 = por %p252, %p253
      %p256 = scmp.ne.s32.totalorder %s241, %s255
      %p257 = scmp.eq.s32.totalorder %s28, 0
      %p258 = por %p256, %p257
      %s260 = sadd.s32 %s259, 1
      %p263 = scmp.eq.s32.totalorder %s22, 1
      %p264 = scmp.ne.s32.totalorder %s259, %s261
      %p265 = scmp.eq.s32.totalorder %s22, 0
      %p266 = por %p264, %p265
      %p267 = scmp.ne.s32.totalorder %s259, %s261
      %p268 = scmp.eq.s32.totalorder %s27, 1
      %p269 = por %p267, %p268
      %p270 = scmp.ne.s32.totalorder %s261, %s262
      %p271 = scmp.eq.s32.totalorder %s27, 0
      %p272 = por %p270, %p271
      %p273 = scmp.ne.s32.totalorder %s261, %s262
      %p274 = scmp.eq.s32.totalorder %s28, 1
      %p275 = por %p273, %p274
      %p277 = scmp.ne.s32.totalorder %s262, %s276
      %p278 = scmp.eq.s32.totalorder %s28, 0
      %p279 = por %p277, %p278
      %s281 = sadd.s32 %s280, 1
      %p284 = scmp.eq.s32.totalorder %s22, 1
      %p285 = scmp.ne.s32.totalorder %s280, %s282
      %p286 = scmp.eq.s32.totalorder %s22, 0
      %p287 = por %p285, %p286
      %p288 = scmp.ne.s32.totalorder %s280, %s282
      %p289 = scmp.eq.s32.totalorder %s27, 1
      %p290 = por %p288, %p289
      %p291 = scmp.ne.s32.totalorder %s282, %s283
      %p292 = scmp.eq.s32.totalorder %s27, 0
      %p293 = por %p291, %p292
      %p294 = scmp.ne.s32.totalorder %s282, %s283
      %p295 = scmp.eq.s32.totalorder %s28, 1
      %p296 = por %p294, %p295
      %p298 = scmp.ne.s32.totalorder %s283, %s297
      %p299 = scmp.eq.s32.totalorder %s28, 0
      %p300 = por %p298, %p299
      %s302 = sadd.s32 %s301, 1
      %p305 = scmp.eq.s32.totalorder %s22, 1
      %p306 = scmp.ne.s32.totalorder %s301, %s303
      %p307 = scmp.eq.s32.totalorder %s22, 0
      %p308 = por %p306, %p307
      %p309 = scmp.ne.s32.totalorder %s301, %s303
      %p310 = scmp.eq.s32.totalorder %s27, 1
      %p311 = por %p309, %p310
      %p312 = scmp.ne.s32.totalorder %s303, %s304
      %p313 = scmp.eq.s32.totalorder %s27, 0
      %p314 = por %p312, %p313
      %p315 = scmp.ne.s32.totalorder %s303, %s304
      %p316 = scmp.eq.s32.totalorder %s28, 1
      %p317 = por %p315, %p316
      %p319 = scmp.ne.s32.totalorder %s304, %s318
      %p320 = scmp.eq.s32.totalorder %s28, 0
      %p321 = por %p319, %p320
      %s322 = ssub.s32 %s29, %s41
      %s323 = ssub.s32 %s30, %s37
      %s324 = sor.u32 %s322, %s323
      %p325 = scmp.eq.s32.totalorder %s324, 0
      %s327 = sadd.s32 %s326, 1
      %s328 = scalar_select %p325, %s326, %s327
      %p331 = pneg %p325
      %p332 = scmp.eq.s32.totalorder %s22, 1
      %p333 = por %p331, %p332
      %p334 = scmp.ne.s32.totalorder %s326, %s329
      %p335 = scmp.eq.s32.totalorder %s22, 0
      %p336 = por %p334, %p335
      %p337 = scmp.ne.s32.totalorder %s326, %s329
      %p338 = scmp.eq.s32.totalorder %s27, 1
      %p339 = por %p337, %p338
      %p340 = scmp.ne.s32.totalorder %s329, %s330
      %p341 = scmp.eq.s32.totalorder %s27, 0
      %p342 = por %p340, %p341
      %p343 = scmp.ne.s32.totalorder %s329, %s330
      %p344 = scmp.eq.s32.totalorder %s28, 1
      %p345 = por %p343, %p344
      %p347 = scmp.ne.s32.totalorder %s330, %s346
      %p348 = scmp.eq.s32.totalorder %s28, 0
      %p349 = por %p347, %p348
      %p350 = scmp.le.s32.totalorder 1, %s22
      %p351 = scmp.lt.s32.totalorder %s22, 3
      %p352 = pnand %p350, %p351
      %p353 = pneg %p352
      // Predicated region
      $region9: #{tpu_custom_call.1} parent=5 // pred_check
        _
      $region10: #{tpu_custom_call.1} parent=5 // pred_check_branch
        %355 = sbr.rel (%p352) target = $region12
      $region11: #{tpu_custom_call.1} parent=5 // pred_region
        %s356 = ssub.s32 %s22, 1
        // Predicated region
        $region13: #{tpu_custom_call.1} parent=11 // pred_check
          %p357 = pneg %p83
        $region14: #{tpu_custom_call.1} parent=11 // pred_check_branch
          %359 = sbr.rel (%p357) target = $region16
        $region15: #{tpu_custom_call.1} parent=11 // pred_region
          _
        $region16: #{tpu_custom_call.1} parent=11 // pred_fallthru
          _
        // Predicated region
        $region17: #{tpu_custom_call.1} parent=11 // pred_check
          %p360 = pneg %p104
        $region18: #{tpu_custom_call.1} parent=11 // pred_check_branch
          %362 = sbr.rel (%p360) target = $region20
        $region19: #{tpu_custom_call.1} parent=11 // pred_region
          _
        $region20: #{tpu_custom_call.1} parent=11 // pred_fallthru
          _
        // Predicated region
        $region21: #{tpu_custom_call.1} parent=11 // pred_check
          %p363 = pneg %p125
        $region22: #{tpu_custom_call.1} parent=11 // pred_check_branch
          %365 = sbr.rel (%p363) target = $region24
        $region23: #{tpu_custom_call.1} parent=11 // pred_region
          _
        $region24: #{tpu_custom_call.1} parent=11 // pred_fallthru
          _
        // Predicated region
        $region25: #{tpu_custom_call.1} parent=11 // pred_check
          %p366 = pneg %p146
        $region26: #{tpu_custom_call.1} parent=11 // pred_check_branch
          %368 = sbr.rel (%p366) target = $region28
        $region27: #{tpu_custom_call.1} parent=11 // pred_region
          _
        $region28: #{tpu_custom_call.1} parent=11 // pred_fallthru
          _
        // Predicated region
        $region29: #{tpu_custom_call.1} parent=11 // pred_check
          %p369 = pneg %p167
        $region30: #{tpu_custom_call.1} parent=11 // pred_check_branch
          %371 = sbr.rel (%p369) target = $region32
        $region31: #{tpu_custom_call.1} parent=11 // pred_region
          _
        $region32: #{tpu_custom_call.1} parent=11 // pred_fallthru
          _
        // Predicated region
        $region33: #{tpu_custom_call.1} parent=11 // pred_check
          %p372 = pneg %p188
        $region34: #{tpu_custom_call.1} parent=11 // pred_check_branch
          %374 = sbr.rel (%p372) target = $region36
        $region35: #{tpu_custom_call.1} parent=11 // pred_region
          _
        $region36: #{tpu_custom_call.1} parent=11 // pred_fallthru
          _
        // Predicated region
        $region37: #{tpu_custom_call.1} parent=11 // pred_check
          %p375 = pneg %p209
        $region38: #{tpu_custom_call.1} parent=11 // pred_check_branch
          %377 = sbr.rel (%p375) target = $region40
        $region39: #{tpu_custom_call.1} parent=11 // pred_region
          _
        $region40: #{tpu_custom_call.1} parent=11 // pred_fallthru
          _
        // Predicated region
        $region41: #{tpu_custom_call.1} parent=11 // pred_check
          %p378 = pneg %p230
        $region42: #{tpu_custom_call.1} parent=11 // pred_check_branch
          %380 = sbr.rel (%p378) target = $region44
        $region43: #{tpu_custom_call.1} parent=11 // pred_region
          _
        $region44: #{tpu_custom_call.1} parent=11 // pred_fallthru
          _
        // Predicated region
        $region45: #{tpu_custom_call.1} parent=11 // pred_check
          %p381 = pneg %p251
        $region46: #{tpu_custom_call.1} parent=11 // pred_check_branch
          %383 = sbr.rel (%p381) target = $region48
        $region47: #{tpu_custom_call.1} parent=11 // pred_region
          _
        $region48: #{tpu_custom_call.1} parent=11 // pred_fallthru
          _
        // Predicated region
        $region49: #{tpu_custom_call.1} parent=11 // pred_check
          %p384 = pneg %p272
        $region50: #{tpu_custom_call.1} parent=11 // pred_check_branch
          %386 = sbr.rel (%p384) target = $region52
        $region51: #{tpu_custom_call.1} parent=11 // pred_region
          _
        $region52: #{tpu_custom_call.1} parent=11 // pred_fallthru
          _
        // Predicated region
        $region53: #{tpu_custom_call.1} parent=11 // pred_check
          %p387 = pneg %p293
        $region54: #{tpu_custom_call.1} parent=11 // pred_check_branch
          %389 = sbr.rel (%p387) target = $region56
        $region55: #{tpu_custom_call.1} parent=11 // pred_region
          _
        $region56: #{tpu_custom_call.1} parent=11 // pred_fallthru
          _
        // Predicated region
        $region57: #{tpu_custom_call.1} parent=11 // pred_check
          %p390 = pneg %p314
        $region58: #{tpu_custom_call.1} parent=11 // pred_check_branch
          %392 = sbr.rel (%p390) target = $region60
        $region59: #{tpu_custom_call.1} parent=11 // pred_region
          _
        $region60: #{tpu_custom_call.1} parent=11 // pred_fallthru
          _
      $region12: #{tpu_custom_call.1} parent=5 // pred_fallthru
        _
      %p393 = scmp.lt.s32.totalorder %s22, 2
      // Predicated region
      $region61: #{tpu_custom_call.1} parent=5 // pred_check
        %p394 = pneg %p393
      $region62: #{tpu_custom_call.1} parent=5 // pred_check_branch
        %396 = sbr.rel (%p394) target = $region64
      $region63: #{tpu_custom_call.1} parent=5 // pred_region
        // Predicated region
        $region65: #{tpu_custom_call.1} parent=63 // pred_check
          %p397 = pneg %p56
        $region66: #{tpu_custom_call.1} parent=63 // pred_check_branch
          %399 = sbr.rel (%p397) target = $region68
        $region67: #{tpu_custom_call.1} parent=63 // pred_region
          %p400 = scmp.lt.s32.totalorder %s29, 1
          %s401 = scalar_select %p400, %s29, 1
          %p402 = scmp.lt.s32.totalorder %s30, 0
          %s403 = scalar_select %p402, %s30, 0
          %s404 = smul.addr %s403, 3
          %s405 = smul.addr %s401, 3
          %s406 = sadd.s32 %s404, %s405
          %s407 = smul.addr %s406, 8
          %s408 = scalar_lea.vmem %s0, %s407
        $region68: #{tpu_custom_call.1} parent=63 // pred_fallthru
          _
      $region64: #{tpu_custom_call.1} parent=5 // pred_fallthru
        _
      %p409 = scmp.le.s32.totalorder 1, %s22
      %p410 = scmp.lt.s32.totalorder %s22, 3
      %p411 = pnand %p409, %p410
      %p412 = pneg %p411
      // Predicated region
      $region69: #{tpu_custom_call.1} parent=5 // pred_check
        _
      $region70: #{tpu_custom_call.1} parent=5 // pred_check_branch
        %414 = sbr.rel (%p411) target = $region72
      $region71: #{tpu_custom_call.1} parent=5 // pred_region
        %s415 = ssub.s32 %s22, 1
        %p416 = scmp.lt.s32.totalorder %s31, 1
        %s417 = scalar_select %p416, %s31, 1
        %p418 = scmp.lt.s32.totalorder %s32, 0
        %s419 = scalar_select %p418, %s32, 0
        %s420 = smul.addr %s419, 3
        %s421 = smul.addr %s417, 3
        %s422 = sadd.s32 %s420, %s421
        %s423 = smul.addr %s422, 8
        %s424 = scalar_lea.vmem %s0, %s423
        %p425 = pneg %p62
        %p426 = pneg %p59
        %p427 = pneg %p83
        %p428 = pneg %p80
        %p429 = pneg %p104
        %p430 = pneg %p101
        %p431 = pneg %p125
        %p432 = pneg %p122
        %p433 = pneg %p146
        %p434 = pneg %p143
        %p435 = pneg %p167
        %p436 = pneg %p164
        %p437 = pneg %p188
        %p438 = pneg %p185
        %p439 = pneg %p209
        %p440 = pneg %p206
        %p441 = pneg %p230
        %p442 = pneg %p227
        %p443 = pneg %p251
        %p444 = pneg %p248
        %p445 = pneg %p272
        %p446 = pneg %p269
        %p447 = pneg %p293
        %p448 = pneg %p290
        %p449 = pneg %p314
        %p450 = pneg %p311
        %p451 = pneg %p342
        %p452 = pneg %p339
        %s453 = sand.u32 %s329, 1
        %s454 = scalar_lea.sflag [#allocation5], %s453
        %s455 = sand.u32 %s329, 1
        %s456 = smul.addr %s455, 12
        %s457 = scalar_lea.vmem [#allocation4], %s456
        %p458 = scmp.lt.s32.totalorder %s31, 1
        %s459 = scalar_select %p458, %s31, 1
        %p460 = scmp.lt.s32.totalorder %s32, 0
        %s461 = scalar_select %p460, %s32, 0
        %s462 = smul.addr %s461, 3
        %s463 = smul.addr %s459, 3
        %s464 = sadd.s32 %s462, %s463
        %s465 = smul.addr %s464, 8
        %s466 = scalar_lea.vmem %s0, %s465
        %s467 = smul.u32 3, %s32
        %v469 = vld [vmem:[%s466] sm:$0xff]
        %v470 = vld [vmem:[%s466 + $0x8] sm:$0xff]
        %v471 = vld [vmem:[%s466 + $0x10] sm:$0xff]
        %v472 = vmul.f32 %v469, 0.20417996
        %v473 = vmul.f32 %v470, 0.20417996
        %v474 = vmul.f32 %v471, 0.20417996
        %v475 = vmul.f32 %v469, 0.07511362
        %v476 = vmul.f32 %v470, 0.07511362
        %v477 = vmul.f32 %v471, 0.07511362
        %481 = vrot.lane.b32.xlu0 %v475, 19
        %v482 = vpop.permute.xlu0 %481
        %483 = vrot.lane.b32.xlu0 %v476, 19
        %v484 = vpop.permute.xlu0 %483
        %485 = vrot.lane.b32.xlu0 %v477, 19
        %v486 = vpop.permute.xlu0 %485
        %vm487 = vcmask 154624
        %v488 = vsel %vm487, %v482, %v484
        %v489 = vsel %vm487, %v484, %v486
        %v493 = vadd.f32 %v472, %v482
        %v494 = vadd.f32 %v473, %v488
        %v495 = vadd.f32 %v474, %v489
        %v496 = vmul.f32 %v469, 0.12384141
        %v497 = vmul.f32 %v470, 0.12384141
        %v498 = vmul.f32 %v471, 0.12384141
        %502 = vrot.lane.b32.xlu0 %v496, 18
        %v503 = vpop.permute.xlu0 %502
        %504 = vrot.lane.b32.xlu0 %v497, 18
        %v505 = vpop.permute.xlu0 %504
        %506 = vrot.lane.b32.xlu0 %v498, 18
        %v507 = vpop.permute.xlu0 %506
        %vm508 = vcmask 146432
        %v509 = vsel %vm508, %v503, %v505
        %v510 = vsel %vm508, %v505, %v507
        %v514 = vadd.f32 %v493, %v503
        %v515 = vadd.f32 %v494, %v509
        %v516 = vadd.f32 %v495, %v510
        %517 = vrot.lane.b32.xlu0 %v475, 17
        %v518 = vpop.permute.xlu0 %517
        %519 = vrot.lane.b32.xlu0 %v476, 17
        %v520 = vpop.permute.xlu0 %519
        %521 = vrot.lane.b32.xlu0 %v477, 17
        %v522 = vpop.permute.xlu0 %521
        %vm523 = vcmask 138240
        %v524 = vsel %vm523, %v518, %v520
        %v525 = vsel %vm523, %v520, %v522
        %v529 = vadd.f32 %v514, %v518
        %v530 = vadd.f32 %v515, %v524
        %v531 = vadd.f32 %v516, %v525
        %532 = vrot.lane.b32.xlu0 %v496, 1
        %v533 = vpop.permute.xlu0 %532
        %534 = vrot.lane.b32.xlu0 %v497, 1
        %v535 = vpop.permute.xlu0 %534
        %536 = vrot.lane.b32.xlu0 %v498, 1
        %v537 = vpop.permute.xlu0 %536
        %vm538 = vcmask 7168
        %v539 = vsel %vm538, %v533, %v535
        %v540 = vsel %vm538, %v535, %v537
        %v544 = vadd.f32 %v529, %v533
        %v545 = vadd.f32 %v530, %v539
        %v546 = vadd.f32 %v531, %v540
        %547 = vrot.lane.b32.xlu0 %v496, 127
        %v548 = vpop.permute.xlu0 %547
        %549 = vrot.lane.b32.xlu0 %v497, 127
        %v550 = vpop.permute.xlu0 %549
        %551 = vrot.lane.b32.xlu0 %v498, 127
        %v552 = vpop.permute.xlu0 %551
        %vm553 = vcmask 1039360
        %v554 = vsel %vm553, %v548, %v550
        %v555 = vsel %vm553, %v550, %v552
        %v559 = vadd.f32 %v544, %v554
        %v560 = vadd.f32 %v545, %v555
        %v561 = vadd.f32 %v546, %v552
        %562 = vrot.lane.b32.xlu0 %v475, 111
        %v563 = vpop.permute.xlu0 %562
        %564 = vrot.lane.b32.xlu0 %v476, 111
        %v565 = vpop.permute.xlu0 %564
        %566 = vrot.lane.b32.xlu0 %v477, 111
        %v567 = vpop.permute.xlu0 %566
        %vm568 = vcmask 908288
        %v569 = vsel %vm568, %v563, %v565
        %v570 = vsel %vm568, %v565, %v567
        %v574 = vadd.f32 %v559, %v569
        %v575 = vadd.f32 %v560, %v570
        %v576 = vadd.f32 %v561, %v567
        %577 = vrot.lane.b32.xlu0 %v496, 110
        %v578 = vpop.permute.xlu0 %577
        %579 = vrot.lane.b32.xlu0 %v497, 110
        %v580 = vpop.permute.xlu0 %579
        %581 = vrot.lane.b32.xlu0 %v498, 110
        %v582 = vpop.permute.xlu0 %581
        %vm583 = vcmask 900096
        %v584 = vsel %vm583, %v578, %v580
        %v585 = vsel %vm583, %v580, %v582
        %v589 = vadd.f32 %v574, %v584
        %v590 = vadd.f32 %v575, %v585
        %v591 = vadd.f32 %v576, %v582
        %592 = vrot.lane.b32.xlu0 %v475, 109
        %v593 = vpop.permute.xlu0 %592
        %594 = vrot.lane.b32.xlu0 %v476, 109
        %v595 = vpop.permute.xlu0 %594
        %596 = vrot.lane.b32.xlu0 %v477, 109
        %v597 = vpop.permute.xlu0 %596
        %vm598 = vcmask 891904
        %v599 = vsel %vm598, %v593, %v595
        %v600 = vsel %vm598, %v595, %v597
        %v604 = vadd.f32 %v589, %v599
        %v605 = vadd.f32 %v590, %v600
        %v606 = vadd.f32 %v591, %v597
        %v607 = vld [vmem:[%s2] sm:$0xff]
        %609 = vset.pattern.permute.xlu0 0
        %610 = vperm.xlu0 %609, %v607
        %v611 = vpop.permute.xlu0 %610
        %v613 = vmul.f32 %v604, %v611
        %v614 = vmul.f32 %v605, %v611
        %v615 = vmul.f32 %v606, %v611
        %v616 = vld [vmem:[%s3] sm:$0xff]
        %618 = vset.pattern.permute.xlu0 0
        %619 = vperm.xlu0 %618, %v616
        %v620 = vpop.permute.xlu0 %619
        %v622 = vadd.f32 %v613, %v620
        %v623 = vadd.f32 %v614, %v620
        %v624 = vadd.f32 %v615, %v620
        %v625 = vmax.f32 %v622, 0.0
        %v626 = vmax.f32 %v623, 0.0
        %v627 = vmax.f32 %v624, 0.0
        %v628 = vadd.f32 %v469, %v625
        %v629 = vadd.f32 %v470, %v626
        %v630 = vadd.f32 %v471, %v627
        %v631 = vld [vmem:[%s4] sm:$0xff]
        %v632 = vld [vmem:[%s4 + $0x8] sm:$0xff]
        %v633 = vld [vmem:[%s4 + $0x10] sm:$0xff]
        %v634 = vld [vmem:[%s4 + $0x18] sm:$0xff]
        %v635 = vld [vmem:[%s4 + $0x20] sm:$0xff]
        %v636 = vld [vmem:[%s4 + $0x28] sm:$0xff]
        %v637 = vld [vmem:[%s4 + $0x30] sm:$0xff]
        %v638 = vld [vmem:[%s4 + $0x38] sm:$0xff]
        %642 = vrot.lane.b32.xlu0 %v628, 109
        %v643 = vpop.permute.xlu0 %642
        %644 = vrot.lane.b32.xlu0 %v629, 109
        %v645 = vpop.permute.xlu0 %644
        %646 = vrot.lane.b32.xlu0 %v630, 109
        %v647 = vpop.permute.xlu0 %646
        %v648 = vsel %vm598, %v643, %v645
        %v649 = vsel %vm598, %v645, %v647
        %vm653 = vcmask 64512
        %v655 = vsel %vm653, %v631, 0
        %v658 = vsel %vm653, %v632, 0
        %v661 = vsel %vm653, %v633, 0
        %v664 = vsel %vm653, %v634, 0
        %v667 = vsel %vm653, %v635, 0
        %v670 = vsel %vm653, %v636, 0
        %v673 = vsel %vm653, %v637, 0
        %v676 = vsel %vm653, %v638, 0
        %v678 = vand.u32 %v649, 4294901760
        %679 = vmatprep.subr.mxu0 %v678
        %v680 = vand.u32 %v648, 4294901760
        %681 = vmatpush1.msra.mxu0 %v680
        %682 = vmatprep.subr.mxu0 0.0
        %683 = vmatpush1.msra.mxu0 0.0
        %684 = vmatprep.subr.mxu0 0.0
        %685 = vmatpush1.msra.mxu0 0.0
        %686 = vmatprep.subr.mxu0 0.0
        %687 = vmatpush1.msra.mxu0 0.0
        %688 = vmatprep.subr.mxu0 0.0
        %689 = vmatpush1.msra.mxu0 0.0
        %690 = vmatprep.subr.mxu0 0.0
        %691 = vmatpush1.msra.mxu0 0.0
        %692 = vmatprep.subr.mxu0 0.0
        %693 = vmatpush1.msra.mxu0 0.0
        %694 = vmatprep.subr.mxu0 0.0
        %695 = vmatpush1.msra.mxu0 0.0
        %696 = vmatprep.subr.mxu0 0.0
        %697 = vmatpush1.msra.mxu0 0.0
        %698 = vmatprep.subr.mxu0 0.0
        %699 = vmatpush1.msra.mxu0 0.0
        %700 = vmatprep.subr.mxu0 0.0
        %701 = vmatpush1.msra.mxu0 0.0
        %702 = vmatprep.subr.mxu0 0.0
        %703 = vmatpush1.msra.mxu0 0.0
        %704 = vmatprep.subr.mxu0 0.0
        %705 = vmatpush1.msra.mxu0 0.0
        %706 = vmatprep.subr.mxu0 0.0
        %707 = vmatpush1.msra.mxu0 0.0
        %708 = vmatprep.subr.mxu0 0.0
        %709 = vmatpush1.msra.mxu0 0.0
        %710 = vmatprep.subr.mxu0 0.0
        %711 = vmatpush1.msra.mxu0 0.0
        %712 = vmatprep.subr.mxu0 0.0
        %713 = vmatpush1.msra.mxu0 0.0
        %714 = vmatprep.subr.mxu0 0.0
        %715 = vmatpush1.msra.mxu0 0.0
        %716 = vmatprep.subr.mxu0 0.0
        %717 = vmatpush1.msra.mxu0 0.0
        %718 = vmatprep.subr.mxu0 0.0
        %719 = vmatpush1.msra.mxu0 0.0
        %720 = vmatprep.subr.mxu0 0.0
        %721 = vmatpush1.msra.mxu0 0.0
        %722 = vmatprep.subr.mxu0 0.0
        %723 = vmatpush1.msra.mxu0 0.0
        %724 = vmatprep.subr.mxu0 0.0
        %725 = vmatpush1.msra.mxu0 0.0
        %726 = vmatprep.subr.mxu0 0.0
        %727 = vmatpush1.msra.mxu0 0.0
        %728 = vmatprep.subr.mxu0 0.0
        %729 = vmatpush1.msra.mxu0 0.0
        %730 = vmatprep.subr.mxu0 0.0
        %731 = vmatpush1.msra.mxu0 0.0
        %732 = vmatprep.subr.mxu0 0.0
        %733 = vmatpush1.msra.mxu0 0.0
        %734 = vmatprep.subr.mxu0 0.0
        %735 = vmatpush1.msra.mxu0 0.0
        %736 = vmatprep.subr.mxu0 0.0
        %737 = vmatpush1.msra.mxu0 0.0
        %738 = vmatprep.subr.mxu0 0.0
        %739 = vmatpush1.msra.mxu0 0.0
        %740 = vmatprep.subr.mxu0 0.0
        %741 = vmatpush1.msra.mxu0 0.0
        %742 = vmatprep.subr.mxu0 0.0
        %743 = vmatpush1.msra.mxu0 0.0
        %744 = vmatprep.mubr.f32.mxu0 0.0
        %v745 = vand.u32 %v655, 4294901760
        %v746 = vsub.f32 %v655, %v745
        %v747 = vand.u32 %v746, 4294901760
        %v748 = vsub.f32 %v746, %v747
        %v749 = vand.u32 %v748, 4294901760
        %750 = vmatmul.mubr.f32.gmra.mrb[0].mxu0 %v749
        %v751 = vpop.f32.mrb[0].mxu0
        %v752 = vadd.f32 0.0, %v751
        %v753 = vpop.f32.mrb[0].mxu0
        %v754 = vadd.f32 0.0, %v753
        %755 = vmatprep.mubr.f32.mxu0 0.0
        %v756 = vand.u32 %v658, 4294901760
        %v757 = vsub.f32 %v658, %v756
        %v758 = vand.u32 %v757, 4294901760
        %v759 = vsub.f32 %v757, %v758
        %v760 = vand.u32 %v759, 4294901760
        %761 = vmatmul.mubr.f32.gmra.mrb[0].mxu0 %v760
        %v762 = vpop.f32.mrb[0].mxu0
        %v763 = vadd.f32 0.0, %v762
        %v764 = vpop.f32.mrb[0].mxu0
        %v765 = vadd.f32 0.0, %v764
        %766 = vmatprep.mubr.f32.mxu0 0.0
        %v767 = vand.u32 %v661, 4294901760
        %v768 = vsub.f32 %v661, %v767
        %v769 = vand.u32 %v768, 4294901760
        %v770 = vsub.f32 %v768, %v769
        %v771 = vand.u32 %v770, 4294901760
        %772 = vmatmul.mubr.f32.gmra.mrb[0].mxu0 %v771
        %v773 = vpop.f32.mrb[0].mxu0
        %v774 = vadd.f32 0.0, %v773
        %v775 = vpop.f32.mrb[0].mxu0
        %v776 = vadd.f32 0.0, %v775
        %777 = vmatprep.mubr.f32.mxu0 0.0
        %v778 = vand.u32 %v664, 4294901760
        %v779 = vsub.f32 %v664, %v778
        %v780 = vand.u32 %v779, 4294901760
        %v781 = vsub.f32 %v779, %v780
        %v782 = vand.u32 %v781, 4294901760
        %783 = vmatmul.mubr.f32.gmra.mrb[0].mxu0 %v782
        %v784 = vpop.f32.mrb[0].mxu0
        %v785 = vadd.f32 0.0, %v784
        %v786 = vpop.f32.mrb[0].mxu0
        %v787 = vadd.f32 0.0, %v786
        %788 = vmatprep.mubr.f32.mxu0 0.0
        %v789 = vand.u32 %v667, 4294901760
        %v790 = vsub.f32 %v667, %v789
        %v791 = vand.u32 %v790, 4294901760
        %v792 = vsub.f32 %v790, %v791
        %v793 = vand.u32 %v792, 4294901760
        %794 = vmatmul.mubr.f32.gmra.mrb[0].mxu0 %v793
        %v795 = vpop.f32.mrb[0].mxu0
        %v796 = vadd.f32 0.0, %v795
        %v797 = vpop.f32.mrb[0].mxu0
        %v798 = vadd.f32 0.0, %v797
        %799 = vmatprep.mubr.f32.mxu0 0.0
        %v800 = vand.u32 %v670, 4294901760
        %v801 = vsub.f32 %v670, %v800
        %v802 = vand.u32 %v801, 4294901760
        %v803 = vsub.f32 %v801, %v802
        %v804 = vand.u32 %v803, 4294901760
        %805 = vmatmul.mubr.f32.gmra.mrb[0].mxu0 %v804
        %v806 = vpop.f32.mrb[0].mxu0
        %v807 = vadd.f32 0.0, %v806
        %v808 = vpop.f32.mrb[0].mxu0
        %v809 = vadd.f32 0.0, %v808
        %810 = vmatprep.mubr.f32.mxu0 0.0
        %v811 = vand.u32 %v673, 4294901760
        %v812 = vsub.f32 %v673, %v811
        %v813 = vand.u32 %v812, 4294901760
        %v814 = vsub.f32 %v812, %v813
        %v815 = vand.u32 %v814, 4294901760
        %816 = vmatmul.mubr.f32.gmra.mrb[0].mxu0 %v815
        %v817 = vpop.f32.mrb[0].mxu0
        %v818 = vadd.f32 0.0, %v817
        %v819 = vpop.f32.mrb[0].mxu0
        %v820 = vadd.f32 0.0, %v819
        %821 = vmatprep.mubr.f32.mxu0 0.0
        %v822 = vand.u32 %v676, 4294901760
        %v823 = vsub.f32 %v676, %v822
        %v824 = vand.u32 %v823, 4294901760
        %v825 = vsub.f32 %v823, %v824
        %v826 = vand.u32 %v825, 4294901760
        %827 = vmatmul.mubr.f32.gmra.mrb[0].mxu0 %v826
        %v828 = vpop.f32.mrb[0].mxu0
        %v829 = vadd.f32 0.0, %v828
        %v830 = vpop.f32.mrb[0].mxu0
        %v831 = vadd.f32 0.0, %v830
        %832 = vdwg.mxu0
        %v833 = vand.u32 %v649, 4294901760
        %v834 = vsub.f32 %v649, %v833
        %v835 = vand.u32 %v834, 4294901760
        %v836 = vsub.f32 %v834, %v835
        %v837 = vand.u32 %v836, 4294901760
        %838 = vmatprep.subr.mxu0 %v837
        %v839 = vand.u32 %v648, 4294901760
        %v840 = vsub.f32 %v648, %v839
        %v841 = vand.u32 %v840, 4294901760
        %v842 = vsub.f32 %v840, %v841
        %v843 = vand.u32 %v842, 4294901760
        %844 = vmatpush1.msra.mxu0 %v843
        %845 = vmatprep.subr.mxu0 0.0
        %846 = vmatpush1.msra.mxu0 0.0
        %847 = vmatprep.subr.mxu0 0.0
        %848 = vmatpush1.msra.mxu0 0.0
        %849 = vmatprep.subr.mxu0 0.0
        %850 = vmatpush1.msra.mxu0 0.0
        %851 = vmatprep.subr.mxu0 0.0
        %852 = vmatpush1.msra.mxu0 0.0
        %853 = vmatprep.subr.mxu0 0.0
        %854 = vmatpush1.msra.mxu0 0.0
        %855 = vmatprep.subr.mxu0 0.0
        %856 = vmatpush1.msra.mxu0 0.0
        %857 = vmatprep.subr.mxu0 0.0
        %858 = vmatpush1.msra.mxu0 0.0
        %859 = vmatprep.subr.mxu0 0.0
        %860 = vmatpush1.msra.mxu0 0.0
        %861 = vmatprep.subr.mxu0 0.0
        %862 = vmatpush1.msra.mxu0 0.0
        %863 = vmatprep.subr.mxu0 0.0
        %864 = vmatpush1.msra.mxu0 0.0
        %865 = vmatprep.subr.mxu0 0.0
        %866 = vmatpush1.msra.mxu0 0.0
        %867 = vmatprep.subr.mxu0 0.0
        %868 = vmatpush1.msra.mxu0 0.0
        %869 = vmatprep.subr.mxu0 0.0
        %870 = vmatpush1.msra.mxu0 0.0
        %871 = vmatprep.subr.mxu0 0.0
        %872 = vmatpush1.msra.mxu0 0.0
        %873 = vmatprep.subr.mxu0 0.0
        %874 = vmatpush1.msra.mxu0 0.0
        %875 = vmatprep.subr.mxu0 0.0
        %876 = vmatpush1.msra.mxu0 0.0
        %877 = vmatprep.subr.mxu0 0.0
        %878 = vmatpush1.msra.mxu0 0.0
        %879 = vmatprep.subr.mxu0 0.0
        %880 = vmatpush1.msra.mxu0 0.0
        %881 = vmatprep.subr.mxu0 0.0
        %882 = vmatpush1.msra.mxu0 0.0
        %883 = vmatprep.subr.mxu0 0.0
        %884 = vmatpush1.msra.mxu0 0.0
        %885 = vmatprep.subr.mxu0 0.0
        %886 = vmatpush1.msra.mxu0 0.0
        %887 = vmatprep.subr.mxu0 0.0
        %888 = vmatpush1.msra.mxu0 0.0
        %889 = vmatprep.subr.mxu0 0.0
        %890 = vmatpush1.msra.mxu0 0.0
        %891 = vmatprep.subr.mxu0 0.0
        %892 = vmatpush1.msra.mxu0 0.0
        %893 = vmatprep.subr.mxu0 0.0
        %894 = vmatpush1.msra.mxu0 0.0
        %895 = vmatprep.subr.mxu0 0.0
        %896 = vmatpush1.msra.mxu0 0.0
        %897 = vmatprep.subr.mxu0 0.0
        %898 = vmatpush1.msra.mxu0 0.0
        %899 = vmatprep.subr.mxu0 0.0
        %900 = vmatpush1.msra.mxu0 0.0
        %901 = vmatprep.subr.mxu0 0.0
        %902 = vmatpush1.msra.mxu0 0.0
        %903 = vmatprep.subr.mxu0 0.0
        %904 = vmatpush1.msra.mxu0 0.0
        %905 = vmatprep.subr.mxu0 0.0
        %906 = vmatpush1.msra.mxu0 0.0
        %907 = vmatprep.mubr.f32.mxu0 0.0
        %v908 = vand.u32 %v655, 4294901760
        %909 = vmatmul.mubr.f32.gmra.mrb[0].mxu0 %v908
        %v910 = vpop.f32.mrb[0].mxu0
        %v911 = vadd.f32 %v752, %v910
        %v912 = vpop.f32.mrb[0].mxu0
        %v913 = vadd.f32 %v754, %v912
        %914 = vmatprep.mubr.f32.mxu0 0.0
        %v915 = vand.u32 %v658, 4294901760
        %916 = vmatmul.mubr.f32.gmra.mrb[0].mxu0 %v915
        %v917 = vpop.f32.mrb[0].mxu0
        %v918 = vadd.f32 %v763, %v917
        %v919 = vpop.f32.mrb[0].mxu0
        %v920 = vadd.f32 %v765, %v919
        %921 = vmatprep.mubr.f32.mxu0 0.0
        %v922 = vand.u32 %v661, 4294901760
        %923 = vmatmul.mubr.f32.gmra.mrb[0].mxu0 %v922
        %v924 = vpop.f32.mrb[0].mxu0
        %v925 = vadd.f32 %v774, %v924
        %v926 = vpop.f32.mrb[0].mxu0
        %v927 = vadd.f32 %v776, %v926
        %928 = vmatprep.mubr.f32.mxu0 0.0
        %v929 = vand.u32 %v664, 4294901760
        %930 = vmatmul.mubr.f32.gmra.mrb[0].mxu0 %v929
        %v931 = vpop.f32.mrb[0].mxu0
        %v932 = vadd.f32 %v785, %v931
        %v933 = vpop.f32.mrb[0].mxu0
        %v934 = vadd.f32 %v787, %v933
        %935 = vmatprep.mubr.f32.mxu0 0.0
        %v936 = vand.u32 %v667, 4294901760
        %937 = vmatmul.mubr.f32.gmra.mrb[0].mxu0 %v936
        %v938 = vpop.f32.mrb[0].mxu0
        %v939 = vadd.f32 %v796, %v938
        %v940 = vpop.f32.mrb[0].mxu0
        %v941 = vadd.f32 %v798, %v940
        %942 = vmatprep.mubr.f32.mxu0 0.0
        %v943 = vand.u32 %v670, 4294901760
        %944 = vmatmul.mubr.f32.gmra.mrb[0].mxu0 %v943
        %v945 = vpop.f32.mrb[0].mxu0
        %v946 = vadd.f32 %v807, %v945
        %v947 = vpop.f32.mrb[0].mxu0
        %v948 = vadd.f32 %v809, %v947
        %949 = vmatprep.mubr.f32.mxu0 0.0
        %v950 = vand.u32 %v673, 4294901760
        %951 = vmatmul.mubr.f32.gmra.mrb[0].mxu0 %v950
        %v952 = vpop.f32.mrb[0].mxu0
        %v953 = vadd.f32 %v818, %v952
        %v954 = vpop.f32.mrb[0].mxu0
        %v955 = vadd.f32 %v820, %v954
        %956 = vmatprep.mubr.f32.mxu0 0.0
        %v957 = vand.u32 %v676, 4294901760
        %958 = vmatmul.mubr.f32.gmra.mrb[0].mxu0 %v957
        %v959 = vpop.f32.mrb[0].mxu0
        %v960 = vadd.f32 %v829, %v959
        %v961 = vpop.f32.mrb[0].mxu0
        %v962 = vadd.f32 %v831, %v961
        %963 = vdwg.mxu0
        %v964 = vand.u32 %v649, 4294901760
        %v965 = vsub.f32 %v649, %v964
        %966 = vmatprep.subr.mxu0 %v965
        %v967 = vand.u32 %v648, 4294901760
        %v968 = vsub.f32 %v648, %v967
        %969 = vmatpush1.msra.mxu0 %v968
        %970 = vmatprep.subr.mxu0 0.0
        %971 = vmatpush1.msra.mxu0 0.0
        %972 = vmatprep.subr.mxu0 0.0
        %973 = vmatpush1.msra.mxu0 0.0
        %974 = vmatprep.subr.mxu0 0.0
        %975 = vmatpush1.msra.mxu0 0.0
        %976 = vmatprep.subr.mxu0 0.0
        %977 = vmatpush1.msra.mxu0 0.0
        %978 = vmatprep.subr.mxu0 0.0
        %979 = vmatpush1.msra.mxu0 0.0
        %980 = vmatprep.subr.mxu0 0.0
        %981 = vmatpush1.msra.mxu0 0.0
        %982 = vmatprep.subr.mxu0 0.0
        %983 = vmatpush1.msra.mxu0 0.0
        %984 = vmatprep.subr.mxu0 0.0
        %985 = vmatpush1.msra.mxu0 0.0
        %986 = vmatprep.subr.mxu0 0.0
        %987 = vmatpush1.msra.mxu0 0.0
        %988 = vmatprep.subr.mxu0 0.0
        %989 = vmatpush1.msra.mxu0 0.0
        %990 = vmatprep.subr.mxu0 0.0
        %991 = vmatpush1.msra.mxu0 0.0
        %992 = vmatprep.subr.mxu0 0.0
        %993 = vmatpush1.msra.mxu0 0.0
        %994 = vmatprep.subr.mxu0 0.0
        %995 = vmatpush1.msra.mxu0 0.0
        %996 = vmatprep.subr.mxu0 0.0
        %997 = vmatpush1.msra.mxu0 0.0
        %998 = vmatprep.subr.mxu0 0.0
        %999 = vmatpush1.msra.mxu0 0.0
        %1000 = vmatprep.subr.mxu0 0.0
        %1001 = vmatpush1.msra.mxu0 0.0
        %1002 = vmatprep.subr.mxu0 0.0
        %1003 = vmatpush1.msra.mxu0 0.0
        %1004 = vmatprep.subr.mxu0 0.0
        %1005 = vmatpush1.msra.mxu0 0.0
        %1006 = vmatprep.subr.mxu0 0.0
        %1007 = vmatpush1.msra.mxu0 0.0
        %1008 = vmatprep.subr.mxu0 0.0
        %1009 = vmatpush1.msra.mxu0 0.0
        %1010 = vmatprep.subr.mxu0 0.0
        %1011 = vmatpush1.msra.mxu0 0.0
        %1012 = vmatprep.subr.mxu0 0.0
        %1013 = vmatpush1.msra.mxu0 0.0
        %1014 = vmatprep.subr.mxu0 0.0
        %1015 = vmatpush1.msra.mxu0 0.0
        %1016 = vmatprep.subr.mxu0 0.0
        %1017 = vmatpush1.msra.mxu0 0.0
        %1018 = vmatprep.subr.mxu0 0.0
        %1019 = vmatpush1.msra.mxu0 0.0
        %1020 = vmatprep.subr.mxu0 0.0
        %1021 = vmatpush1.msra.mxu0 0.0
        %1022 = vmatprep.subr.mxu0 0.0
        %1023 = vmatpush1.msra.mxu0 0.0
        %1024 = vmatprep.subr.mxu0 0.0
        %1025 = vmatpush1.msra.mxu0 0.0
        %1026 = vmatprep.subr.mxu0 0.0
        %1027 = vmatpush1.msra.mxu0 0.0
        %1028 = vmatprep.subr.mxu0 0.0
        %1029 = vmatpush1.msra.mxu0 0.0
        %1030 = vmatprep.subr.mxu0 0.0
        %1031 = vmatpush1.msra.mxu0 0.0
        %1032 = vmatprep.mubr.f32.mxu0 0.0
        %v1033 = vand.u32 %v655, 4294901760
        %v1034 = vsub.f32 %v655, %v1033
        %1035 = vmatmul.mubr.f32.gmra.mrb[0].mxu0 %v1034
        %v1036 = vpop.f32.mrb[0].mxu0
        %v1037 = vadd.f32 %v911, %v1036
        %v1038 = vpop.f32.mrb[0].mxu0
        %v1039 = vadd.f32 %v913, %v1038
        %1040 = vmatprep.mubr.f32.mxu0 0.0
        %v1041 = vand.u32 %v658, 4294901760
        %v1042 = vsub.f32 %v658, %v1041
        %1043 = vmatmul.mubr.f32.gmra.mrb[0].mxu0 %v1042
        %v1044 = vpop.f32.mrb[0].mxu0
        %v1045 = vadd.f32 %v918, %v1044
        %v1046 = vpop.f32.mrb[0].mxu0
        %v1047 = vadd.f32 %v920, %v1046
        %1048 = vmatprep.mubr.f32.mxu0 0.0
        %v1049 = vand.u32 %v661, 4294901760
        %v1050 = vsub.f32 %v661, %v1049
        %1051 = vmatmul.mubr.f32.gmra.mrb[0].mxu0 %v1050
        %v1052 = vpop.f32.mrb[0].mxu0
        %v1053 = vadd.f32 %v925, %v1052
        %v1054 = vpop.f32.mrb[0].mxu0
        %v1055 = vadd.f32 %v927, %v1054
        %1056 = vmatprep.mubr.f32.mxu0 0.0
        %v1057 = vand.u32 %v664, 4294901760
        %v1058 = vsub.f32 %v664, %v1057
        %1059 = vmatmul.mubr.f32.gmra.mrb[0].mxu0 %v1058
        %v1060 = vpop.f32.mrb[0].mxu0
        %v1061 = vadd.f32 %v932, %v1060
        %v1062 = vpop.f32.mrb[0].mxu0
        %v1063 = vadd.f32 %v934, %v1062
        %1064 = vmatprep.mubr.f32.mxu0 0.0
        %v1065 = vand.u32 %v667, 4294901760
        %v1066 = vsub.f32 %v667, %v1065
        %1067 = vmatmul.mubr.f32.gmra.mrb[0].mxu0 %v1066
        %v1068 = vpop.f32.mrb[0].mxu0
        %v1069 = vadd.f32 %v939, %v1068
        %v1070 = vpop.f32.mrb[0].mxu0
        %v1071 = vadd.f32 %v941, %v1070
        %1072 = vmatprep.mubr.f32.mxu0 0.0
        %v1073 = vand.u32 %v670, 4294901760
        %v1074 = vsub.f32 %v670, %v1073
        %1075 = vmatmul.mubr.f32.gmra.mrb[0].mxu0 %v1074
        %v1076 = vpop.f32.mrb[0].mxu0
        %v1077 = vadd.f32 %v946, %v1076
        %v1078 = vpop.f32.mrb[0].mxu0
        %v1079 = vadd.f32 %v948, %v1078
        %1080 = vmatprep.mubr.f32.mxu0 0.0
        %v1081 = vand.u32 %v673, 4294901760
        %v1082 = vsub.f32 %v673, %v1081
        %1083 = vmatmul.mubr.f32.gmra.mrb[0].mxu0 %v1082
        %v1084 = vpop.f32.mrb[0].mxu0
        %v1085 = vadd.f32 %v953, %v1084
        %v1086 = vpop.f32.mrb[0].mxu0
        %v1087 = vadd.f32 %v955, %v1086
        %1088 = vmatprep.mubr.f32.mxu0 0.0
        %v1089 = vand.u32 %v676, 4294901760
        %v1090 = vsub.f32 %v676, %v1089
        %1091 = vmatmul.mubr.f32.gmra.mrb[0].mxu0 %v1090
        %v1092 = vpop.f32.mrb[0].mxu0
        %v1093 = vadd.f32 %v960, %v1092
        %v1094 = vpop.f32.mrb[0].mxu0
        %v1095 = vadd.f32 %v962, %v1094
        %1096 = vdwg.mxu0
        %v1097 = vand.u32 %v649, 4294901760
        %1098 = vmatprep.subr.mxu0 %v1097
        %v1099 = vand.u32 %v648, 4294901760
        %1100 = vmatpush1.msra.mxu0 %v1099
        %1101 = vmatprep.subr.mxu0 0.0
        %1102 = vmatpush1.msra.mxu0 0.0
        %1103 = vmatprep.subr.mxu0 0.0
        %1104 = vmatpush1.msra.mxu0 0.0
        %1105 = vmatprep.subr.mxu0 0.0
        %1106 = vmatpush1.msra.mxu0 0.0
        %1107 = vmatprep.subr.mxu0 0.0
        %1108 = vmatpush1.msra.mxu0 0.0
        %1109 = vmatprep.subr.mxu0 0.0
        %1110 = vmatpush1.msra.mxu0 0.0
        %1111 = vmatprep.subr.mxu0 0.0
        %1112 = vmatpush1.msra.mxu0 0.0
        %1113 = vmatprep.subr.mxu0 0.0
        %1114 = vmatpush1.msra.mxu0 0.0
        %1115 = vmatprep.subr.mxu0 0.0
        %1116 = vmatpush1.msra.mxu0 0.0
        %1117 = vmatprep.subr.mxu0 0.0
        %1118 = vmatpush1.msra.mxu0 0.0
        %1119 = vmatprep.subr.mxu0 0.0
        %1120 = vmatpush1.msra.mxu0 0.0
        %1121 = vmatprep.subr.mxu0 0.0
        %1122 = vmatpush1.msra.mxu0 0.0
        %1123 = vmatprep.subr.mxu0 0.0
        %1124 = vmatpush1.msra.mxu0 0.0
        %1125 = vmatprep.subr.mxu0 0.0
        %1126 = vmatpush1.msra.mxu0 0.0
        %1127 = vmatprep.subr.mxu0 0.0
        %1128 = vmatpush1.msra.mxu0 0.0
        %1129 = vmatprep.subr.mxu0 0.0
        %1130 = vmatpush1.msra.mxu0 0.0
        %1131 = vmatprep.subr.mxu0 0.0
        %1132 = vmatpush1.msra.mxu0 0.0
        %1133 = vmatprep.subr.mxu0 0.0
        %1134 = vmatpush1.msra.mxu0 0.0
        %1135 = vmatprep.subr.mxu0 0.0
        %1136 = vmatpush1.msra.mxu0 0.0
        %1137 = vmatprep.subr.mxu0 0.0
        %1138 = vmatpush1.msra.mxu0 0.0
        %1139 = vmatprep.subr.mxu0 0.0
        %1140 = vmatpush1.msra.mxu0 0.0
        %1141 = vmatprep.subr.mxu0 0.0
        %1142 = vmatpush1.msra.mxu0 0.0
        %1143 = vmatprep.subr.mxu0 0.0
        %1144 = vmatpush1.msra.mxu0 0.0
        %1145 = vmatprep.subr.mxu0 0.0
        %1146 = vmatpush1.msra.mxu0 0.0
        %1147 = vmatprep.subr.mxu0 0.0
        %1148 = vmatpush1.msra.mxu0 0.0
        %1149 = vmatprep.subr.mxu0 0.0
        %1150 = vmatpush1.msra.mxu0 0.0
        %1151 = vmatprep.subr.mxu0 0.0
        %1152 = vmatpush1.msra.mxu0 0.0
        %1153 = vmatprep.subr.mxu0 0.0
        %1154 = vmatpush1.msra.mxu0 0.0
        %1155 = vmatprep.subr.mxu0 0.0
        %1156 = vmatpush1.msra.mxu0 0.0
        %1157 = vmatprep.subr.mxu0 0.0
        %1158 = vmatpush1.msra.mxu0 0.0
        %1159 = vmatprep.subr.mxu0 0.0
        %1160 = vmatpush1.msra.mxu0 0.0
        %1161 = vmatprep.subr.mxu0 0.0
        %1162 = vmatpush1.msra.mxu0 0.0
        %1163 = vmatprep.mubr.f32.mxu0 0.0
        %v1164 = vand.u32 %v655, 4294901760
        %v1165 = vsub.f32 %v655, %v1164
        %v1166 = vand.u32 %v1165, 4294901760
        %1167 = vmatmul.mubr.f32.gmra.mrb[0].mxu0 %v1166
        %v1168 = vpop.f32.mrb[0].mxu0
        %v1169 = vadd.f32 %v1037, %v1168
        %v1170 = vpop.f32.mrb[0].mxu0
        %v1171 = vadd.f32 %v1039, %v1170
        %1172 = vmatprep.mubr.f32.mxu0 0.0
        %v1173 = vand.u32 %v658, 4294901760
        %v1174 = vsub.f32 %v658, %v1173
        %v1175 = vand.u32 %v1174, 4294901760
        %1176 = vmatmul.mubr.f32.gmra.mrb[0].mxu0 %v1175
        %v1177 = vpop.f32.mrb[0].mxu0
        %v1178 = vadd.f32 %v1045, %v1177
        %v1179 = vpop.f32.mrb[0].mxu0
        %v1180 = vadd.f32 %v1047, %v1179
        %1181 = vmatprep.mubr.f32.mxu0 0.0
        %v1182 = vand.u32 %v661, 4294901760
        %v1183 = vsub.f32 %v661, %v1182
        %v1184 = vand.u32 %v1183, 4294901760
        %1185 = vmatmul.mubr.f32.gmra.mrb[0].mxu0 %v1184
        %v1186 = vpop.f32.mrb[0].mxu0
        %v1187 = vadd.f32 %v1053, %v1186
        %v1188 = vpop.f32.mrb[0].mxu0
        %v1189 = vadd.f32 %v1055, %v1188
        %1190 = vmatprep.mubr.f32.mxu0 0.0
        %v1191 = vand.u32 %v664, 4294901760
        %v1192 = vsub.f32 %v664, %v1191
        %v1193 = vand.u32 %v1192, 4294901760
        %1194 = vmatmul.mubr.f32.gmra.mrb[0].mxu0 %v1193
        %v1195 = vpop.f32.mrb[0].mxu0
        %v1196 = vadd.f32 %v1061, %v1195
        %v1197 = vpop.f32.mrb[0].mxu0
        %v1198 = vadd.f32 %v1063, %v1197
        %1199 = vmatprep.mubr.f32.mxu0 0.0
        %v1200 = vand.u32 %v667, 4294901760
        %v1201 = vsub.f32 %v667, %v1200
        %v1202 = vand.u32 %v1201, 4294901760
        %1203 = vmatmul.mubr.f32.gmra.mrb[0].mxu0 %v1202
        %v1204 = vpop.f32.mrb[0].mxu0
        %v1205 = vadd.f32 %v1069, %v1204
        %v1206 = vpop.f32.mrb[0].mxu0
        %v1207 = vadd.f32 %v1071, %v1206
        %1208 = vmatprep.mubr.f32.mxu0 0.0
        %v1209 = vand.u32 %v670, 4294901760
        %v1210 = vsub.f32 %v670, %v1209
        %v1211 = vand.u32 %v1210, 4294901760
        %1212 = vmatmul.mubr.f32.gmra.mrb[0].mxu0 %v1211
        %v1213 = vpop.f32.mrb[0].mxu0
        %v1214 = vadd.f32 %v1077, %v1213
        %v1215 = vpop.f32.mrb[0].mxu0
        %v1216 = vadd.f32 %v1079, %v1215
        %1217 = vmatprep.mubr.f32.mxu0 0.0
        %v1218 = vand.u32 %v673, 4294901760
        %v1219 = vsub.f32 %v673, %v1218
        %v1220 = vand.u32 %v1219, 4294901760
        %1221 = vmatmul.mubr.f32.gmra.mrb[0].mxu0 %v1220
        %v1222 = vpop.f32.mrb[0].mxu0
        %v1223 = vadd.f32 %v1085, %v1222
        %v1224 = vpop.f32.mrb[0].mxu0
        %v1225 = vadd.f32 %v1087, %v1224
        %1226 = vmatprep.mubr.f32.mxu0 0.0
        %v1227 = vand.u32 %v676, 4294901760
        %v1228 = vsub.f32 %v676, %v1227
        %v1229 = vand.u32 %v1228, 4294901760
        %1230 = vmatmul.mubr.f32.gmra.mrb[0].mxu0 %v1229
        %v1231 = vpop.f32.mrb[0].mxu0
        %v1232 = vadd.f32 %v1093, %v1231
        %v1233 = vpop.f32.mrb[0].mxu0
        %v1234 = vadd.f32 %v1095, %v1233
        %1235 = vdwg.mxu0
        %v1236 = vand.u32 %v649, 4294901760
        %v1237 = vsub.f32 %v649, %v1236
        %v1238 = vand.u32 %v1237, 4294901760
        %1239 = vmatprep.subr.mxu0 %v1238
        %v1240 = vand.u32 %v648, 4294901760
        %v1241 = vsub.f32 %v648, %v1240
        %v1242 = vand.u32 %v1241, 4294901760
        %1243 = vmatpush1.msra.mxu0 %v1242
        %1244 = vmatprep.subr.mxu0 0.0
        %1245 = vmatpush1.msra.mxu0 0.0
        %1246 = vmatprep.subr.mxu0 0.0
        %1247 = vmatpush1.msra.mxu0 0.0
        %1248 = vmatprep.subr.mxu0 0.0
        %1249 = vmatpush1.msra.mxu0 0.0
        %1250 = vmatprep.subr.mxu0 0.0
        %1251 = vmatpush1.msra.mxu0 0.0
        %1252 = vmatprep.subr.mxu0 0.0
        %1253 = vmatpush1.msra.mxu0 0.0
        %1254 = vmatprep.subr.mxu0 0.0
        %1255 = vmatpush1.msra.mxu0 0.0
        %1256 = vmatprep.subr.mxu0 0.0
        %1257 = vmatpush1.msra.mxu0 0.0
        %1258 = vmatprep.subr.mxu0 0.0
        %1259 = vmatpush1.msra.mxu0 0.0
        %1260 = vmatprep.subr.mxu0 0.0
        %1261 = vmatpush1.msra.mxu0 0.0
        %1262 = vmatprep.subr.mxu0 0.0
        %1263 = vmatpush1.msra.mxu0 0.0
        %1264 = vmatprep.subr.mxu0 0.0
        %1265 = vmatpush1.msra.mxu0 0.0
        %1266 = vmatprep.subr.mxu0 0.0
        %1267 = vmatpush1.msra.mxu0 0.0
        %1268 = vmatprep.subr.mxu0 0.0
        %1269 = vmatpush1.msra.mxu0 0.0
        %1270 = vmatprep.subr.mxu0 0.0
        %1271 = vmatpush1.msra.mxu0 0.0
        %1272 = vmatprep.subr.mxu0 0.0
        %1273 = vmatpush1.msra.mxu0 0.0
        %1274 = vmatprep.subr.mxu0 0.0
        %1275 = vmatpush1.msra.mxu0 0.0
        %1276 = vmatprep.subr.mxu0 0.0
        %1277 = vmatpush1.msra.mxu0 0.0
        %1278 = vmatprep.subr.mxu0 0.0
        %1279 = vmatpush1.msra.mxu0 0.0
        %1280 = vmatprep.subr.mxu0 0.0
        %1281 = vmatpush1.msra.mxu0 0.0
        %1282 = vmatprep.subr.mxu0 0.0
        %1283 = vmatpush1.msra.mxu0 0.0
        %1284 = vmatprep.subr.mxu0 0.0
        %1285 = vmatpush1.msra.mxu0 0.0
        %1286 = vmatprep.subr.mxu0 0.0
        %1287 = vmatpush1.msra.mxu0 0.0
        %1288 = vmatprep.subr.mxu0 0.0
        %1289 = vmatpush1.msra.mxu0 0.0
        %1290 = vmatprep.subr.mxu0 0.0
        %1291 = vmatpush1.msra.mxu0 0.0
        %1292 = vmatprep.subr.mxu0 0.0
        %1293 = vmatpush1.msra.mxu0 0.0
        %1294 = vmatprep.subr.mxu0 0.0
        %1295 = vmatpush1.msra.mxu0 0.0
        %1296 = vmatprep.subr.mxu0 0.0
        %1297 = vmatpush1.msra.mxu0 0.0
        %1298 = vmatprep.subr.mxu0 0.0
        %1299 = vmatpush1.msra.mxu0 0.0
        %1300 = vmatprep.subr.mxu0 0.0
        %1301 = vmatpush1.msra.mxu0 0.0
        %1302 = vmatprep.subr.mxu0 0.0
        %1303 = vmatpush1.msra.mxu0 0.0
        %1304 = vmatprep.subr.mxu0 0.0
        %1305 = vmatpush1.msra.mxu0 0.0
        %1306 = vmatprep.mubr.f32.mxu0 0.0
        %v1307 = vand.u32 %v655, 4294901760
        %1308 = vmatmul.mubr.f32.gmra.mrb[0].mxu0 %v1307
        %v1309 = vpop.f32.mrb[0].mxu0
        %v1310 = vadd.f32 %v1169, %v1309
        %v1311 = vpop.f32.mrb[0].mxu0
        %v1312 = vadd.f32 %v1171, %v1311
        %1313 = vmatprep.mubr.f32.mxu0 0.0
        %v1314 = vand.u32 %v658, 4294901760
        %1315 = vmatmul.mubr.f32.gmra.mrb[0].mxu0 %v1314
        %v1316 = vpop.f32.mrb[0].mxu0
        %v1317 = vadd.f32 %v1178, %v1316
        %v1318 = vpop.f32.mrb[0].mxu0
        %v1319 = vadd.f32 %v1180, %v1318
        %1320 = vmatprep.mubr.f32.mxu0 0.0
        %v1321 = vand.u32 %v661, 4294901760
        %1322 = vmatmul.mubr.f32.gmra.mrb[0].mxu0 %v1321
        %v1323 = vpop.f32.mrb[0].mxu0
        %v1324 = vadd.f32 %v1187, %v1323
        %v1325 = vpop.f32.mrb[0].mxu0
        %v1326 = vadd.f32 %v1189, %v1325
        %1327 = vmatprep.mubr.f32.mxu0 0.0
        %v1328 = vand.u32 %v664, 4294901760
        %1329 = vmatmul.mubr.f32.gmra.mrb[0].mxu0 %v1328
        %v1330 = vpop.f32.mrb[0].mxu0
        %v1331 = vadd.f32 %v1196, %v1330
        %v1332 = vpop.f32.mrb[0].mxu0
        %v1333 = vadd.f32 %v1198, %v1332
        %1334 = vmatprep.mubr.f32.mxu0 0.0
        %v1335 = vand.u32 %v667, 4294901760
        %1336 = vmatmul.mubr.f32.gmra.mrb[0].mxu0 %v1335
        %v1337 = vpop.f32.mrb[0].mxu0
        %v1338 = vadd.f32 %v1205, %v1337
        %v1339 = vpop.f32.mrb[0].mxu0
        %v1340 = vadd.f32 %v1207, %v1339
        %1341 = vmatprep.mubr.f32.mxu0 0.0
        %v1342 = vand.u32 %v670, 4294901760
        %1343 = vmatmul.mubr.f32.gmra.mrb[0].mxu0 %v1342
        %v1344 = vpop.f32.mrb[0].mxu0
        %v1345 = vadd.f32 %v1214, %v1344
        %v1346 = vpop.f32.mrb[0].mxu0
        %v1347 = vadd.f32 %v1216, %v1346
        %1348 = vmatprep.mubr.f32.mxu0 0.0
        %v1349 = vand.u32 %v673, 4294901760
        %1350 = vmatmul.mubr.f32.gmra.mrb[0].mxu0 %v1349
        %v1351 = vpop.f32.mrb[0].mxu0
        %v1352 = vadd.f32 %v1223, %v1351
        %v1353 = vpop.f32.mrb[0].mxu0
        %v1354 = vadd.f32 %v1225, %v1353
        %1355 = vmatprep.mubr.f32.mxu0 0.0
        %v1356 = vand.u32 %v676, 4294901760
        %1357 = vmatmul.mubr.f32.gmra.mrb[0].mxu0 %v1356
        %v1358 = vpop.f32.mrb[0].mxu0
        %v1359 = vadd.f32 %v1232, %v1358
        %v1360 = vpop.f32.mrb[0].mxu0
        %v1361 = vadd.f32 %v1234, %v1360
        %1362 = vdwg.mxu0
        %v1363 = vand.u32 %v649, 4294901760
        %1364 = vmatprep.subr.mxu0 %v1363
        %v1365 = vand.u32 %v648, 4294901760
        %1366 = vmatpush1.msra.mxu0 %v1365
        %1367 = vmatprep.subr.mxu0 0.0
        %1368 = vmatpush1.msra.mxu0 0.0
        %1369 = vmatprep.subr.mxu0 0.0
        %1370 = vmatpush1.msra.mxu0 0.0
        %1371 = vmatprep.subr.mxu0 0.0
        %1372 = vmatpush1.msra.mxu0 0.0
        %1373 = vmatprep.subr.mxu0 0.0
        %1374 = vmatpush1.msra.mxu0 0.0
        %1375 = vmatprep.subr.mxu0 0.0
        %1376 = vmatpush1.msra.mxu0 0.0
        %1377 = vmatprep.subr.mxu0 0.0
        %1378 = vmatpush1.msra.mxu0 0.0
        %1379 = vmatprep.subr.mxu0 0.0
        %1380 = vmatpush1.msra.mxu0 0.0
        %1381 = vmatprep.subr.mxu0 0.0
        %1382 = vmatpush1.msra.mxu0 0.0
        %1383 = vmatprep.subr.mxu0 0.0
        %1384 = vmatpush1.msra.mxu0 0.0
        %1385 = vmatprep.subr.mxu0 0.0
        %1386 = vmatpush1.msra.mxu0 0.0
        %1387 = vmatprep.subr.mxu0 0.0
        %1388 = vmatpush1.msra.mxu0 0.0
        %1389 = vmatprep.subr.mxu0 0.0
        %1390 = vmatpush1.msra.mxu0 0.0
        %1391 = vmatprep.subr.mxu0 0.0
        %1392 = vmatpush1.msra.mxu0 0.0
        %1393 = vmatprep.subr.mxu0 0.0
        %1394 = vmatpush1.msra.mxu0 0.0
        %1395 = vmatprep.subr.mxu0 0.0
        %1396 = vmatpush1.msra.mxu0 0.0
        %1397 = vmatprep.subr.mxu0 0.0
        %1398 = vmatpush1.msra.mxu0 0.0
        %1399 = vmatprep.subr.mxu0 0.0
        %1400 = vmatpush1.msra.mxu0 0.0
        %1401 = vmatprep.subr.mxu0 0.0
        %1402 = vmatpush1.msra.mxu0 0.0
        %1403 = vmatprep.subr.mxu0 0.0
        %1404 = vmatpush1.msra.mxu0 0.0
        %1405 = vmatprep.subr.mxu0 0.0
        %1406 = vmatpush1.msra.mxu0 0.0
        %1407 = vmatprep.subr.mxu0 0.0
        %1408 = vmatpush1.msra.mxu0 0.0
        %1409 = vmatprep.subr.mxu0 0.0
        %1410 = vmatpush1.msra.mxu0 0.0
        %1411 = vmatprep.subr.mxu0 0.0
        %1412 = vmatpush1.msra.mxu0 0.0
        %1413 = vmatprep.subr.mxu0 0.0
        %1414 = vmatpush1.msra.mxu0 0.0
        %1415 = vmatprep.subr.mxu0 0.0
        %1416 = vmatpush1.msra.mxu0 0.0
        %1417 = vmatprep.subr.mxu0 0.0
        %1418 = vmatpush1.msra.mxu0 0.0
        %1419 = vmatprep.subr.mxu0 0.0
        %1420 = vmatpush1.msra.mxu0 0.0
        %1421 = vmatprep.subr.mxu0 0.0
        %1422 = vmatpush1.msra.mxu0 0.0
        %1423 = vmatprep.subr.mxu0 0.0
        %1424 = vmatpush1.msra.mxu0 0.0
        %1425 = vmatprep.subr.mxu0 0.0
        %1426 = vmatpush1.msra.mxu0 0.0
        %1427 = vmatprep.subr.mxu0 0.0
        %1428 = vmatpush1.msra.mxu0 0.0
        %1429 = vmatprep.mubr.f32.mxu0 0.0
        %v1430 = vand.u32 %v655, 4294901760
        %1431 = vmatmul.mubr.f32.gmra.mrb[0].mxu0 %v1430
        %v1432 = vpop.f32.mrb[0].mxu0
        %v1433 = vadd.f32 %v1310, %v1432
        %v1434 = vpop.f32.mrb[0].mxu0
        %v1435 = vadd.f32 %v1312, %v1434
        %1436 = vmatprep.mubr.f32.mxu0 0.0
        %v1437 = vand.u32 %v658, 4294901760
        %1438 = vmatmul.mubr.f32.gmra.mrb[0].mxu0 %v1437
        %v1439 = vpop.f32.mrb[0].mxu0
        %v1440 = vadd.f32 %v1317, %v1439
        %v1441 = vpop.f32.mrb[0].mxu0
        %v1442 = vadd.f32 %v1319, %v1441
        %1443 = vmatprep.mubr.f32.mxu0 0.0
        %v1444 = vand.u32 %v661, 4294901760
        %1445 = vmatmul.mubr.f32.gmra.mrb[0].mxu0 %v1444
        %v1446 = vpop.f32.mrb[0].mxu0
        %v1447 = vadd.f32 %v1324, %v1446
        %v1448 = vpop.f32.mrb[0].mxu0
        %v1449 = vadd.f32 %v1326, %v1448
        %1450 = vmatprep.mubr.f32.mxu0 0.0
        %v1451 = vand.u32 %v664, 4294901760
        %1452 = vmatmul.mubr.f32.gmra.mrb[0].mxu0 %v1451
        %v1453 = vpop.f32.mrb[0].mxu0
        %v1454 = vadd.f32 %v1331, %v1453
        %v1455 = vpop.f32.mrb[0].mxu0
        %v1456 = vadd.f32 %v1333, %v1455
        %1457 = vmatprep.mubr.f32.mxu0 0.0
        %v1458 = vand.u32 %v667, 4294901760
        %1459 = vmatmul.mubr.f32.gmra.mrb[0].mxu0 %v1458
        %v1460 = vpop.f32.mrb[0].mxu0
        %v1461 = vadd.f32 %v1338, %v1460
        %v1462 = vpop.f32.mrb[0].mxu0
        %v1463 = vadd.f32 %v1340, %v1462
        %1464 = vmatprep.mubr.f32.mxu0 0.0
        %v1465 = vand.u32 %v670, 4294901760
        %1466 = vmatmul.mubr.f32.gmra.mrb[0].mxu0 %v1465
        %v1467 = vpop.f32.mrb[0].mxu0
        %v1468 = vadd.f32 %v1345, %v1467
        %v1469 = vpop.f32.mrb[0].mxu0
        %v1470 = vadd.f32 %v1347, %v1469
        %1471 = vmatprep.mubr.f32.mxu0 0.0
        %v1472 = vand.u32 %v673, 4294901760
        %1473 = vmatmul.mubr.f32.gmra.mrb[0].mxu0 %v1472
        %v1474 = vpop.f32.mrb[0].mxu0
        %v1475 = vadd.f32 %v1352, %v1474
        %v1476 = vpop.f32.mrb[0].mxu0
        %v1477 = vadd.f32 %v1354, %v1476
        %1478 = vmatprep.mubr.f32.mxu0 0.0
        %v1479 = vand.u32 %v676, 4294901760
        %1480 = vmatmul.mubr.f32.gmra.mrb[0].mxu0 %v1479
        %v1481 = vpop.f32.mrb[0].mxu0
        %v1482 = vadd.f32 %v1359, %v1481
        %v1483 = vpop.f32.mrb[0].mxu0
        %v1484 = vadd.f32 %v1361, %v1483
        %1485 = vdwg.mxu0
        %1486 = vmatprep.subr.mxu0 0.0
        %v1487 = vand.u32 %v647, 4294901760
        %1488 = vmatpush1.msra.mxu0 %v1487
        %1489 = vmatprep.subr.mxu0 0.0
        %1490 = vmatpush1.msra.mxu0 0.0
        %1491 = vmatprep.subr.mxu0 0.0
        %1492 = vmatpush1.msra.mxu0 0.0
        %1493 = vmatprep.subr.mxu0 0.0
        %1494 = vmatpush1.msra.mxu0 0.0
        %1495 = vmatprep.subr.mxu0 0.0
        %1496 = vmatpush1.msra.mxu0 0.0
        %1497 = vmatprep.subr.mxu0 0.0
        %1498 = vmatpush1.msra.mxu0 0.0
        %1499 = vmatprep.subr.mxu0 0.0
        %1500 = vmatpush1.msra.mxu0 0.0
        %1501 = vmatprep.subr.mxu0 0.0
        %1502 = vmatpush1.msra.mxu0 0.0
        %1503 = vmatprep.subr.mxu0 0.0
        %1504 = vmatpush1.msra.mxu0 0.0
        %1505 = vmatprep.subr.mxu0 0.0
        %1506 = vmatpush1.msra.mxu0 0.0
        %1507 = vmatprep.subr.mxu0 0.0
        %1508 = vmatpush1.msra.mxu0 0.0
        %1509 = vmatprep.subr.mxu0 0.0
        %1510 = vmatpush1.msra.mxu0 0.0
        %1511 = vmatprep.subr.mxu0 0.0
        %1512 = vmatpush1.msra.mxu0 0.0
        %1513 = vmatprep.subr.mxu0 0.0
        %1514 = vmatpush1.msra.mxu0 0.0
        %1515 = vmatprep.subr.mxu0 0.0
        %1516 = vmatpush1.msra.mxu0 0.0
        %1517 = vmatprep.subr.mxu0 0.0
        %1518 = vmatpush1.msra.mxu0 0.0
        %1519 = vmatprep.subr.mxu0 0.0
        %1520 = vmatpush1.msra.mxu0 0.0
        %1521 = vmatprep.subr.mxu0 0.0
        %1522 = vmatpush1.msra.mxu0 0.0
        %1523 = vmatprep.subr.mxu0 0.0
        %1524 = vmatpush1.msra.mxu0 0.0
        %1525 = vmatprep.subr.mxu0 0.0
        %1526 = vmatpush1.msra.mxu0 0.0
        %1527 = vmatprep.subr.mxu0 0.0
        %1528 = vmatpush1.msra.mxu0 0.0
        %1529 = vmatprep.subr.mxu0 0.0
        %1530 = vmatpush1.msra.mxu0 0.0
        %1531 = vmatprep.subr.mxu0 0.0
        %1532 = vmatpush1.msra.mxu0 0.0
        %1533 = vmatprep.subr.mxu0 0.0
        %1534 = vmatpush1.msra.mxu0 0.0
        %1535 = vmatprep.subr.mxu0 0.0
        %1536 = vmatpush1.msra.mxu0 0.0
        %1537 = vmatprep.subr.mxu0 0.0
        %1538 = vmatpush1.msra.mxu0 0.0
        %1539 = vmatprep.subr.mxu0 0.0
        %1540 = vmatpush1.msra.mxu0 0.0
        %1541 = vmatprep.subr.mxu0 0.0
        %1542 = vmatpush1.msra.mxu0 0.0
        %1543 = vmatprep.subr.mxu0 0.0
        %1544 = vmatpush1.msra.mxu0 0.0
        %1545 = vmatprep.subr.mxu0 0.0
        %1546 = vmatpush1.msra.mxu0 0.0
        %1547 = vmatprep.subr.mxu0 0.0
        %1548 = vmatpush1.msra.mxu0 0.0
        %1549 = vmatprep.subr.mxu0 0.0
        %1550 = vmatpush1.msra.mxu0 0.0
        %1551 = vmatprep.mubr.f32.mxu0 0.0
        %v1552 = vand.u32 %v655, 4294901760
        %v1553 = vsub.f32 %v655, %v1552
        %v1554 = vand.u32 %v1553, 4294901760
        %v1555 = vsub.f32 %v1553, %v1554
        %v1556 = vand.u32 %v1555, 4294901760
        %1557 = vmatmul.mubr.f32.gmra.mrb[0].mxu0 %v1556
        %v1558 = vpop.f32.mrb[0].mxu0
        %v1559 = vadd.f32 0.0, %v1558
        %v1560 = vpop.f32.mrb[0].mxu0
        %1561 = vmatprep.mubr.f32.mxu0 0.0
        %v1562 = vand.u32 %v658, 4294901760
        %v1563 = vsub.f32 %v658, %v1562
        %v1564 = vand.u32 %v1563, 4294901760
        %v1565 = vsub.f32 %v1563, %v1564
        %v1566 = vand.u32 %v1565, 4294901760
        %1567 = vmatmul.mubr.f32.gmra.mrb[0].mxu0 %v1566
        %v1568 = vpop.f32.mrb[0].mxu0
        %v1569 = vadd.f32 0.0, %v1568
        %v1570 = vpop.f32.mrb[0].mxu0
        %1571 = vmatprep.mubr.f32.mxu0 0.0
        %v1572 = vand.u32 %v661, 4294901760
        %v1573 = vsub.f32 %v661, %v1572
        %v1574 = vand.u32 %v1573, 4294901760
        %v1575 = vsub.f32 %v1573, %v1574
        %v1576 = vand.u32 %v1575, 4294901760
        %1577 = vmatmul.mubr.f32.gmra.mrb[0].mxu0 %v1576
        %v1578 = vpop.f32.mrb[0].mxu0
        %v1579 = vadd.f32 0.0, %v1578
        %v1580 = vpop.f32.mrb[0].mxu0
        %1581 = vmatprep.mubr.f32.mxu0 0.0
        %v1582 = vand.u32 %v664, 4294901760
        %v1583 = vsub.f32 %v664, %v1582
        %v1584 = vand.u32 %v1583, 4294901760
        %v1585 = vsub.f32 %v1583, %v1584
        %v1586 = vand.u32 %v1585, 4294901760
        %1587 = vmatmul.mubr.f32.gmra.mrb[0].mxu0 %v1586
        %v1588 = vpop.f32.mrb[0].mxu0
        %v1589 = vadd.f32 0.0, %v1588
        %v1590 = vpop.f32.mrb[0].mxu0
        %1591 = vmatprep.mubr.f32.mxu0 0.0
        %v1592 = vand.u32 %v667, 4294901760
        %v1593 = vsub.f32 %v667, %v1592
        %v1594 = vand.u32 %v1593, 4294901760
        %v1595 = vsub.f32 %v1593, %v1594
        %v1596 = vand.u32 %v1595, 4294901760
        %1597 = vmatmul.mubr.f32.gmra.mrb[0].mxu0 %v1596
        %v1598 = vpop.f32.mrb[0].mxu0
        %v1599 = vadd.f32 0.0, %v1598
        %v1600 = vpop.f32.mrb[0].mxu0
        %1601 = vmatprep.mubr.f32.mxu0 0.0
        %v1602 = vand.u32 %v670, 4294901760
        %v1603 = vsub.f32 %v670, %v1602
        %v1604 = vand.u32 %v1603, 4294901760
        %v1605 = vsub.f32 %v1603, %v1604
        %v1606 = vand.u32 %v1605, 4294901760
        %1607 = vmatmul.mubr.f32.gmra.mrb[0].mxu0 %v1606
        %v1608 = vpop.f32.mrb[0].mxu0
        %v1609 = vadd.f32 0.0, %v1608
        %v1610 = vpop.f32.mrb[0].mxu0
        %1611 = vmatprep.mubr.f32.mxu0 0.0
        %v1612 = vand.u32 %v673, 4294901760
        %v1613 = vsub.f32 %v673, %v1612
        %v1614 = vand.u32 %v1613, 4294901760
        %v1615 = vsub.f32 %v1613, %v1614
        %v1616 = vand.u32 %v1615, 4294901760
        %1617 = vmatmul.mubr.f32.gmra.mrb[0].mxu0 %v1616
        %v1618 = vpop.f32.mrb[0].mxu0
        %v1619 = vadd.f32 0.0, %v1618
        %v1620 = vpop.f32.mrb[0].mxu0
        %1621 = vmatprep.mubr.f32.mxu0 0.0
        %v1622 = vand.u32 %v676, 4294901760
        %v1623 = vsub.f32 %v676, %v1622
        %v1624 = vand.u32 %v1623, 4294901760
        %v1625 = vsub.f32 %v1623, %v1624
        %v1626 = vand.u32 %v1625, 4294901760
        %1627 = vmatmul.mubr.f32.gmra.mrb[0].mxu0 %v1626
        %v1628 = vpop.f32.mrb[0].mxu0
        %v1629 = vadd.f32 0.0, %v1628
        %v1630 = vpop.f32.mrb[0].mxu0
        %1631 = vdwg.mxu0
        %1632 = vmatprep.subr.mxu0 0.0
        %v1633 = vand.u32 %v647, 4294901760
        %v1634 = vsub.f32 %v647, %v1633
        %v1635 = vand.u32 %v1634, 4294901760
        %v1636 = vsub.f32 %v1634, %v1635
        %v1637 = vand.u32 %v1636, 4294901760
        %1638 = vmatpush1.msra.mxu0 %v1637
        %1639 = vmatprep.subr.mxu0 0.0
        %1640 = vmatpush1.msra.mxu0 0.0
        %1641 = vmatprep.subr.mxu0 0.0
        %1642 = vmatpush1.msra.mxu0 0.0
        %1643 = vmatprep.subr.mxu0 0.0
        %1644 = vmatpush1.msra.mxu0 0.0
        %1645 = vmatprep.subr.mxu0 0.0
        %1646 = vmatpush1.msra.mxu0 0.0
        %1647 = vmatprep.subr.mxu0 0.0
        %1648 = vmatpush1.msra.mxu0 0.0
        %1649 = vmatprep.subr.mxu0 0.0
        %1650 = vmatpush1.msra.mxu0 0.0
        %1651 = vmatprep.subr.mxu0 0.0
        %1652 = vmatpush1.msra.mxu0 0.0
        %1653 = vmatprep.subr.mxu0 0.0
        %1654 = vmatpush1.msra.mxu0 0.0
        %1655 = vmatprep.subr.mxu0 0.0
        %1656 = vmatpush1.msra.mxu0 0.0
        %1657 = vmatprep.subr.mxu0 0.0
        %1658 = vmatpush1.msra.mxu0 0.0
        %1659 = vmatprep.subr.mxu0 0.0
        %1660 = vmatpush1.msra.mxu0 0.0
        %1661 = vmatprep.subr.mxu0 0.0
        %1662 = vmatpush1.msra.mxu0 0.0
        %1663 = vmatprep.subr.mxu0 0.0
        %1664 = vmatpush1.msra.mxu0 0.0
        %1665 = vmatprep.subr.mxu0 0.0
        %1666 = vmatpush1.msra.mxu0 0.0
        %1667 = vmatprep.subr.mxu0 0.0
        %1668 = vmatpush1.msra.mxu0 0.0
        %1669 = vmatprep.subr.mxu0 0.0
        %1670 = vmatpush1.msra.mxu0 0.0
        %1671 = vmatprep.subr.mxu0 0.0
        %1672 = vmatpush1.msra.mxu0 0.0
        %1673 = vmatprep.subr.mxu0 0.0
        %1674 = vmatpush1.msra.mxu0 0.0
        %1675 = vmatprep.subr.mxu0 0.0
        %1676 = vmatpush1.msra.mxu0 0.0
        %1677 = vmatprep.subr.mxu0 0.0
        %1678 = vmatpush1.msra.mxu0 0.0
        %1679 = vmatprep.subr.mxu0 0.0
        %1680 = vmatpush1.msra.mxu0 0.0
        %1681 = vmatprep.subr.mxu0 0.0
        %1682 = vmatpush1.msra.mxu0 0.0
        %1683 = vmatprep.subr.mxu0 0.0
        %1684 = vmatpush1.msra.mxu0 0.0
        %1685 = vmatprep.subr.mxu0 0.0
        %1686 = vmatpush1.msra.mxu0 0.0
        %1687 = vmatprep.subr.mxu0 0.0
        %1688 = vmatpush1.msra.mxu0 0.0
        %1689 = vmatprep.subr.mxu0 0.0
        %1690 = vmatpush1.msra.mxu0 0.0
        %1691 = vmatprep.subr.mxu0 0.0
        %1692 = vmatpush1.msra.mxu0 0.0
        %1693 = vmatprep.subr.mxu0 0.0
        %1694 = vmatpush1.msra.mxu0 0.0
        %1695 = vmatprep.subr.mxu0 0.0
        %1696 = vmatpush1.msra.mxu0 0.0
        %1697 = vmatprep.subr.mxu0 0.0
        %1698 = vmatpush1.msra.mxu0 0.0
        %1699 = vmatprep.subr.mxu0 0.0
        %1700 = vmatpush1.msra.mxu0 0.0
        %1701 = vmatprep.mubr.f32.mxu0 0.0
        %v1702 = vand.u32 %v655, 4294901760
        %1703 = vmatmul.mubr.f32.gmra.mrb[0].mxu0 %v1702
        %v1704 = vpop.f32.mrb[0].mxu0
        %v1705 = vadd.f32 %v1559, %v1704
        %v1706 = vpop.f32.mrb[0].mxu0
        %1707 = vmatprep.mubr.f32.mxu0 0.0
        %v1708 = vand.u32 %v658, 4294901760
        %1709 = vmatmul.mubr.f32.gmra.mrb[0].mxu0 %v1708
        %v1710 = vpop.f32.mrb[0].mxu0
        %v1711 = vadd.f32 %v1569, %v1710
        %v1712 = vpop.f32.mrb[0].mxu0
        %1713 = vmatprep.mubr.f32.mxu0 0.0
        %v1714 = vand.u32 %v661, 4294901760
        %1715 = vmatmul.mubr.f32.gmra.mrb[0].mxu0 %v1714
        %v1716 = vpop.f32.mrb[0].mxu0
        %v1717 = vadd.f32 %v1579, %v1716
        %v1718 = vpop.f32.mrb[0].mxu0
        %1719 = vmatprep.mubr.f32.mxu0 0.0
        %v1720 = vand.u32 %v664, 4294901760
        %1721 = vmatmul.mubr.f32.gmra.mrb[0].mxu0 %v1720
        %v1722 = vpop.f32.mrb[0].mxu0
        %v1723 = vadd.f32 %v1589, %v1722
        %v1724 = vpop.f32.mrb[0].mxu0
        %1725 = vmatprep.mubr.f32.mxu0 0.0
        %v1726 = vand.u32 %v667, 4294901760
        %1727 = vmatmul.mubr.f32.gmra.mrb[0].mxu0 %v1726
        %v1728 = vpop.f32.mrb[0].mxu0
        %v1729 = vadd.f32 %v1599, %v1728
        %v1730 = vpop.f32.mrb[0].mxu0
        %1731 = vmatprep.mubr.f32.mxu0 0.0
        %v1732 = vand.u32 %v670, 4294901760
        %1733 = vmatmul.mubr.f32.gmra.mrb[0].mxu0 %v1732
        %v1734 = vpop.f32.mrb[0].mxu0
        %v1735 = vadd.f32 %v1609, %v1734
        %v1736 = vpop.f32.mrb[0].mxu0
        %1737 = vmatprep.mubr.f32.mxu0 0.0
        %v1738 = vand.u32 %v673, 4294901760
        %1739 = vmatmul.mubr.f32.gmra.mrb[0].mxu0 %v1738
        %v1740 = vpop.f32.mrb[0].mxu0
        %v1741 = vadd.f32 %v1619, %v1740
        %v1742 = vpop.f32.mrb[0].mxu0
        %1743 = vmatprep.mubr.f32.mxu0 0.0
        %v1744 = vand.u32 %v676, 4294901760
        %1745 = vmatmul.mubr.f32.gmra.mrb[0].mxu0 %v1744
        %v1746 = vpop.f32.mrb[0].mxu0
        %v1747 = vadd.f32 %v1629, %v1746
        %v1748 = vpop.f32.mrb[0].mxu0
        %1749 = vdwg.mxu0
        %1750 = vmatprep.subr.mxu0 0.0
        %v1751 = vand.u32 %v647, 4294901760
        %v1752 = vsub.f32 %v647, %v1751
        %1753 = vmatpush1.msra.mxu0 %v1752
        %1754 = vmatprep.subr.mxu0 0.0
        %1755 = vmatpush1.msra.mxu0 0.0
        %1756 = vmatprep.subr.mxu0 0.0
        %1757 = vmatpush1.msra.mxu0 0.0
        %1758 = vmatprep.subr.mxu0 0.0
        %1759 = vmatpush1.msra.mxu0 0.0
        %1760 = vmatprep.subr.mxu0 0.0
        %1761 = vmatpush1.msra.mxu0 0.0
        %1762 = vmatprep.subr.mxu0 0.0
        %1763 = vmatpush1.msra.mxu0 0.0
        %1764 = vmatprep.subr.mxu0 0.0
        %1765 = vmatpush1.msra.mxu0 0.0
        %1766 = vmatprep.subr.mxu0 0.0
        %1767 = vmatpush1.msra.mxu0 0.0
        %1768 = vmatprep.subr.mxu0 0.0
        %1769 = vmatpush1.msra.mxu0 0.0
        %1770 = vmatprep.subr.mxu0 0.0
        %1771 = vmatpush1.msra.mxu0 0.0
        %1772 = vmatprep.subr.mxu0 0.0
        %1773 = vmatpush1.msra.mxu0 0.0
        %1774 = vmatprep.subr.mxu0 0.0
        %1775 = vmatpush1.msra.mxu0 0.0
        %1776 = vmatprep.subr.mxu0 0.0
        %1777 = vmatpush1.msra.mxu0 0.0
        %1778 = vmatprep.subr.mxu0 0.0
        %1779 = vmatpush1.msra.mxu0 0.0
        %1780 = vmatprep.subr.mxu0 0.0
        %1781 = vmatpush1.msra.mxu0 0.0
        %1782 = vmatprep.subr.mxu0 0.0
        %1783 = vmatpush1.msra.mxu0 0.0
        %1784 = vmatprep.subr.mxu0 0.0
        %1785 = vmatpush1.msra.mxu0 0.0
        %1786 = vmatprep.subr.mxu0 0.0
        %1787 = vmatpush1.msra.mxu0 0.0
        %1788 = vmatprep.subr.mxu0 0.0
        %1789 = vmatpush1.msra.mxu0 0.0
        %1790 = vmatprep.subr.mxu0 0.0
        %1791 = vmatpush1.msra.mxu0 0.0
        %1792 = vmatprep.subr.mxu0 0.0
        %1793 = vmatpush1.msra.mxu0 0.0
        %1794 = vmatprep.subr.mxu0 0.0
        %1795 = vmatpush1.msra.mxu0 0.0
        %1796 = vmatprep.subr.mxu0 0.0
        %1797 = vmatpush1.msra.mxu0 0.0
        %1798 = vmatprep.subr.mxu0 0.0
        %1799 = vmatpush1.msra.mxu0 0.0
        %1800 = vmatprep.subr.mxu0 0.0
        %1801 = vmatpush1.msra.mxu0 0.0
        %1802 = vmatprep.subr.mxu0 0.0
        %1803 = vmatpush1.msra.mxu0 0.0
        %1804 = vmatprep.subr.mxu0 0.0
        %1805 = vmatpush1.msra.mxu0 0.0
        %1806 = vmatprep.subr.mxu0 0.0
        %1807 = vmatpush1.msra.mxu0 0.0
        %1808 = vmatprep.subr.mxu0 0.0
        %1809 = vmatpush1.msra.mxu0 0.0
        %1810 = vmatprep.subr.mxu0 0.0
        %1811 = vmatpush1.msra.mxu0 0.0
        %1812 = vmatprep.subr.mxu0 0.0
        %1813 = vmatpush1.msra.mxu0 0.0
        %1814 = vmatprep.subr.mxu0 0.0
        %1815 = vmatpush1.msra.mxu0 0.0
        %1816 = vmatprep.mubr.f32.mxu0 0.0
        %v1817 = vand.u32 %v655, 4294901760
        %v1818 = vsub.f32 %v655, %v1817
        %1819 = vmatmul.mubr.f32.gmra.mrb[0].mxu0 %v1818
        %v1820 = vpop.f32.mrb[0].mxu0
        %v1821 = vadd.f32 %v1705, %v1820
        %v1822 = vpop.f32.mrb[0].mxu0
        %1823 = vmatprep.mubr.f32.mxu0 0.0
        %v1824 = vand.u32 %v658, 4294901760
        %v1825 = vsub.f32 %v658, %v1824
        %1826 = vmatmul.mubr.f32.gmra.mrb[0].mxu0 %v1825
        %v1827 = vpop.f32.mrb[0].mxu0
        %v1828 = vadd.f32 %v1711, %v1827
        %v1829 = vpop.f32.mrb[0].mxu0
        %1830 = vmatprep.mubr.f32.mxu0 0.0
        %v1831 = vand.u32 %v661, 4294901760
        %v1832 = vsub.f32 %v661, %v1831
        %1833 = vmatmul.mubr.f32.gmra.mrb[0].mxu0 %v1832
        %v1834 = vpop.f32.mrb[0].mxu0
        %v1835 = vadd.f32 %v1717, %v1834
        %v1836 = vpop.f32.mrb[0].mxu0
        %1837 = vmatprep.mubr.f32.mxu0 0.0
        %v1838 = vand.u32 %v664, 4294901760
        %v1839 = vsub.f32 %v664, %v1838
        %1840 = vmatmul.mubr.f32.gmra.mrb[0].mxu0 %v1839
        %v1841 = vpop.f32.mrb[0].mxu0
        %v1842 = vadd.f32 %v1723, %v1841
        %v1843 = vpop.f32.mrb[0].mxu0
        %1844 = vmatprep.mubr.f32.mxu0 0.0
        %v1845 = vand.u32 %v667, 4294901760
        %v1846 = vsub.f32 %v667, %v1845
        %1847 = vmatmul.mubr.f32.gmra.mrb[0].mxu0 %v1846
        %v1848 = vpop.f32.mrb[0].mxu0
        %v1849 = vadd.f32 %v1729, %v1848
        %v1850 = vpop.f32.mrb[0].mxu0
        %1851 = vmatprep.mubr.f32.mxu0 0.0
        %v1852 = vand.u32 %v670, 4294901760
        %v1853 = vsub.f32 %v670, %v1852
        %1854 = vmatmul.mubr.f32.gmra.mrb[0].mxu0 %v1853
        %v1855 = vpop.f32.mrb[0].mxu0
        %v1856 = vadd.f32 %v1735, %v1855
        %v1857 = vpop.f32.mrb[0].mxu0
        %1858 = vmatprep.mubr.f32.mxu0 0.0
        %v1859 = vand.u32 %v673, 4294901760
        %v1860 = vsub.f32 %v673, %v1859
        %1861 = vmatmul.mubr.f32.gmra.mrb[0].mxu0 %v1860
        %v1862 = vpop.f32.mrb[0].mxu0
        %v1863 = vadd.f32 %v1741, %v1862
        %v1864 = vpop.f32.mrb[0].mxu0
        %1865 = vmatprep.mubr.f32.mxu0 0.0
        %v1866 = vand.u32 %v676, 4294901760
        %v1867 = vsub.f32 %v676, %v1866
        %1868 = vmatmul.mubr.f32.gmra.mrb[0].mxu0 %v1867
        %v1869 = vpop.f32.mrb[0].mxu0
        %v1870 = vadd.f32 %v1747, %v1869
        %v1871 = vpop.f32.mrb[0].mxu0
        %1872 = vdwg.mxu0
        %1873 = vmatprep.subr.mxu0 0.0
        %v1874 = vand.u32 %v647, 4294901760
        %1875 = vmatpush1.msra.mxu0 %v1874
        %1876 = vmatprep.subr.mxu0 0.0
        %1877 = vmatpush1.msra.mxu0 0.0
        %1878 = vmatprep.subr.mxu0 0.0
        %1879 = vmatpush1.msra.mxu0 0.0
        %1880 = vmatprep.subr.mxu0 0.0
        %1881 = vmatpush1.msra.mxu0 0.0
        %1882 = vmatprep.subr.mxu0 0.0
        %1883 = vmatpush1.msra.mxu0 0.0
        %1884 = vmatprep.subr.mxu0 0.0
        %1885 = vmatpush1.msra.mxu0 0.0
        %1886 = vmatprep.subr.mxu0 0.0
        %1887 = vmatpush1.msra.mxu0 0.0
        %1888 = vmatprep.subr.mxu0 0.0
        %1889 = vmatpush1.msra.mxu0 0.0
        %1890 = vmatprep.subr.mxu0 0.0
        %1891 = vmatpush1.msra.mxu0 0.0
        %1892 = vmatprep.subr.mxu0 0.0
        %1893 = vmatpush1.msra.mxu0 0.0
        %1894 = vmatprep.subr.mxu0 0.0
        %1895 = vmatpush1.msra.mxu0 0.0
        %1896 = vmatprep.subr.mxu0 0.0
        %1897 = vmatpush1.msra.mxu0 0.0
        %1898 = vmatprep.subr.mxu0 0.0
        %1899 = vmatpush1.msra.mxu0 0.0
        %1900 = vmatprep.subr.mxu0 0.0
        %1901 = vmatpush1.msra.mxu0 0.0
        %1902 = vmatprep.subr.mxu0 0.0
        %1903 = vmatpush1.msra.mxu0 0.0
        %1904 = vmatprep.subr.mxu0 0.0
        %1905 = vmatpush1.msra.mxu0 0.0
        %1906 = vmatprep.subr.mxu0 0.0
        %1907 = vmatpush1.msra.mxu0 0.0
        %1908 = vmatprep.subr.mxu0 0.0
        %1909 = vmatpush1.msra.mxu0 0.0
        %1910 = vmatprep.subr.mxu0 0.0
        %1911 = vmatpush1.msra.mxu0 0.0
        %1912 = vmatprep.subr.mxu0 0.0
        %1913 = vmatpush1.msra.mxu0 0.0
        %1914 = vmatprep.subr.mxu0 0.0
        %1915 = vmatpush1.msra.mxu0 0.0
        %1916 = vmatprep.subr.mxu0 0.0
        %1917 = vmatpush1.msra.mxu0 0.0
        %1918 = vmatprep.subr.mxu0 0.0
        %1919 = vmatpush1.msra.mxu0 0.0
        %1920 = vmatprep.subr.mxu0 0.0
        %1921 = vmatpush1.msra.mxu0 0.0
        %1922 = vmatprep.subr.mxu0 0.0
        %1923 = vmatpush1.msra.mxu0 0.0
        %1924 = vmatprep.subr.mxu0 0.0
        %1925 = vmatpush1.msra.mxu0 0.0
        %1926 = vmatprep.subr.mxu0 0.0
        %1927 = vmatpush1.msra.mxu0 0.0
        %1928 = vmatprep.subr.mxu0 0.0
        %1929 = vmatpush1.msra.mxu0 0.0
        %1930 = vmatprep.subr.mxu0 0.0
        %1931 = vmatpush1.msra.mxu0 0.0
        %1932 = vmatprep.subr.mxu0 0.0
        %1933 = vmatpush1.msra.mxu0 0.0
        %1934 = vmatprep.subr.mxu0 0.0
        %1935 = vmatpush1.msra.mxu0 0.0
        %1936 = vmatprep.subr.mxu0 0.0
        %1937 = vmatpush1.msra.mxu0 0.0
        %1938 = vmatprep.mubr.f32.mxu0 0.0
        %v1939 = vand.u32 %v655, 4294901760
        %v1940 = vsub.f32 %v655, %v1939
        %v1941 = vand.u32 %v1940, 4294901760
        %1942 = vmatmul.mubr.f32.gmra.mrb[0].mxu0 %v1941
        %v1943 = vpop.f32.mrb[0].mxu0
        %v1944 = vadd.f32 %v1821, %v1943
        %v1945 = vpop.f32.mrb[0].mxu0
        %1946 = vmatprep.mubr.f32.mxu0 0.0
        %v1947 = vand.u32 %v658, 4294901760
        %v1948 = vsub.f32 %v658, %v1947
        %v1949 = vand.u32 %v1948, 4294901760
        %1950 = vmatmul.mubr.f32.gmra.mrb[0].mxu0 %v1949
        %v1951 = vpop.f32.mrb[0].mxu0
        %v1952 = vadd.f32 %v1828, %v1951
        %v1953 = vpop.f32.mrb[0].mxu0
        %1954 = vmatprep.mubr.f32.mxu0 0.0
        %v1955 = vand.u32 %v661, 4294901760
        %v1956 = vsub.f32 %v661, %v1955
        %v1957 = vand.u32 %v1956, 4294901760
        %1958 = vmatmul.mubr.f32.gmra.mrb[0].mxu0 %v1957
        %v1959 = vpop.f32.mrb[0].mxu0
        %v1960 = vadd.f32 %v1835, %v1959
        %v1961 = vpop.f32.mrb[0].mxu0
        %1962 = vmatprep.mubr.f32.mxu0 0.0
        %v1963 = vand.u32 %v664, 4294901760
        %v1964 = vsub.f32 %v664, %v1963
        %v1965 = vand.u32 %v1964, 4294901760
        %1966 = vmatmul.mubr.f32.gmra.mrb[0].mxu0 %v1965
        %v1967 = vpop.f32.mrb[0].mxu0
        %v1968 = vadd.f32 %v1842, %v1967
        %v1969 = vpop.f32.mrb[0].mxu0
        %1970 = vmatprep.mubr.f32.mxu0 0.0
        %v1971 = vand.u32 %v667, 4294901760
        %v1972 = vsub.f32 %v667, %v1971
        %v1973 = vand.u32 %v1972, 4294901760
        %1974 = vmatmul.mubr.f32.gmra.mrb[0].mxu0 %v1973
        %v1975 = vpop.f32.mrb[0].mxu0
        %v1976 = vadd.f32 %v1849, %v1975
        %v1977 = vpop.f32.mrb[0].mxu0
        %1978 = vmatprep.mubr.f32.mxu0 0.0
        %v1979 = vand.u32 %v670, 4294901760
        %v1980 = vsub.f32 %v670, %v1979
        %v1981 = vand.u32 %v1980, 4294901760
        %1982 = vmatmul.mubr.f32.gmra.mrb[0].mxu0 %v1981
        %v1983 = vpop.f32.mrb[0].mxu0
        %v1984 = vadd.f32 %v1856, %v1983
        %v1985 = vpop.f32.mrb[0].mxu0
        %1986 = vmatprep.mubr.f32.mxu0 0.0
        %v1987 = vand.u32 %v673, 4294901760
        %v1988 = vsub.f32 %v673, %v1987
        %v1989 = vand.u32 %v1988, 4294901760
        %1990 = vmatmul.mubr.f32.gmra.mrb[0].mxu0 %v1989
        %v1991 = vpop.f32.mrb[0].mxu0
        %v1992 = vadd.f32 %v1863, %v1991
        %v1993 = vpop.f32.mrb[0].mxu0
        %1994 = vmatprep.mubr.f32.mxu0 0.0
        %v1995 = vand.u32 %v676, 4294901760
        %v1996 = vsub.f32 %v676, %v1995
        %v1997 = vand.u32 %v1996, 4294901760
        %1998 = vmatmul.mubr.f32.gmra.mrb[0].mxu0 %v1997
        %v1999 = vpop.f32.mrb[0].mxu0
        %v2000 = vadd.f32 %v1870, %v1999
        %v2001 = vpop.f32.mrb[0].mxu0
        %2002 = vdwg.mxu0
        %2003 = vmatprep.subr.mxu0 0.0
        %v2004 = vand.u32 %v647, 4294901760
        %v2005 = vsub.f32 %v647, %v2004
        %v2006 = vand.u32 %v2005, 4294901760
        %2007 = vmatpush1.msra.mxu0 %v2006
        %2008 = vmatprep.subr.mxu0 0.0
        %2009 = vmatpush1.msra.mxu0 0.0
        %2010 = vmatprep.subr.mxu0 0.0
        %2011 = vmatpush1.msra.mxu0 0.0
        %2012 = vmatprep.subr.mxu0 0.0
        %2013 = vmatpush1.msra.mxu0 0.0
        %2014 = vmatprep.subr.mxu0 0.0
        %2015 = vmatpush1.msra.mxu0 0.0
        %2016 = vmatprep.subr.mxu0 0.0
        %2017 = vmatpush1.msra.mxu0 0.0
        %2018 = vmatprep.subr.mxu0 0.0
        %2019 = vmatpush1.msra.mxu0 0.0
        %2020 = vmatprep.subr.mxu0 0.0
        %2021 = vmatpush1.msra.mxu0 0.0
        %2022 = vmatprep.subr.mxu0 0.0
        %2023 = vmatpush1.msra.mxu0 0.0
        %2024 = vmatprep.subr.mxu0 0.0
        %2025 = vmatpush1.msra.mxu0 0.0
        %2026 = vmatprep.subr.mxu0 0.0
        %2027 = vmatpush1.msra.mxu0 0.0
        %2028 = vmatprep.subr.mxu0 0.0
        %2029 = vmatpush1.msra.mxu0 0.0
        %2030 = vmatprep.subr.mxu0 0.0
        %2031 = vmatpush1.msra.mxu0 0.0
        %2032 = vmatprep.subr.mxu0 0.0
        %2033 = vmatpush1.msra.mxu0 0.0
        %2034 = vmatprep.subr.mxu0 0.0
        %2035 = vmatpush1.msra.mxu0 0.0
        %2036 = vmatprep.subr.mxu0 0.0
        %2037 = vmatpush1.msra.mxu0 0.0
        %2038 = vmatprep.subr.mxu0 0.0
        %2039 = vmatpush1.msra.mxu0 0.0
        %2040 = vmatprep.subr.mxu0 0.0
        %2041 = vmatpush1.msra.mxu0 0.0
        %2042 = vmatprep.subr.mxu0 0.0
        %2043 = vmatpush1.msra.mxu0 0.0
        %2044 = vmatprep.subr.mxu0 0.0
        %2045 = vmatpush1.msra.mxu0 0.0
        %2046 = vmatprep.subr.mxu0 0.0
        %2047 = vmatpush1.msra.mxu0 0.0
        %2048 = vmatprep.subr.mxu0 0.0
        %2049 = vmatpush1.msra.mxu0 0.0
        %2050 = vmatprep.subr.mxu0 0.0
        %2051 = vmatpush1.msra.mxu0 0.0
        %2052 = vmatprep.subr.mxu0 0.0
        %2053 = vmatpush1.msra.mxu0 0.0
        %2054 = vmatprep.subr.mxu0 0.0
        %2055 = vmatpush1.msra.mxu0 0.0
        %2056 = vmatprep.subr.mxu0 0.0
        %2057 = vmatpush1.msra.mxu0 0.0
        %2058 = vmatprep.subr.mxu0 0.0
        %2059 = vmatpush1.msra.mxu0 0.0
        %2060 = vmatprep.subr.mxu0 0.0
        %2061 = vmatpush1.msra.mxu0 0.0
        %2062 = vmatprep.subr.mxu0 0.0
        %2063 = vmatpush1.msra.mxu0 0.0
        %2064 = vmatprep.subr.mxu0 0.0
        %2065 = vmatpush1.msra.mxu0 0.0
        %2066 = vmatprep.subr.mxu0 0.0
        %2067 = vmatpush1.msra.mxu0 0.0
        %2068 = vmatprep.subr.mxu0 0.0
        %2069 = vmatpush1.msra.mxu0 0.0
        %2070 = vmatprep.mubr.f32.mxu0 0.0
        %v2071 = vand.u32 %v655, 4294901760
        %2072 = vmatmul.mubr.f32.gmra.mrb[0].mxu0 %v2071
        %v2073 = vpop.f32.mrb[0].mxu0
        %v2074 = vadd.f32 %v1944, %v2073
        %v2075 = vpop.f32.mrb[0].mxu0
        %2076 = vmatprep.mubr.f32.mxu0 0.0
        %v2077 = vand.u32 %v658, 4294901760
        %2078 = vmatmul.mubr.f32.gmra.mrb[0].mxu0 %v2077
        %v2079 = vpop.f32.mrb[0].mxu0
        %v2080 = vadd.f32 %v1952, %v2079
        %v2081 = vpop.f32.mrb[0].mxu0
        %2082 = vmatprep.mubr.f32.mxu0 0.0
        %v2083 = vand.u32 %v661, 4294901760
        %2084 = vmatmul.mubr.f32.gmra.mrb[0].mxu0 %v2083
        %v2085 = vpop.f32.mrb[0].mxu0
        %v2086 = vadd.f32 %v1960, %v2085
        %v2087 = vpop.f32.mrb[0].mxu0
        %2088 = vmatprep.mubr.f32.mxu0 0.0
        %v2089 = vand.u32 %v664, 4294901760
        %2090 = vmatmul.mubr.f32.gmra.mrb[0].mxu0 %v2089
        %v2091 = vpop.f32.mrb[0].mxu0
        %v2092 = vadd.f32 %v1968, %v2091
        %v2093 = vpop.f32.mrb[0].mxu0
        %2094 = vmatprep.mubr.f32.mxu0 0.0
        %v2095 = vand.u32 %v667, 4294901760
        %2096 = vmatmul.mubr.f32.gmra.mrb[0].mxu0 %v2095
        %v2097 = vpop.f32.mrb[0].mxu0
        %v2098 = vadd.f32 %v1976, %v2097
        %v2099 = vpop.f32.mrb[0].mxu0
        %2100 = vmatprep.mubr.f32.mxu0 0.0
        %v2101 = vand.u32 %v670, 4294901760
        %2102 = vmatmul.mubr.f32.gmra.mrb[0].mxu0 %v2101
        %v2103 = vpop.f32.mrb[0].mxu0
        %v2104 = vadd.f32 %v1984, %v2103
        %v2105 = vpop.f32.mrb[0].mxu0
        %2106 = vmatprep.mubr.f32.mxu0 0.0
        %v2107 = vand.u32 %v673, 4294901760
        %2108 = vmatmul.mubr.f32.gmra.mrb[0].mxu0 %v2107
        %v2109 = vpop.f32.mrb[0].mxu0
        %v2110 = vadd.f32 %v1992, %v2109
        %v2111 = vpop.f32.mrb[0].mxu0
        %2112 = vmatprep.mubr.f32.mxu0 0.0
        %v2113 = vand.u32 %v676, 4294901760
        %2114 = vmatmul.mubr.f32.gmra.mrb[0].mxu0 %v2113
        %v2115 = vpop.f32.mrb[0].mxu0
        %v2116 = vadd.f32 %v2000, %v2115
        %v2117 = vpop.f32.mrb[0].mxu0
        %2118 = vdwg.mxu0
        %2119 = vmatprep.subr.mxu0 0.0
        %v2120 = vand.u32 %v647, 4294901760
        %2121 = vmatpush1.msra.mxu0 %v2120
        %2122 = vmatprep.subr.mxu0 0.0
        %2123 = vmatpush1.msra.mxu0 0.0
        %2124 = vmatprep.subr.mxu0 0.0
        %2125 = vmatpush1.msra.mxu0 0.0
        %2126 = vmatprep.subr.mxu0 0.0
        %2127 = vmatpush1.msra.mxu0 0.0
        %2128 = vmatprep.subr.mxu0 0.0
        %2129 = vmatpush1.msra.mxu0 0.0
        %2130 = vmatprep.subr.mxu0 0.0
        %2131 = vmatpush1.msra.mxu0 0.0
        %2132 = vmatprep.subr.mxu0 0.0
        %2133 = vmatpush1.msra.mxu0 0.0
        %2134 = vmatprep.subr.mxu0 0.0
        %2135 = vmatpush1.msra.mxu0 0.0
        %2136 = vmatprep.subr.mxu0 0.0
        %2137 = vmatpush1.msra.mxu0 0.0
        %2138 = vmatprep.subr.mxu0 0.0
        %2139 = vmatpush1.msra.mxu0 0.0
        %2140 = vmatprep.subr.mxu0 0.0
        %2141 = vmatpush1.msra.mxu0 0.0
        %2142 = vmatprep.subr.mxu0 0.0
        %2143 = vmatpush1.msra.mxu0 0.0
        %2144 = vmatprep.subr.mxu0 0.0
        %2145 = vmatpush1.msra.mxu0 0.0
        %2146 = vmatprep.subr.mxu0 0.0
        %2147 = vmatpush1.msra.mxu0 0.0
        %2148 = vmatprep.subr.mxu0 0.0
        %2149 = vmatpush1.msra.mxu0 0.0
        %2150 = vmatprep.subr.mxu0 0.0
        %2151 = vmatpush1.msra.mxu0 0.0
        %2152 = vmatprep.subr.mxu0 0.0
        %2153 = vmatpush1.msra.mxu0 0.0
        %2154 = vmatprep.subr.mxu0 0.0
        %2155 = vmatpush1.msra.mxu0 0.0
        %2156 = vmatprep.subr.mxu0 0.0
        %2157 = vmatpush1.msra.mxu0 0.0
        %2158 = vmatprep.subr.mxu0 0.0
        %2159 = vmatpush1.msra.mxu0 0.0
        %2160 = vmatprep.subr.mxu0 0.0
        %2161 = vmatpush1.msra.mxu0 0.0
        %2162 = vmatprep.subr.mxu0 0.0
        %2163 = vmatpush1.msra.mxu0 0.0
        %2164 = vmatprep.subr.mxu0 0.0
        %2165 = vmatpush1.msra.mxu0 0.0
        %2166 = vmatprep.subr.mxu0 0.0
        %2167 = vmatpush1.msra.mxu0 0.0
        %2168 = vmatprep.subr.mxu0 0.0
        %2169 = vmatpush1.msra.mxu0 0.0
        %2170 = vmatprep.subr.mxu0 0.0
        %2171 = vmatpush1.msra.mxu0 0.0
        %2172 = vmatprep.subr.mxu0 0.0
        %2173 = vmatpush1.msra.mxu0 0.0
        %2174 = vmatprep.subr.mxu0 0.0
        %2175 = vmatpush1.msra.mxu0 0.0
        %2176 = vmatprep.subr.mxu0 0.0
        %2177 = vmatpush1.msra.mxu0 0.0
        %2178 = vmatprep.subr.mxu0 0.0
        %2179 = vmatpush1.msra.mxu0 0.0
        %2180 = vmatprep.subr.mxu0 0.0
        %2181 = vmatpush1.msra.mxu0 0.0
        %2182 = vmatprep.subr.mxu0 0.0
        %2183 = vmatpush1.msra.mxu0 0.0
        %2184 = vmatprep.mubr.f32.mxu0 0.0
        %v2185 = vand.u32 %v655, 4294901760
        %2186 = vmatmul.mubr.f32.gmra.mrb[0].mxu0 %v2185
        %v2187 = vpop.f32.mrb[0].mxu0
        %v2188 = vadd.f32 %v2074, %v2187
        %v2189 = vpop.f32.mrb[0].mxu0
        %2190 = vmatprep.mubr.f32.mxu0 0.0
        %v2191 = vand.u32 %v658, 4294901760
        %2192 = vmatmul.mubr.f32.gmra.mrb[0].mxu0 %v2191
        %v2193 = vpop.f32.mrb[0].mxu0
        %v2194 = vadd.f32 %v2080, %v2193
        %v2195 = vpop.f32.mrb[0].mxu0
        %2196 = vmatprep.mubr.f32.mxu0 0.0
        %v2197 = vand.u32 %v661, 4294901760
        %2198 = vmatmul.mubr.f32.gmra.mrb[0].mxu0 %v2197
        %v2199 = vpop.f32.mrb[0].mxu0
        %v2200 = vadd.f32 %v2086, %v2199
        %v2201 = vpop.f32.mrb[0].mxu0
        %2202 = vmatprep.mubr.f32.mxu0 0.0
        %v2203 = vand.u32 %v664, 4294901760
        %2204 = vmatmul.mubr.f32.gmra.mrb[0].mxu0 %v2203
        %v2205 = vpop.f32.mrb[0].mxu0
        %v2206 = vadd.f32 %v2092, %v2205
        %v2207 = vpop.f32.mrb[0].mxu0
        %2208 = vmatprep.mubr.f32.mxu0 0.0
        %v2209 = vand.u32 %v667, 4294901760
        %2210 = vmatmul.mubr.f32.gmra.mrb[0].mxu0 %v2209
        %v2211 = vpop.f32.mrb[0].mxu0
        %v2212 = vadd.f32 %v2098, %v2211
        %v2213 = vpop.f32.mrb[0].mxu0
        %2214 = vmatprep.mubr.f32.mxu0 0.0
        %v2215 = vand.u32 %v670, 4294901760
        %2216 = vmatmul.mubr.f32.gmra.mrb[0].mxu0 %v2215
        %v2217 = vpop.f32.mrb[0].mxu0
        %v2218 = vadd.f32 %v2104, %v2217
        %v2219 = vpop.f32.mrb[0].mxu0
        %2220 = vmatprep.mubr.f32.mxu0 0.0
        %v2221 = vand.u32 %v673, 4294901760
        %2222 = vmatmul.mubr.f32.gmra.mrb[0].mxu0 %v2221
        %v2223 = vpop.f32.mrb[0].mxu0
        %v2224 = vadd.f32 %v2110, %v2223
        %v2225 = vpop.f32.mrb[0].mxu0
        %2226 = vmatprep.mubr.f32.mxu0 0.0
        %v2227 = vand.u32 %v676, 4294901760
        %2228 = vmatmul.mubr.f32.gmra.mrb[0].mxu0 %v2227
        %v2229 = vpop.f32.mrb[0].mxu0
        %v2230 = vadd.f32 %v2116, %v2229
        %v2231 = vpop.f32.mrb[0].mxu0
        %2232 = vdwg.mxu0
        %v2233 = vld [vmem:[%s5] sm:$0xff]
        %v2234 = vld [vmem:[%s5 + $0x8] sm:$0xff]
        %v2235 = vld [vmem:[%s5 + $0x10] sm:$0xff]
        %v2236 = vld [vmem:[%s5 + $0x18] sm:$0xff]
        %v2237 = vld [vmem:[%s5 + $0x20] sm:$0xff]
        %v2238 = vld [vmem:[%s5 + $0x28] sm:$0xff]
        %v2239 = vld [vmem:[%s5 + $0x30] sm:$0xff]
        %v2240 = vld [vmem:[%s5 + $0x38] sm:$0xff]
        %2242 = vset.pattern.permute.xlu0 0
        %2243 = vperm.xlu0 %2242, %v2233
        %v2244 = vpop.permute.xlu0 %2243
        %2247 = vset.pattern.permute.xlu0 0
        %2248 = vperm.xlu0 %2247, %v2234
        %v2249 = vpop.permute.xlu0 %2248
        %2252 = vset.pattern.permute.xlu0 0
        %2253 = vperm.xlu0 %2252, %v2235
        %v2254 = vpop.permute.xlu0 %2253
        %2257 = vset.pattern.permute.xlu0 0
        %2258 = vperm.xlu0 %2257, %v2236
        %v2259 = vpop.permute.xlu0 %2258
        %2262 = vset.pattern.permute.xlu0 0
        %2263 = vperm.xlu0 %2262, %v2237
        %v2264 = vpop.permute.xlu0 %2263
        %2267 = vset.pattern.permute.xlu0 0
        %2268 = vperm.xlu0 %2267, %v2238
        %v2269 = vpop.permute.xlu0 %2268
        %2272 = vset.pattern.permute.xlu0 0
        %2273 = vperm.xlu0 %2272, %v2239
        %v2274 = vpop.permute.xlu0 %2273
        %2277 = vset.pattern.permute.xlu0 0
        %2278 = vperm.xlu0 %2277, %v2240
        %v2279 = vpop.permute.xlu0 %2278
        %v2281 = vmul.f32 %v1433, %v2244
        %v2282 = vmul.f32 %v1435, %v2244
        %v2283 = vmul.f32 %v2188, %v2244
        %v2284 = vmul.f32 %v1440, %v2249
        %v2285 = vmul.f32 %v1442, %v2249
        %v2286 = vmul.f32 %v2194, %v2249
        %v2287 = vmul.f32 %v1447, %v2254
        %v2288 = vmul.f32 %v1449, %v2254
        %v2289 = vmul.f32 %v2200, %v2254
        %v2290 = vmul.f32 %v1454, %v2259
        %v2291 = vmul.f32 %v1456, %v2259
        %v2292 = vmul.f32 %v2206, %v2259
        %v2293 = vmul.f32 %v1461, %v2264
        %v2294 = vmul.f32 %v1463, %v2264
        %v2295 = vmul.f32 %v2212, %v2264
        %v2296 = vmul.f32 %v1468, %v2269
        %v2297 = vmul.f32 %v1470, %v2269
        %v2298 = vmul.f32 %v2218, %v2269
        %v2299 = vmul.f32 %v1475, %v2274
        %v2300 = vmul.f32 %v1477, %v2274
        %v2301 = vmul.f32 %v2224, %v2274
        %v2302 = vmul.f32 %v1482, %v2279
        %v2303 = vmul.f32 %v1484, %v2279
        %v2304 = vmul.f32 %v2230, %v2279
        %v2305 = vld [vmem:[%s6] sm:$0xff]
        %v2306 = vld [vmem:[%s6 + $0x8] sm:$0xff]
        %v2307 = vld [vmem:[%s6 + $0x10] sm:$0xff]
        %v2308 = vld [vmem:[%s6 + $0x18] sm:$0xff]
        %v2309 = vld [vmem:[%s6 + $0x20] sm:$0xff]
        %v2310 = vld [vmem:[%s6 + $0x28] sm:$0xff]
        %v2311 = vld [vmem:[%s6 + $0x30] sm:$0xff]
        %v2312 = vld [vmem:[%s6 + $0x38] sm:$0xff]
        %2314 = vset.pattern.permute.xlu0 0
        %2315 = vperm.xlu0 %2314, %v2305
        %v2316 = vpop.permute.xlu0 %2315
        %2319 = vset.pattern.permute.xlu0 0
        %2320 = vperm.xlu0 %2319, %v2306
        %v2321 = vpop.permute.xlu0 %2320
        %2324 = vset.pattern.permute.xlu0 0
        %2325 = vperm.xlu0 %2324, %v2307
        %v2326 = vpop.permute.xlu0 %2325
        %2329 = vset.pattern.permute.xlu0 0
        %2330 = vperm.xlu0 %2329, %v2308
        %v2331 = vpop.permute.xlu0 %2330
        %2334 = vset.pattern.permute.xlu0 0
        %2335 = vperm.xlu0 %2334, %v2309
        %v2336 = vpop.permute.xlu0 %2335
        %2339 = vset.pattern.permute.xlu0 0
        %2340 = vperm.xlu0 %2339, %v2310
        %v2341 = vpop.permute.xlu0 %2340
        %2344 = vset.pattern.permute.xlu0 0
        %2345 = vperm.xlu0 %2344, %v2311
        %v2346 = vpop.permute.xlu0 %2345
        %2349 = vset.pattern.permute.xlu0 0
        %2350 = vperm.xlu0 %2349, %v2312
        %v2351 = vpop.permute.xlu0 %2350
        %v2353 = vadd.f32 %v2281, %v2316
        %v2354 = vadd.f32 %v2282, %v2316
        %v2355 = vadd.f32 %v2283, %v2316
        %v2356 = vadd.f32 %v2284, %v2321
        %v2357 = vadd.f32 %v2285, %v2321
        %v2358 = vadd.f32 %v2286, %v2321
        %v2359 = vadd.f32 %v2287, %v2326
        %v2360 = vadd.f32 %v2288, %v2326
        %v2361 = vadd.f32 %v2289, %v2326
        %v2362 = vadd.f32 %v2290, %v2331
        %v2363 = vadd.f32 %v2291, %v2331
        %v2364 = vadd.f32 %v2292, %v2331
        %v2365 = vadd.f32 %v2293, %v2336
        %v2366 = vadd.f32 %v2294, %v2336
        %v2367 = vadd.f32 %v2295, %v2336
        %v2368 = vadd.f32 %v2296, %v2341
        %v2369 = vadd.f32 %v2297, %v2341
        %v2370 = vadd.f32 %v2298, %v2341
        %v2371 = vadd.f32 %v2299, %v2346
        %v2372 = vadd.f32 %v2300, %v2346
        %v2373 = vadd.f32 %v2301, %v2346
        %v2374 = vadd.f32 %v2302, %v2351
        %v2375 = vadd.f32 %v2303, %v2351
        %v2376 = vadd.f32 %v2304, %v2351
        %v2377 = vmax.f32 %v2353, 0.0
        %v2378 = vmax.f32 %v2354, 0.0
        %v2379 = vmax.f32 %v2355, 0.0
        %v2380 = vmax.f32 %v2356, 0.0
        %v2381 = vmax.f32 %v2357, 0.0
        %v2382 = vmax.f32 %v2358, 0.0
        %v2383 = vmax.f32 %v2359, 0.0
        %v2384 = vmax.f32 %v2360, 0.0
        %v2385 = vmax.f32 %v2361, 0.0
        %v2386 = vmax.f32 %v2362, 0.0
        %v2387 = vmax.f32 %v2363, 0.0
        %v2388 = vmax.f32 %v2364, 0.0
        %v2389 = vmax.f32 %v2365, 0.0
        %v2390 = vmax.f32 %v2366, 0.0
        %v2391 = vmax.f32 %v2367, 0.0
        %v2392 = vmax.f32 %v2368, 0.0
        %v2393 = vmax.f32 %v2369, 0.0
        %v2394 = vmax.f32 %v2370, 0.0
        %v2395 = vmax.f32 %v2371, 0.0
        %v2396 = vmax.f32 %v2372, 0.0
        %v2397 = vmax.f32 %v2373, 0.0
        %v2398 = vmax.f32 %v2374, 0.0
        %v2399 = vmax.f32 %v2375, 0.0
        %v2400 = vmax.f32 %v2376, 0.0
        %v2401 = vlaneseq
        %v2402 = vand.u32 %v2401, 127
        %v2403 = vadd.s32 %v2402, 128
        %v2404 = vadd.s32 %v2402, 256
        %p2405 = scmp.gt.s32.totalorder %s32, 0
        %p2406 = scmp.lt.s32.totalorder %s32, 0
        %vm2407 = vcmp.ge.s32.totalorder %v2402, 18
        %vm2408 = vcmp.ge.s32.totalorder %v2403, 18
        %vm2409 = vcmp.ge.s32.totalorder %v2404, 18
        %s2410 = scalar_select %p2405, 1, 0
        %v2411 = vstv %s2410
        %vm2412 = vcmp.eq.s32.totalorder %v2411, 1
        %vm2413 = vmor %vm2412, %vm2407
        %vm2414 = vmor %vm2412, %vm2408
        %vm2415 = vmor %vm2412, %vm2409
        %vm2416 = vcmp.lt.s32.totalorder %v2402, 306
        %vm2417 = vcmp.lt.s32.totalorder %v2403, 306
        %vm2418 = vcmp.lt.s32.totalorder %v2404, 306
        %s2419 = scalar_select %p2406, 1, 0
        %v2420 = vstv %s2419
        %vm2421 = vcmp.eq.s32.totalorder %v2420, 1
        %vm2422 = vmor %vm2421, %vm2416
        %vm2423 = vmor %vm2421, %vm2417
        %vm2424 = vmor %vm2421, %vm2418
        %vm2425 = vmand %vm2413, %vm2422
        %vm2426 = vmand %vm2414, %vm2423
        %vm2427 = vmand %vm2415, %vm2424
        %v2428 = vld [vmem:[%s1] sm:$0x7]
        %v2430 = vlaneseq
        %v2431 = vshrl.u32 %v2430, 7
        %v2432 = vsub.s32 0, %v2431
        %v2433 = vrot.slane %v2428, %v2432
        %v2434 = vlaneseq
        %v2435 = vshrl.u32 %v2434, 7
        %v2436 = vsub.s32 1, %v2435
        %v2437 = vrot.slane %v2428, %v2436
        %v2438 = vlaneseq
        %v2439 = vshrl.u32 %v2438, 7
        %v2440 = vsub.s32 2, %v2439
        %v2441 = vrot.slane %v2428, %v2440
        %v2445 = vsel %vm2425, %v2433, 0.0
        %v2446 = vsel %vm2426, %v2437, 0.0
        %v2447 = vsel %vm2427, %v2441, 0.0
        %v2448 = vlaneseq
        %v2449 = vshrl.u32 %v2448, 7
        %v2450 = vsub.s32 0, %v2449
        %v2451 = vrot.slane %v2445, %v2450
        %v2452 = vlaneseq
        %v2453 = vshrl.u32 %v2452, 7
        %v2454 = vsub.s32 0, %v2453
        %v2455 = vrot.slane %v2446, %v2454
        %v2456 = vlaneseq
        %v2457 = vshrl.u32 %v2456, 7
        %v2458 = vsub.s32 0, %v2457
        %v2459 = vrot.slane %v2447, %v2458
        %v2460 = vmul.f32 %v2377, %v2451
        %v2461 = vmul.f32 %v2378, %v2455
        %v2462 = vmul.f32 %v2379, %v2459
        %v2463 = vmul.f32 %v2380, %v2451
        %v2464 = vmul.f32 %v2381, %v2455
        %v2465 = vmul.f32 %v2382, %v2459
        %v2466 = vmul.f32 %v2383, %v2451
        %v2467 = vmul.f32 %v2384, %v2455
        %v2468 = vmul.f32 %v2385, %v2459
        %v2469 = vmul.f32 %v2386, %v2451
        %v2470 = vmul.f32 %v2387, %v2455
        %v2471 = vmul.f32 %v2388, %v2459
        %v2472 = vmul.f32 %v2389, %v2451
        %v2473 = vmul.f32 %v2390, %v2455
        %v2474 = vmul.f32 %v2391, %v2459
        %v2475 = vmul.f32 %v2392, %v2451
        %v2476 = vmul.f32 %v2393, %v2455
        %v2477 = vmul.f32 %v2394, %v2459
        %v2478 = vmul.f32 %v2395, %v2451
        %v2479 = vmul.f32 %v2396, %v2455
        %v2480 = vmul.f32 %v2397, %v2459
        %v2481 = vmul.f32 %v2398, %v2451
        %v2482 = vmul.f32 %v2399, %v2455
        %v2483 = vmul.f32 %v2400, %v2459
        %v2484 = vpack.c.bf16 %v2463, %v2460
        %v2485 = vpack.c.bf16 %v2464, %v2461
        %v2486 = vpack.c.bf16 %v2465, %v2462
        %v2487 = vpack.c.bf16 %v2469, %v2466
        %v2488 = vpack.c.bf16 %v2470, %v2467
        %v2489 = vpack.c.bf16 %v2471, %v2468
        %v2490 = vpack.c.bf16 %v2475, %v2472
        %v2491 = vpack.c.bf16 %v2476, %v2473
        %v2492 = vpack.c.bf16 %v2477, %v2474
        %v2493 = vpack.c.bf16 %v2481, %v2478
        %v2494 = vpack.c.bf16 %v2482, %v2479
        %v2495 = vpack.c.bf16 %v2483, %v2480
        %2508 = vrot.lane.b32.xlu0 %v2484, 1
        %v2509 = vpop.permute.xlu0 %2508
        %2510 = vrot.lane.b32.xlu0 %v2485, 1
        %v2511 = vpop.permute.xlu0 %2510
        %2512 = vrot.lane.b32.xlu0 %v2486, 1
        %v2513 = vpop.permute.xlu0 %2512
        %2514 = vrot.lane.b32.xlu0 %v2487, 1
        %v2515 = vpop.permute.xlu0 %2514
        %2516 = vrot.lane.b32.xlu0 %v2488, 1
        %v2517 = vpop.permute.xlu0 %2516
        %2518 = vrot.lane.b32.xlu0 %v2489, 1
        %v2519 = vpop.permute.xlu0 %2518
        %2520 = vrot.lane.b32.xlu0 %v2490, 1
        %v2521 = vpop.permute.xlu0 %2520
        %2522 = vrot.lane.b32.xlu0 %v2491, 1
        %v2523 = vpop.permute.xlu0 %2522
        %2524 = vrot.lane.b32.xlu0 %v2492, 1
        %v2525 = vpop.permute.xlu0 %2524
        %2526 = vrot.lane.b32.xlu0 %v2493, 1
        %v2527 = vpop.permute.xlu0 %2526
        %2528 = vrot.lane.b32.xlu0 %v2494, 1
        %v2529 = vpop.permute.xlu0 %2528
        %2530 = vrot.lane.b32.xlu0 %v2495, 1
        %v2531 = vpop.permute.xlu0 %2530
        %vm2532 = vcmask 7168
        %v2533 = vsel %vm2532, %v2509, %v2511
        %v2534 = vsel %vm2532, %v2511, %v2513
        %v2535 = vsel %vm2532, %v2515, %v2517
        %v2536 = vsel %vm2532, %v2517, %v2519
        %v2537 = vsel %vm2532, %v2521, %v2523
        %v2538 = vsel %vm2532, %v2523, %v2525
        %v2539 = vsel %vm2532, %v2527, %v2529
        %v2540 = vsel %vm2532, %v2529, %v2531
        %vm2553 = vcmask 1047560
        %2554 = vst.msk [vmem:[#allocation2] sm:$0xff] %vm2553, %v2509
        %2555 = vst [vmem:[#allocation2 + $0x8] sm:$0xff] %v2533
        %vm2556 = vcmask 564224
        %2557 = vst.msk [vmem:[#allocation2 + $0x10] sm:$0xff] %vm2556, %v2534
        %2558 = vst.msk [vmem:[#allocation2 + $0x18] sm:$0xff] %vm2553, %v2515
        %2559 = vst [vmem:[#allocation2 + $0x20] sm:$0xff] %v2535
        %2560 = vst.msk [vmem:[#allocation2 + $0x28] sm:$0xff] %vm2556, %v2536
        %2561 = vst.msk [vmem:[#allocation2 + $0x30] sm:$0xff] %vm2553, %v2521
        %2562 = vst [vmem:[#allocation2 + $0x38] sm:$0xff] %v2537
        %2563 = vst.msk [vmem:[#allocation2 + $0x40] sm:$0xff] %vm2556, %v2538
        %2564 = vst.msk [vmem:[#allocation2 + $0x48] sm:$0xff] %vm2553, %v2527
        %2565 = vst [vmem:[#allocation2 + $0x50] sm:$0xff] %v2539
        %2566 = vst.msk [vmem:[#allocation2 + $0x58] sm:$0xff] %vm2556, %v2540
        %v2567 = vld [vmem:[#allocation2] sm:$0xff]
        %v2568 = vld [vmem:[#allocation2 + $0x8] sm:$0xff]
        %v2569 = vld [vmem:[#allocation2 + $0x10] sm:$0xff]
        %v2570 = vld [vmem:[#allocation2 + $0x18] sm:$0xff]
        %v2571 = vld [vmem:[#allocation2 + $0x20] sm:$0xff]
        %v2572 = vld [vmem:[#allocation2 + $0x28] sm:$0xff]
        %v2573 = vld [vmem:[#allocation2 + $0x30] sm:$0xff]
        %v2574 = vld [vmem:[#allocation2 + $0x38] sm:$0xff]
        %v2575 = vld [vmem:[#allocation2 + $0x40] sm:$0xff]
        %v2576 = vld [vmem:[#allocation2 + $0x48] sm:$0xff]
        %v2577 = vld [vmem:[#allocation2 + $0x50] sm:$0xff]
        %v2578 = vld [vmem:[#allocation2 + $0x58] sm:$0xff]
        %2579 = vst [vmem:[#allocation3] sm:$0xff] %v2567
        %2580 = vst [vmem:[#allocation3 + $0x8] sm:$0xff] %v2568
        %vm2581 = vcmask 261120
        %2582 = vst.msk [vmem:[#allocation3 + $0x10] sm:$0xff] %vm2581, %v2569
        %2583 = vst [vmem:[#allocation3 + $0x18] sm:$0xff] %v2570
        %2584 = vst [vmem:[#allocation3 + $0x20] sm:$0xff] %v2571
        %2585 = vst.msk [vmem:[#allocation3 + $0x28] sm:$0xff] %vm2581, %v2572
        %2586 = vst [vmem:[#allocation3 + $0x30] sm:$0xff] %v2573
        %2587 = vst [vmem:[#allocation3 + $0x38] sm:$0xff] %v2574
        %2588 = vst.msk [vmem:[#allocation3 + $0x40] sm:$0xff] %vm2581, %v2575
        %2589 = vst [vmem:[#allocation3 + $0x48] sm:$0xff] %v2576
        %2590 = vst [vmem:[#allocation3 + $0x50] sm:$0xff] %v2577
        %2591 = vst.msk [vmem:[#allocation3 + $0x58] sm:$0xff] %vm2581, %v2578
        %v2592 = vld [vmem:[#allocation2] sm:$0xff]
        %v2593 = vld [vmem:[#allocation2 + $0x8] sm:$0xff]
        %v2594 = vld [vmem:[#allocation2 + $0x10] sm:$0xff]
        %v2595 = vld [vmem:[#allocation2 + $0x18] sm:$0xff]
        %v2596 = vld [vmem:[#allocation2 + $0x20] sm:$0xff]
        %v2597 = vld [vmem:[#allocation2 + $0x28] sm:$0xff]
        %v2598 = vld [vmem:[#allocation2 + $0x30] sm:$0xff]
        %v2599 = vld [vmem:[#allocation2 + $0x38] sm:$0xff]
        %v2600 = vld [vmem:[#allocation2 + $0x40] sm:$0xff]
        %v2601 = vld [vmem:[#allocation2 + $0x48] sm:$0xff]
        %v2602 = vld [vmem:[#allocation2 + $0x50] sm:$0xff]
        %v2603 = vld [vmem:[#allocation2 + $0x58] sm:$0xff]
        %2616 = vrot.lane.b32.xlu0 %v2592, 127
        %v2617 = vpop.permute.xlu0 %2616
        %2618 = vrot.lane.b32.xlu0 %v2593, 127
        %v2619 = vpop.permute.xlu0 %2618
        %2620 = vrot.lane.b32.xlu0 %v2594, 127
        %v2621 = vpop.permute.xlu0 %2620
        %2622 = vrot.lane.b32.xlu0 %v2595, 127
        %v2623 = vpop.permute.xlu0 %2622
        %2624 = vrot.lane.b32.xlu0 %v2596, 127
        %v2625 = vpop.permute.xlu0 %2624
        %2626 = vrot.lane.b32.xlu0 %v2597, 127
        %v2627 = vpop.permute.xlu0 %2626
        %2628 = vrot.lane.b32.xlu0 %v2598, 127
        %v2629 = vpop.permute.xlu0 %2628
        %2630 = vrot.lane.b32.xlu0 %v2599, 127
        %v2631 = vpop.permute.xlu0 %2630
        %2632 = vrot.lane.b32.xlu0 %v2600, 127
        %v2633 = vpop.permute.xlu0 %2632
        %2634 = vrot.lane.b32.xlu0 %v2601, 127
        %v2635 = vpop.permute.xlu0 %2634
        %2636 = vrot.lane.b32.xlu0 %v2602, 127
        %v2637 = vpop.permute.xlu0 %2636
        %2638 = vrot.lane.b32.xlu0 %v2603, 127
        %v2639 = vpop.permute.xlu0 %2638
        %vm2640 = vcmask 1039360
        %v2641 = vsel %vm2640, %v2617, %v2619
        %v2642 = vsel %vm2640, %v2619, %v2621
        %v2643 = vsel %vm2640, %v2623, %v2625
        %v2644 = vsel %vm2640, %v2625, %v2627
        %v2645 = vsel %vm2640, %v2629, %v2631
        %v2646 = vsel %vm2640, %v2631, %v2633
        %v2647 = vsel %vm2640, %v2635, %v2637
        %v2648 = vsel %vm2640, %v2637, %v2639
        %2661 = vst [vmem:[#allocation3 + $0x60] sm:$0xff] %v2641
        %2662 = vst [vmem:[#allocation3 + $0x68] sm:$0xff] %v2642
        %2663 = vst.msk [vmem:[#allocation3 + $0x70] sm:$0xff] %vm2581, %v2621
        %2664 = vst [vmem:[#allocation3 + $0x78] sm:$0xff] %v2643
        %2665 = vst [vmem:[#allocation3 + $0x80] sm:$0xff] %v2644
        %2666 = vst.msk [vmem:[#allocation3 + $0x88] sm:$0xff] %vm2581, %v2627
        %2667 = vst [vmem:[#allocation3 + $0x90] sm:$0xff] %v2645
        %2668 = vst [vmem:[#allocation3 + $0x98] sm:$0xff] %v2646
        %2669 = vst.msk [vmem:[#allocation3 + $0xa0] sm:$0xff] %vm2581, %v2633
        %2670 = vst [vmem:[#allocation3 + $0xa8] sm:$0xff] %v2647
        %2671 = vst [vmem:[#allocation3 + $0xb0] sm:$0xff] %v2648
        %2672 = vst.msk [vmem:[#allocation3 + $0xb8] sm:$0xff] %vm2581, %v2639
        %v2673 = vld [vmem:[#allocation2] sm:$0xff]
        %v2674 = vld [vmem:[#allocation2 + $0x8] sm:$0xff]
        %v2675 = vld [vmem:[#allocation2 + $0x10] sm:$0xff]
        %v2676 = vld [vmem:[#allocation2 + $0x18] sm:$0xff]
        %v2677 = vld [vmem:[#allocation2 + $0x20] sm:$0xff]
        %v2678 = vld [vmem:[#allocation2 + $0x28] sm:$0xff]
        %v2679 = vld [vmem:[#allocation2 + $0x30] sm:$0xff]
        %v2680 = vld [vmem:[#allocation2 + $0x38] sm:$0xff]
        %v2681 = vld [vmem:[#allocation2 + $0x40] sm:$0xff]
        %v2682 = vld [vmem:[#allocation2 + $0x48] sm:$0xff]
        %v2683 = vld [vmem:[#allocation2 + $0x50] sm:$0xff]
        %v2684 = vld [vmem:[#allocation2 + $0x58] sm:$0xff]
        %2697 = vrot.lane.b32.xlu0 %v2673, 126
        %v2698 = vpop.permute.xlu0 %2697
        %2699 = vrot.lane.b32.xlu0 %v2674, 126
        %v2700 = vpop.permute.xlu0 %2699
        %2701 = vrot.lane.b32.xlu0 %v2675, 126
        %v2702 = vpop.permute.xlu0 %2701
        %2703 = vrot.lane.b32.xlu0 %v2676, 126
        %v2704 = vpop.permute.xlu0 %2703
        %2705 = vrot.lane.b32.xlu0 %v2677, 126
        %v2706 = vpop.permute.xlu0 %2705
        %2707 = vrot.lane.b32.xlu0 %v2678, 126
        %v2708 = vpop.permute.xlu0 %2707
        %2709 = vrot.lane.b32.xlu0 %v2679, 126
        %v2710 = vpop.permute.xlu0 %2709
        %2711 = vrot.lane.b32.xlu0 %v2680, 126
        %v2712 = vpop.permute.xlu0 %2711
        %2713 = vrot.lane.b32.xlu0 %v2681, 126
        %v2714 = vpop.permute.xlu0 %2713
        %2715 = vrot.lane.b32.xlu0 %v2682, 126
        %v2716 = vpop.permute.xlu0 %2715
        %2717 = vrot.lane.b32.xlu0 %v2683, 126
        %v2718 = vpop.permute.xlu0 %2717
        %2719 = vrot.lane.b32.xlu0 %v2684, 126
        %v2720 = vpop.permute.xlu0 %2719
        %vm2721 = vcmask 1031168
        %v2722 = vsel %vm2721, %v2698, %v2700
        %v2723 = vsel %vm2721, %v2700, %v2702
        %v2724 = vsel %vm2721, %v2704, %v2706
        %v2725 = vsel %vm2721, %v2706, %v2708
        %v2726 = vsel %vm2721, %v2710, %v2712
        %v2727 = vsel %vm2721, %v2712, %v2714
        %v2728 = vsel %vm2721, %v2716, %v2718
        %v2729 = vsel %vm2721, %v2718, %v2720
        %2742 = vst [vmem:[#allocation3 + $0xc0] sm:$0xff] %v2722
        %2743 = vst [vmem:[#allocation3 + $0xc8] sm:$0xff] %v2723
        %2744 = vst.msk [vmem:[#allocation3 + $0xd0] sm:$0xff] %vm2581, %v2702
        %2745 = vst [vmem:[#allocation3 + $0xd8] sm:$0xff] %v2724
        %2746 = vst [vmem:[#allocation3 + $0xe0] sm:$0xff] %v2725
        %2747 = vst.msk [vmem:[#allocation3 + $0xe8] sm:$0xff] %vm2581, %v2708
        %2748 = vst [vmem:[#allocation3 + $0xf0] sm:$0xff] %v2726
        %2749 = vst [vmem:[#allocation3 + $0xf8] sm:$0xff] %v2727
        %2750 = vst.msk [vmem:[#allocation3 + $0x100] sm:$0xff] %vm2581, %v2714
        %2751 = vst [vmem:[#allocation3 + $0x108] sm:$0xff] %v2728
        %2752 = vst [vmem:[#allocation3 + $0x110] sm:$0xff] %v2729
        %2753 = vst.msk [vmem:[#allocation3 + $0x118] sm:$0xff] %vm2581, %v2720
        %v2754 = vld [vmem:[#allocation2] sm:$0xff]
        %v2755 = vld [vmem:[#allocation2 + $0x8] sm:$0xff]
        %v2756 = vld [vmem:[#allocation2 + $0x10] sm:$0xff]
        %v2757 = vld [vmem:[#allocation2 + $0x18] sm:$0xff]
        %v2758 = vld [vmem:[#allocation2 + $0x20] sm:$0xff]
        %v2759 = vld [vmem:[#allocation2 + $0x28] sm:$0xff]
        %v2760 = vld [vmem:[#allocation2 + $0x30] sm:$0xff]
        %v2761 = vld [vmem:[#allocation2 + $0x38] sm:$0xff]
        %v2762 = vld [vmem:[#allocation2 + $0x40] sm:$0xff]
        %v2763 = vld [vmem:[#allocation2 + $0x48] sm:$0xff]
        %v2764 = vld [vmem:[#allocation2 + $0x50] sm:$0xff]
        %v2765 = vld [vmem:[#allocation2 + $0x58] sm:$0xff]
        %2778 = vrot.lane.b32.xlu0 %v2754, 110
        %v2779 = vpop.permute.xlu0 %2778
        %2780 = vrot.lane.b32.xlu0 %v2755, 110
        %v2781 = vpop.permute.xlu0 %2780
        %2782 = vrot.lane.b32.xlu0 %v2756, 110
        %v2783 = vpop.permute.xlu0 %2782
        %2784 = vrot.lane.b32.xlu0 %v2757, 110
        %v2785 = vpop.permute.xlu0 %2784
        %2786 = vrot.lane.b32.xlu0 %v2758, 110
        %v2787 = vpop.permute.xlu0 %2786
        %2788 = vrot.lane.b32.xlu0 %v2759, 110
        %v2789 = vpop.permute.xlu0 %2788
        %2790 = vrot.lane.b32.xlu0 %v2760, 110
        %v2791 = vpop.permute.xlu0 %2790
        %2792 = vrot.lane.b32.xlu0 %v2761, 110
        %v2793 = vpop.permute.xlu0 %2792
        %2794 = vrot.lane.b32.xlu0 %v2762, 110
        %v2795 = vpop.permute.xlu0 %2794
        %2796 = vrot.lane.b32.xlu0 %v2763, 110
        %v2797 = vpop.permute.xlu0 %2796
        %2798 = vrot.lane.b32.xlu0 %v2764, 110
        %v2799 = vpop.permute.xlu0 %2798
        %2800 = vrot.lane.b32.xlu0 %v2765, 110
        %v2801 = vpop.permute.xlu0 %2800
        %vm2802 = vcmask 900096
        %v2803 = vsel %vm2802, %v2779, %v2781
        %v2804 = vsel %vm2802, %v2781, %v2783
        %v2805 = vsel %vm2802, %v2785, %v2787
        %v2806 = vsel %vm2802, %v2787, %v2789
        %v2807 = vsel %vm2802, %v2791, %v2793
        %v2808 = vsel %vm2802, %v2793, %v2795
        %v2809 = vsel %vm2802, %v2797, %v2799
        %v2810 = vsel %vm2802, %v2799, %v2801
        %2823 = vst [vmem:[#allocation3 + $0x120] sm:$0xff] %v2803
        %2824 = vst [vmem:[#allocation3 + $0x128] sm:$0xff] %v2804
        %2825 = vst.msk [vmem:[#allocation3 + $0x130] sm:$0xff] %vm2581, %v2783
        %2826 = vst [vmem:[#allocation3 + $0x138] sm:$0xff] %v2805
        %2827 = vst [vmem:[#allocation3 + $0x140] sm:$0xff] %v2806
        %2828 = vst.msk [vmem:[#allocation3 + $0x148] sm:$0xff] %vm2581, %v2789
        %2829 = vst [vmem:[#allocation3 + $0x150] sm:$0xff] %v2807
        %2830 = vst [vmem:[#allocation3 + $0x158] sm:$0xff] %v2808
        %2831 = vst.msk [vmem:[#allocation3 + $0x160] sm:$0xff] %vm2581, %v2795
        %2832 = vst [vmem:[#allocation3 + $0x168] sm:$0xff] %v2809
        %2833 = vst [vmem:[#allocation3 + $0x170] sm:$0xff] %v2810
        %2834 = vst.msk [vmem:[#allocation3 + $0x178] sm:$0xff] %vm2581, %v2801
        %v2835 = vld [vmem:[#allocation2] sm:$0xff]
        %v2836 = vld [vmem:[#allocation2 + $0x8] sm:$0xff]
        %v2837 = vld [vmem:[#allocation2 + $0x10] sm:$0xff]
        %v2838 = vld [vmem:[#allocation2 + $0x18] sm:$0xff]
        %v2839 = vld [vmem:[#allocation2 + $0x20] sm:$0xff]
        %v2840 = vld [vmem:[#allocation2 + $0x28] sm:$0xff]
        %v2841 = vld [vmem:[#allocation2 + $0x30] sm:$0xff]
        %v2842 = vld [vmem:[#allocation2 + $0x38] sm:$0xff]
        %v2843 = vld [vmem:[#allocation2 + $0x40] sm:$0xff]
        %v2844 = vld [vmem:[#allocation2 + $0x48] sm:$0xff]
        %v2845 = vld [vmem:[#allocation2 + $0x50] sm:$0xff]
        %v2846 = vld [vmem:[#allocation2 + $0x58] sm:$0xff]
        %2859 = vrot.lane.b32.xlu0 %v2835, 109
        %v2860 = vpop.permute.xlu0 %2859
        %2861 = vrot.lane.b32.xlu0 %v2836, 109
        %v2862 = vpop.permute.xlu0 %2861
        %2863 = vrot.lane.b32.xlu0 %v2837, 109
        %v2864 = vpop.permute.xlu0 %2863
        %2865 = vrot.lane.b32.xlu0 %v2838, 109
        %v2866 = vpop.permute.xlu0 %2865
        %2867 = vrot.lane.b32.xlu0 %v2839, 109
        %v2868 = vpop.permute.xlu0 %2867
        %2869 = vrot.lane.b32.xlu0 %v2840, 109
        %v2870 = vpop.permute.xlu0 %2869
        %2871 = vrot.lane.b32.xlu0 %v2841, 109
        %v2872 = vpop.permute.xlu0 %2871
        %2873 = vrot.lane.b32.xlu0 %v2842, 109
        %v2874 = vpop.permute.xlu0 %2873
        %2875 = vrot.lane.b32.xlu0 %v2843, 109
        %v2876 = vpop.permute.xlu0 %2875
        %2877 = vrot.lane.b32.xlu0 %v2844, 109
        %v2878 = vpop.permute.xlu0 %2877
        %2879 = vrot.lane.b32.xlu0 %v2845, 109
        %v2880 = vpop.permute.xlu0 %2879
        %2881 = vrot.lane.b32.xlu0 %v2846, 109
        %v2882 = vpop.permute.xlu0 %2881
        %vm2883 = vcmask 891904
        %v2884 = vsel %vm2883, %v2860, %v2862
        %v2885 = vsel %vm2883, %v2862, %v2864
        %v2886 = vsel %vm2883, %v2866, %v2868
        %v2887 = vsel %vm2883, %v2868, %v2870
        %v2888 = vsel %vm2883, %v2872, %v2874
        %v2889 = vsel %vm2883, %v2874, %v2876
        %v2890 = vsel %vm2883, %v2878, %v2880
        %v2891 = vsel %vm2883, %v2880, %v2882
        %2904 = vst [vmem:[#allocation3 + $0x180] sm:$0xff] %v2884
        %2905 = vst [vmem:[#allocation3 + $0x188] sm:$0xff] %v2885
        %2906 = vst.msk [vmem:[#allocation3 + $0x190] sm:$0xff] %vm2581, %v2864
        %2907 = vst [vmem:[#allocation3 + $0x198] sm:$0xff] %v2886
        %2908 = vst [vmem:[#allocation3 + $0x1a0] sm:$0xff] %v2887
        %2909 = vst.msk [vmem:[#allocation3 + $0x1a8] sm:$0xff] %vm2581, %v2870
        %2910 = vst [vmem:[#allocation3 + $0x1b0] sm:$0xff] %v2888
        %2911 = vst [vmem:[#allocation3 + $0x1b8] sm:$0xff] %v2889
        %2912 = vst.msk [vmem:[#allocation3 + $0x1c0] sm:$0xff] %vm2581, %v2876
        %2913 = vst [vmem:[#allocation3 + $0x1c8] sm:$0xff] %v2890
        %2914 = vst [vmem:[#allocation3 + $0x1d0] sm:$0xff] %v2891
        %2915 = vst.msk [vmem:[#allocation3 + $0x1d8] sm:$0xff] %vm2581, %v2882
        %v2916 = vld [vmem:[#allocation2] sm:$0xff]
        %v2917 = vld [vmem:[#allocation2 + $0x8] sm:$0xff]
        %v2918 = vld [vmem:[#allocation2 + $0x10] sm:$0xff]
        %v2919 = vld [vmem:[#allocation2 + $0x18] sm:$0xff]
        %v2920 = vld [vmem:[#allocation2 + $0x20] sm:$0xff]
        %v2921 = vld [vmem:[#allocation2 + $0x28] sm:$0xff]
        %v2922 = vld [vmem:[#allocation2 + $0x30] sm:$0xff]
        %v2923 = vld [vmem:[#allocation2 + $0x38] sm:$0xff]
        %v2924 = vld [vmem:[#allocation2 + $0x40] sm:$0xff]
        %v2925 = vld [vmem:[#allocation2 + $0x48] sm:$0xff]
        %v2926 = vld [vmem:[#allocation2 + $0x50] sm:$0xff]
        %v2927 = vld [vmem:[#allocation2 + $0x58] sm:$0xff]
        %2940 = vrot.lane.b32.xlu0 %v2916, 108
        %v2941 = vpop.permute.xlu0 %2940
        %2942 = vrot.lane.b32.xlu0 %v2917, 108
        %v2943 = vpop.permute.xlu0 %2942
        %2944 = vrot.lane.b32.xlu0 %v2918, 108
        %v2945 = vpop.permute.xlu0 %2944
        %2946 = vrot.lane.b32.xlu0 %v2919, 108
        %v2947 = vpop.permute.xlu0 %2946
        %2948 = vrot.lane.b32.xlu0 %v2920, 108
        %v2949 = vpop.permute.xlu0 %2948
        %2950 = vrot.lane.b32.xlu0 %v2921, 108
        %v2951 = vpop.permute.xlu0 %2950
        %2952 = vrot.lane.b32.xlu0 %v2922, 108
        %v2953 = vpop.permute.xlu0 %2952
        %2954 = vrot.lane.b32.xlu0 %v2923, 108
        %v2955 = vpop.permute.xlu0 %2954
        %2956 = vrot.lane.b32.xlu0 %v2924, 108
        %v2957 = vpop.permute.xlu0 %2956
        %2958 = vrot.lane.b32.xlu0 %v2925, 108
        %v2959 = vpop.permute.xlu0 %2958
        %2960 = vrot.lane.b32.xlu0 %v2926, 108
        %v2961 = vpop.permute.xlu0 %2960
        %2962 = vrot.lane.b32.xlu0 %v2927, 108
        %v2963 = vpop.permute.xlu0 %2962
        %vm2964 = vcmask 883712
        %v2965 = vsel %vm2964, %v2941, %v2943
        %v2966 = vsel %vm2964, %v2943, %v2945
        %v2967 = vsel %vm2964, %v2947, %v2949
        %v2968 = vsel %vm2964, %v2949, %v2951
        %v2969 = vsel %vm2964, %v2953, %v2955
        %v2970 = vsel %vm2964, %v2955, %v2957
        %v2971 = vsel %vm2964, %v2959, %v2961
        %v2972 = vsel %vm2964, %v2961, %v2963
        %2985 = vst [vmem:[#allocation3 + $0x1e0] sm:$0xff] %v2965
        %2986 = vst [vmem:[#allocation3 + $0x1e8] sm:$0xff] %v2966
        %2987 = vst.msk [vmem:[#allocation3 + $0x1f0] sm:$0xff] %vm2581, %v2945
        %2988 = vst [vmem:[#allocation3 + $0x1f8] sm:$0xff] %v2967
        %2989 = vst [vmem:[#allocation3 + $0x200] sm:$0xff] %v2968
        %2990 = vst.msk [vmem:[#allocation3 + $0x208] sm:$0xff] %vm2581, %v2951
        %2991 = vst [vmem:[#allocation3 + $0x210] sm:$0xff] %v2969
        %2992 = vst [vmem:[#allocation3 + $0x218] sm:$0xff] %v2970
        %2993 = vst.msk [vmem:[#allocation3 + $0x220] sm:$0xff] %vm2581, %v2957
        %2994 = vst [vmem:[#allocation3 + $0x228] sm:$0xff] %v2971
        %2995 = vst [vmem:[#allocation3 + $0x230] sm:$0xff] %v2972
        %2996 = vst.msk [vmem:[#allocation3 + $0x238] sm:$0xff] %vm2581, %v2963
        %v2997 = vld [vmem:[#allocation2] sm:$0xff]
        %v2998 = vld [vmem:[#allocation2 + $0x8] sm:$0xff]
        %v2999 = vld [vmem:[#allocation2 + $0x10] sm:$0xff]
        %v3000 = vld [vmem:[#allocation2 + $0x18] sm:$0xff]
        %v3001 = vld [vmem:[#allocation2 + $0x20] sm:$0xff]
        %v3002 = vld [vmem:[#allocation2 + $0x28] sm:$0xff]
        %v3003 = vld [vmem:[#allocation2 + $0x30] sm:$0xff]
        %v3004 = vld [vmem:[#allocation2 + $0x38] sm:$0xff]
        %v3005 = vld [vmem:[#allocation2 + $0x40] sm:$0xff]
        %v3006 = vld [vmem:[#allocation2 + $0x48] sm:$0xff]
        %v3007 = vld [vmem:[#allocation2 + $0x50] sm:$0xff]
        %v3008 = vld [vmem:[#allocation2 + $0x58] sm:$0xff]
        %3021 = vrot.lane.b32.xlu0 %v2997, 92
        %v3022 = vpop.permute.xlu0 %3021
        %3023 = vrot.lane.b32.xlu0 %v2998, 92
        %v3024 = vpop.permute.xlu0 %3023
        %3025 = vrot.lane.b32.xlu0 %v2999, 92
        %v3026 = vpop.permute.xlu0 %3025
        %3027 = vrot.lane.b32.xlu0 %v3000, 92
        %v3028 = vpop.permute.xlu0 %3027
        %3029 = vrot.lane.b32.xlu0 %v3001, 92
        %v3030 = vpop.permute.xlu0 %3029
        %3031 = vrot.lane.b32.xlu0 %v3002, 92
        %v3032 = vpop.permute.xlu0 %3031
        %3033 = vrot.lane.b32.xlu0 %v3003, 92
        %v3034 = vpop.permute.xlu0 %3033
        %3035 = vrot.lane.b32.xlu0 %v3004, 92
        %v3036 = vpop.permute.xlu0 %3035
        %3037 = vrot.lane.b32.xlu0 %v3005, 92
        %v3038 = vpop.permute.xlu0 %3037
        %3039 = vrot.lane.b32.xlu0 %v3006, 92
        %v3040 = vpop.permute.xlu0 %3039
        %3041 = vrot.lane.b32.xlu0 %v3007, 92
        %v3042 = vpop.permute.xlu0 %3041
        %3043 = vrot.lane.b32.xlu0 %v3008, 92
        %v3044 = vpop.permute.xlu0 %3043
        %vm3045 = vcmask 752640
        %v3046 = vsel %vm3045, %v3022, %v3024
        %v3047 = vsel %vm3045, %v3024, %v3026
        %v3048 = vsel %vm3045, %v3028, %v3030
        %v3049 = vsel %vm3045, %v3030, %v3032
        %v3050 = vsel %vm3045, %v3034, %v3036
        %v3051 = vsel %vm3045, %v3036, %v3038
        %v3052 = vsel %vm3045, %v3040, %v3042
        %v3053 = vsel %vm3045, %v3042, %v3044
        %3066 = vst [vmem:[#allocation3 + $0x240] sm:$0xff] %v3046
        %3067 = vst [vmem:[#allocation3 + $0x248] sm:$0xff] %v3047
        %3068 = vst.msk [vmem:[#allocation3 + $0x250] sm:$0xff] %vm2581, %v3026
        %3069 = vst [vmem:[#allocation3 + $0x258] sm:$0xff] %v3048
        %3070 = vst [vmem:[#allocation3 + $0x260] sm:$0xff] %v3049
        %3071 = vst.msk [vmem:[#allocation3 + $0x268] sm:$0xff] %vm2581, %v3032
        %3072 = vst [vmem:[#allocation3 + $0x270] sm:$0xff] %v3050
        %3073 = vst [vmem:[#allocation3 + $0x278] sm:$0xff] %v3051
        %3074 = vst.msk [vmem:[#allocation3 + $0x280] sm:$0xff] %vm2581, %v3038
        %3075 = vst [vmem:[#allocation3 + $0x288] sm:$0xff] %v3052
        %3076 = vst [vmem:[#allocation3 + $0x290] sm:$0xff] %v3053
        %3077 = vst.msk [vmem:[#allocation3 + $0x298] sm:$0xff] %vm2581, %v3044
        %v3078 = vld [vmem:[#allocation2] sm:$0xff]
        %v3079 = vld [vmem:[#allocation2 + $0x8] sm:$0xff]
        %v3080 = vld [vmem:[#allocation2 + $0x10] sm:$0xff]
        %v3081 = vld [vmem:[#allocation2 + $0x18] sm:$0xff]
        %v3082 = vld [vmem:[#allocation2 + $0x20] sm:$0xff]
        %v3083 = vld [vmem:[#allocation2 + $0x28] sm:$0xff]
        %v3084 = vld [vmem:[#allocation2 + $0x30] sm:$0xff]
        %v3085 = vld [vmem:[#allocation2 + $0x38] sm:$0xff]
        %v3086 = vld [vmem:[#allocation2 + $0x40] sm:$0xff]
        %v3087 = vld [vmem:[#allocation2 + $0x48] sm:$0xff]
        %v3088 = vld [vmem:[#allocation2 + $0x50] sm:$0xff]
        %v3089 = vld [vmem:[#allocation2 + $0x58] sm:$0xff]
        %3102 = vrot.lane.b32.xlu0 %v3078, 91
        %v3103 = vpop.permute.xlu0 %3102
        %3104 = vrot.lane.b32.xlu0 %v3079, 91
        %v3105 = vpop.permute.xlu0 %3104
        %3106 = vrot.lane.b32.xlu0 %v3080, 91
        %v3107 = vpop.permute.xlu0 %3106
        %3108 = vrot.lane.b32.xlu0 %v3081, 91
        %v3109 = vpop.permute.xlu0 %3108
        %3110 = vrot.lane.b32.xlu0 %v3082, 91
        %v3111 = vpop.permute.xlu0 %3110
        %3112 = vrot.lane.b32.xlu0 %v3083, 91
        %v3113 = vpop.permute.xlu0 %3112
        %3114 = vrot.lane.b32.xlu0 %v3084, 91
        %v3115 = vpop.permute.xlu0 %3114
        %3116 = vrot.lane.b32.xlu0 %v3085, 91
        %v3117 = vpop.permute.xlu0 %3116
        %3118 = vrot.lane.b32.xlu0 %v3086, 91
        %v3119 = vpop.permute.xlu0 %3118
        %3120 = vrot.lane.b32.xlu0 %v3087, 91
        %v3121 = vpop.permute.xlu0 %3120
        %3122 = vrot.lane.b32.xlu0 %v3088, 91
        %v3123 = vpop.permute.xlu0 %3122
        %3124 = vrot.lane.b32.xlu0 %v3089, 91
        %v3125 = vpop.permute.xlu0 %3124
        %vm3126 = vcmask 744448
        %v3127 = vsel %vm3126, %v3103, %v3105
        %v3128 = vsel %vm3126, %v3105, %v3107
        %v3129 = vsel %vm3126, %v3109, %v3111
        %v3130 = vsel %vm3126, %v3111, %v3113
        %v3131 = vsel %vm3126, %v3115, %v3117
        %v3132 = vsel %vm3126, %v3117, %v3119
        %v3133 = vsel %vm3126, %v3121, %v3123
        %v3134 = vsel %vm3126, %v3123, %v3125
        %3147 = vst [vmem:[#allocation3 + $0x2a0] sm:$0xff] %v3127
        %3148 = vst [vmem:[#allocation3 + $0x2a8] sm:$0xff] %v3128
        %3149 = vst.msk [vmem:[#allocation3 + $0x2b0] sm:$0xff] %vm2581, %v3107
        %3150 = vst [vmem:[#allocation3 + $0x2b8] sm:$0xff] %v3129
        %3151 = vst [vmem:[#allocation3 + $0x2c0] sm:$0xff] %v3130
        %3152 = vst.msk [vmem:[#allocation3 + $0x2c8] sm:$0xff] %vm2581, %v3113
        %3153 = vst [vmem:[#allocation3 + $0x2d0] sm:$0xff] %v3131
        %3154 = vst [vmem:[#allocation3 + $0x2d8] sm:$0xff] %v3132
        %3155 = vst.msk [vmem:[#allocation3 + $0x2e0] sm:$0xff] %vm2581, %v3119
        %3156 = vst [vmem:[#allocation3 + $0x2e8] sm:$0xff] %v3133
        %3157 = vst [vmem:[#allocation3 + $0x2f0] sm:$0xff] %v3134
        %3158 = vst.msk [vmem:[#allocation3 + $0x2f8] sm:$0xff] %vm2581, %v3125
        %v3159 = vld [vmem:[#allocation2] sm:$0xff]
        %v3160 = vld [vmem:[#allocation2 + $0x8] sm:$0xff]
        %v3161 = vld [vmem:[#allocation2 + $0x10] sm:$0xff]
        %v3162 = vld [vmem:[#allocation2 + $0x18] sm:$0xff]
        %v3163 = vld [vmem:[#allocation2 + $0x20] sm:$0xff]
        %v3164 = vld [vmem:[#allocation2 + $0x28] sm:$0xff]
        %v3165 = vld [vmem:[#allocation2 + $0x30] sm:$0xff]
        %v3166 = vld [vmem:[#allocation2 + $0x38] sm:$0xff]
        %v3167 = vld [vmem:[#allocation2 + $0x40] sm:$0xff]
        %v3168 = vld [vmem:[#allocation2 + $0x48] sm:$0xff]
        %v3169 = vld [vmem:[#allocation2 + $0x50] sm:$0xff]
        %v3170 = vld [vmem:[#allocation2 + $0x58] sm:$0xff]
        %3183 = vrot.lane.b32.xlu0 %v3159, 90
        %v3184 = vpop.permute.xlu0 %3183
        %3185 = vrot.lane.b32.xlu0 %v3160, 90
        %v3186 = vpop.permute.xlu0 %3185
        %3187 = vrot.lane.b32.xlu0 %v3161, 90
        %v3188 = vpop.permute.xlu0 %3187
        %3189 = vrot.lane.b32.xlu0 %v3162, 90
        %v3190 = vpop.permute.xlu0 %3189
        %3191 = vrot.lane.b32.xlu0 %v3163, 90
        %v3192 = vpop.permute.xlu0 %3191
        %3193 = vrot.lane.b32.xlu0 %v3164, 90
        %v3194 = vpop.permute.xlu0 %3193
        %3195 = vrot.lane.b32.xlu0 %v3165, 90
        %v3196 = vpop.permute.xlu0 %3195
        %3197 = vrot.lane.b32.xlu0 %v3166, 90
        %v3198 = vpop.permute.xlu0 %3197
        %3199 = vrot.lane.b32.xlu0 %v3167, 90
        %v3200 = vpop.permute.xlu0 %3199
        %3201 = vrot.lane.b32.xlu0 %v3168, 90
        %v3202 = vpop.permute.xlu0 %3201
        %3203 = vrot.lane.b32.xlu0 %v3169, 90
        %v3204 = vpop.permute.xlu0 %3203
        %3205 = vrot.lane.b32.xlu0 %v3170, 90
        %v3206 = vpop.permute.xlu0 %3205
        %vm3207 = vcmask 736256
        %v3208 = vsel %vm3207, %v3184, %v3186
        %v3209 = vsel %vm3207, %v3186, %v3188
        %v3210 = vsel %vm3207, %v3190, %v3192
        %v3211 = vsel %vm3207, %v3192, %v3194
        %v3212 = vsel %vm3207, %v3196, %v3198
        %v3213 = vsel %vm3207, %v3198, %v3200
        %v3214 = vsel %vm3207, %v3202, %v3204
        %v3215 = vsel %vm3207, %v3204, %v3206
        %3228 = vst [vmem:[#allocation3 + $0x300] sm:$0xff] %v3208
        %3229 = vst [vmem:[#allocation3 + $0x308] sm:$0xff] %v3209
        %3230 = vst.msk [vmem:[#allocation3 + $0x310] sm:$0xff] %vm2581, %v3188
        %3231 = vst [vmem:[#allocation3 + $0x318] sm:$0xff] %v3210
        %3232 = vst [vmem:[#allocation3 + $0x320] sm:$0xff] %v3211
        %3233 = vst.msk [vmem:[#allocation3 + $0x328] sm:$0xff] %vm2581, %v3194
        %3234 = vst [vmem:[#allocation3 + $0x330] sm:$0xff] %v3212
        %3235 = vst [vmem:[#allocation3 + $0x338] sm:$0xff] %v3213
        %3236 = vst.msk [vmem:[#allocation3 + $0x340] sm:$0xff] %vm2581, %v3200
        %3237 = vst [vmem:[#allocation3 + $0x348] sm:$0xff] %v3214
        %3238 = vst [vmem:[#allocation3 + $0x350] sm:$0xff] %v3215
        %3239 = vst.msk [vmem:[#allocation3 + $0x358] sm:$0xff] %vm2581, %v3206
        %v3240 = vld [vmem:[%s7] sm:$0xff]
        %v3241 = vld [vmem:[%s7 + $0x8] sm:$0xff]
        %v3242 = vld [vmem:[%s7 + $0x10] sm:$0xf]
        %v3243 = vld [vmem:[%s7 + $0x14] sm:$0xff]
        %v3244 = vld [vmem:[%s7 + $0x1c] sm:$0xff]
        %v3245 = vld [vmem:[%s7 + $0x24] sm:$0xf]
        %v3246 = vld [vmem:[%s7 + $0x28] sm:$0xff]
        %v3247 = vld [vmem:[%s7 + $0x30] sm:$0xff]
        %v3248 = vld [vmem:[%s7 + $0x38] sm:$0xf]
        %v3249 = vld [vmem:[%s7 + $0x3c] sm:$0xff]
        %v3250 = vld [vmem:[%s7 + $0x44] sm:$0xff]
        %v3251 = vld [vmem:[%s7 + $0x4c] sm:$0xf]
        %v3252 = vld [vmem:[%s7 + $0x50] sm:$0xff]
        %v3253 = vld [vmem:[%s7 + $0x58] sm:$0xff]
        %v3254 = vld [vmem:[%s7 + $0x60] sm:$0xf]
        %v3255 = vld [vmem:[%s7 + $0x64] sm:$0xff]
        %v3256 = vld [vmem:[%s7 + $0x6c] sm:$0xff]
        %v3257 = vld [vmem:[%s7 + $0x74] sm:$0xf]
        %v3258 = vld [vmem:[%s7 + $0x78] sm:$0xff]
        %v3259 = vld [vmem:[%s7 + $0x80] sm:$0xff]
        %v3260 = vld [vmem:[%s7 + $0x88] sm:$0xf]
        %v3261 = vld [vmem:[%s7 + $0x8c] sm:$0xff]
        %v3262 = vld [vmem:[%s7 + $0x94] sm:$0xff]
        %v3263 = vld [vmem:[%s7 + $0x9c] sm:$0xf]
        %v3264 = vld [vmem:[#allocation3] sm:$0xff]
        %v3265 = vld [vmem:[#allocation3 + $0x8] sm:$0xff]
        %v3266 = vld [vmem:[#allocation3 + $0x10] sm:$0xff]
        %v3267 = vld [vmem:[#allocation3 + $0x18] sm:$0xff]
        %v3268 = vld [vmem:[#allocation3 + $0x20] sm:$0xff]
        %v3269 = vld [vmem:[#allocation3 + $0x28] sm:$0xff]
        %v3270 = vld [vmem:[#allocation3 + $0x30] sm:$0xff]
        %v3271 = vld [vmem:[#allocation3 + $0x38] sm:$0xff]
        %v3272 = vld [vmem:[#allocation3 + $0x40] sm:$0xff]
        %v3273 = vld [vmem:[#allocation3 + $0x48] sm:$0xff]
        %v3274 = vld [vmem:[#allocation3 + $0x50] sm:$0xff]
        %v3275 = vld [vmem:[#allocation3 + $0x58] sm:$0xff]
        %v3276 = vld [vmem:[#allocation3 + $0x60] sm:$0xff]
        %v3277 = vld [vmem:[#allocation3 + $0x68] sm:$0xff]
        %v3278 = vld [vmem:[#allocation3 + $0x70] sm:$0xff]
        %v3279 = vld [vmem:[#allocation3 + $0x78] sm:$0xff]
        %v3280 = vld [vmem:[#allocation3 + $0x80] sm:$0xff]
        %v3281 = vld [vmem:[#allocation3 + $0x88] sm:$0xff]
        %v3282 = vld [vmem:[#allocation3 + $0x90] sm:$0xff]
        %v3283 = vld [vmem:[#allocation3 + $0x98] sm:$0xff]
        %v3284 = vld [vmem:[#allocation3 + $0xa0] sm:$0xff]
        %v3285 = vld [vmem:[#allocation3 + $0xa8] sm:$0xff]
        %v3286 = vld [vmem:[#allocation3 + $0xb0] sm:$0xff]
        %v3287 = vld [vmem:[#allocation3 + $0xb8] sm:$0xff]
        %v3288 = vld [vmem:[#allocation3 + $0xc0] sm:$0xff]
        %v3289 = vld [vmem:[#allocation3 + $0xc8] sm:$0xff]
        %v3290 = vld [vmem:[#allocation3 + $0xd0] sm:$0xff]
        %v3291 = vld [vmem:[#allocation3 + $0xd8] sm:$0xff]
        %v3292 = vld [vmem:[#allocation3 + $0xe0] sm:$0xff]
        %v3293 = vld [vmem:[#allocation3 + $0xe8] sm:$0xff]
        %v3294 = vld [vmem:[#allocation3 + $0xf0] sm:$0xff]
        %v3295 = vld [vmem:[#allocation3 + $0xf8] sm:$0xff]
        %v3296 = vld [vmem:[#allocation3 + $0x100] sm:$0xff]
        %v3297 = vld [vmem:[#allocation3 + $0x108] sm:$0xff]
        %v3298 = vld [vmem:[#allocation3 + $0x110] sm:$0xff]
        %v3299 = vld [vmem:[#allocation3 + $0x118] sm:$0xff]
        %v3300 = vld [vmem:[#allocation3 + $0x120] sm:$0xff]
        %v3301 = vld [vmem:[#allocation3 + $0x128] sm:$0xff]
        %v3302 = vld [vmem:[#allocation3 + $0x130] sm:$0xff]
        %v3303 = vld [vmem:[#allocation3 + $0x138] sm:$0xff]
        %v3304 = vld [vmem:[#allocation3 + $0x140] sm:$0xff]
        %v3305 = vld [vmem:[#allocation3 + $0x148] sm:$0xff]
        %v3306 = vld [vmem:[#allocation3 + $0x150] sm:$0xff]
        %v3307 = vld [vmem:[#allocation3 + $0x158] sm:$0xff]
        %v3308 = vld [vmem:[#allocation3 + $0x160] sm:$0xff]
        %v3309 = vld [vmem:[#allocation3 + $0x168] sm:$0xff]
        %v3310 = vld [vmem:[#allocation3 + $0x170] sm:$0xff]
        %v3311 = vld [vmem:[#allocation3 + $0x178] sm:$0xff]
        %v3312 = vld [vmem:[#allocation3 + $0x180] sm:$0xff]
        %v3313 = vld [vmem:[#allocation3 + $0x188] sm:$0xff]
        %v3314 = vld [vmem:[#allocation3 + $0x190] sm:$0xff]
        %v3315 = vld [vmem:[#allocation3 + $0x198] sm:$0xff]
        %v3316 = vld [vmem:[#allocation3 + $0x1a0] sm:$0xff]
        %v3317 = vld [vmem:[#allocation3 + $0x1a8] sm:$0xff]
        %v3318 = vld [vmem:[#allocation3 + $0x1b0] sm:$0xff]
        %v3319 = vld [vmem:[#allocation3 + $0x1b8] sm:$0xff]
        %v3320 = vld [vmem:[#allocation3 + $0x1c0] sm:$0xff]
        %v3321 = vld [vmem:[#allocation3 + $0x1c8] sm:$0xff]
        %v3322 = vld [vmem:[#allocation3 + $0x1d0] sm:$0xff]
        %v3323 = vld [vmem:[#allocation3 + $0x1d8] sm:$0xff]
        %v3324 = vld [vmem:[#allocation3 + $0x1e0] sm:$0xff]
        %v3325 = vld [vmem:[#allocation3 + $0x1e8] sm:$0xff]
        %v3326 = vld [vmem:[#allocation3 + $0x1f0] sm:$0xff]
        %v3327 = vld [vmem:[#allocation3 + $0x1f8] sm:$0xff]
        %v3328 = vld [vmem:[#allocation3 + $0x200] sm:$0xff]
        %v3329 = vld [vmem:[#allocation3 + $0x208] sm:$0xff]
        %v3330 = vld [vmem:[#allocation3 + $0x210] sm:$0xff]
        %v3331 = vld [vmem:[#allocation3 + $0x218] sm:$0xff]
        %v3332 = vld [vmem:[#allocation3 + $0x220] sm:$0xff]
        %v3333 = vld [vmem:[#allocation3 + $0x228] sm:$0xff]
        %v3334 = vld [vmem:[#allocation3 + $0x230] sm:$0xff]
        %v3335 = vld [vmem:[#allocation3 + $0x238] sm:$0xff]
        %v3336 = vld [vmem:[#allocation3 + $0x240] sm:$0xff]
        %v3337 = vld [vmem:[#allocation3 + $0x248] sm:$0xff]
        %v3338 = vld [vmem:[#allocation3 + $0x250] sm:$0xff]
        %v3339 = vld [vmem:[#allocation3 + $0x258] sm:$0xff]
        %v3340 = vld [vmem:[#allocation3 + $0x260] sm:$0xff]
        %v3341 = vld [vmem:[#allocation3 + $0x268] sm:$0xff]
        %v3342 = vld [vmem:[#allocation3 + $0x270] sm:$0xff]
        %v3343 = vld [vmem:[#allocation3 + $0x278] sm:$0xff]
        %v3344 = vld [vmem:[#allocation3 + $0x280] sm:$0xff]
        %v3345 = vld [vmem:[#allocation3 + $0x288] sm:$0xff]
        %v3346 = vld [vmem:[#allocation3 + $0x290] sm:$0xff]
        %v3347 = vld [vmem:[#allocation3 + $0x298] sm:$0xff]
        %v3348 = vld [vmem:[#allocation3 + $0x2a0] sm:$0xff]
        %v3349 = vld [vmem:[#allocation3 + $0x2a8] sm:$0xff]
        %v3350 = vld [vmem:[#allocation3 + $0x2b0] sm:$0xff]
        %v3351 = vld [vmem:[#allocation3 + $0x2b8] sm:$0xff]
        %v3352 = vld [vmem:[#allocation3 + $0x2c0] sm:$0xff]
        %v3353 = vld [vmem:[#allocation3 + $0x2c8] sm:$0xff]
        %v3354 = vld [vmem:[#allocation3 + $0x2d0] sm:$0xff]
        %v3355 = vld [vmem:[#allocation3 + $0x2d8] sm:$0xff]
        %v3356 = vld [vmem:[#allocation3 + $0x2e0] sm:$0xff]
        %v3357 = vld [vmem:[#allocation3 + $0x2e8] sm:$0xff]
        %v3358 = vld [vmem:[#allocation3 + $0x2f0] sm:$0xff]
        %v3359 = vld [vmem:[#allocation3 + $0x2f8] sm:$0xff]
        %v3360 = vld [vmem:[#allocation3 + $0x300] sm:$0xff]
        %v3361 = vld [vmem:[#allocation3 + $0x308] sm:$0xff]
        %v3362 = vld [vmem:[#allocation3 + $0x310] sm:$0xff]
        %v3363 = vld [vmem:[#allocation3 + $0x318] sm:$0xff]
        %v3364 = vld [vmem:[#allocation3 + $0x320] sm:$0xff]
        %v3365 = vld [vmem:[#allocation3 + $0x328] sm:$0xff]
        %v3366 = vld [vmem:[#allocation3 + $0x330] sm:$0xff]
        %v3367 = vld [vmem:[#allocation3 + $0x338] sm:$0xff]
        %v3368 = vld [vmem:[#allocation3 + $0x340] sm:$0xff]
        %v3369 = vld [vmem:[#allocation3 + $0x348] sm:$0xff]
        %v3370 = vld [vmem:[#allocation3 + $0x350] sm:$0xff]
        %v3371 = vld [vmem:[#allocation3 + $0x358] sm:$0xff]
        %v3396 = vunpack.c.l.b16 %v3240
        %v3397 = vunpack.c.h.b16 %v3240
        %v3398 = vunpack.c.l.b16 %v3241
        %v3399 = vunpack.c.h.b16 %v3241
        %v3400 = vunpack.c.l.b16 %v3242
        %v3401 = vunpack.c.l.b16 %v3243
        %v3402 = vunpack.c.h.b16 %v3243
        %v3403 = vunpack.c.l.b16 %v3244
        %v3404 = vunpack.c.h.b16 %v3244
        %v3405 = vunpack.c.l.b16 %v3245
        %v3406 = vunpack.c.l.b16 %v3246
        %v3407 = vunpack.c.h.b16 %v3246
        %v3408 = vunpack.c.l.b16 %v3247
        %v3409 = vunpack.c.h.b16 %v3247
        %v3410 = vunpack.c.l.b16 %v3248
        %v3411 = vunpack.c.l.b16 %v3249
        %v3412 = vunpack.c.h.b16 %v3249
        %v3413 = vunpack.c.l.b16 %v3250
        %v3414 = vunpack.c.h.b16 %v3250
        %v3415 = vunpack.c.l.b16 %v3251
        %v3416 = vunpack.c.l.b16 %v3252
        %v3417 = vunpack.c.h.b16 %v3252
        %v3418 = vunpack.c.l.b16 %v3253
        %v3419 = vunpack.c.h.b16 %v3253
        %v3420 = vunpack.c.l.b16 %v3254
        %v3421 = vunpack.c.l.b16 %v3255
        %v3422 = vunpack.c.h.b16 %v3255
        %v3423 = vunpack.c.l.b16 %v3256
        %v3424 = vunpack.c.h.b16 %v3256
        %v3425 = vunpack.c.l.b16 %v3257
        %v3426 = vunpack.c.l.b16 %v3258
        %v3427 = vunpack.c.h.b16 %v3258
        %v3428 = vunpack.c.l.b16 %v3259
        %v3429 = vunpack.c.h.b16 %v3259
        %v3430 = vunpack.c.l.b16 %v3260
        %v3431 = vunpack.c.l.b16 %v3261
        %v3432 = vunpack.c.h.b16 %v3261
        %v3433 = vunpack.c.l.b16 %v3262
        %v3434 = vunpack.c.h.b16 %v3262
        %v3435 = vunpack.c.l.b16 %v3263
        %v3436 = vpack.c.b16 %v3401, %v3396
        %v3437 = vpack.c.b16 %v3402, %v3397
        %v3438 = vpack.c.b16 %v3403, %v3398
        %v3439 = vpack.c.b16 %v3404, %v3399
        %v3440 = vpack.c.b16 %v3405, %v3400
        %v3441 = vpack.c.b16 %v3411, %v3406
        %v3442 = vpack.c.b16 %v3412, %v3407
        %v3443 = vpack.c.b16 %v3413, %v3408
        %v3444 = vpack.c.b16 %v3414, %v3409
        %v3445 = vpack.c.b16 %v3415, %v3410
        %v3446 = vpack.c.b16 %v3421, %v3416
        %v3447 = vpack.c.b16 %v3422, %v3417
        %v3448 = vpack.c.b16 %v3423, %v3418
        %v3449 = vpack.c.b16 %v3424, %v3419
        %v3450 = vpack.c.b16 %v3425, %v3420
        %v3451 = vpack.c.b16 %v3431, %v3426
        %v3452 = vpack.c.b16 %v3432, %v3427
        %v3453 = vpack.c.b16 %v3433, %v3428
        %v3454 = vpack.c.b16 %v3434, %v3429
        %v3455 = vpack.c.b16 %v3435, %v3430
        %vm3472 = vcmask 523264
        %v3474 = vsel %vm3472, %v3440, 0
        %v3477 = vsel %vm3472, %v3445, 0
        %v3480 = vsel %vm3472, %v3450, 0
        %v3483 = vsel %vm3472, %v3455, 0
        %3485 = vmatprep.subr.bf16.mxu0 %v3265
        %3486 = vmatpush1.bf16.msra.mxu0 %v3264
        %3487 = vmatprep.subr.bf16.mxu0 %v3268
        %3488 = vmatpush1.bf16.msra.mxu0 %v3267
        %3489 = vmatprep.subr.bf16.mxu0 %v3271
        %3490 = vmatpush1.bf16.msra.mxu0 %v3270
        %3491 = vmatprep.subr.bf16.mxu0 %v3274
        %3492 = vmatpush1.bf16.msra.mxu0 %v3273
        %3493 = vmatprep.subr.bf16.mxu0 %v3277
        %3494 = vmatpush1.bf16.msra.mxu0 %v3276
        %3495 = vmatprep.subr.bf16.mxu0 %v3280
        %3496 = vmatpush1.bf16.msra.mxu0 %v3279
        %3497 = vmatprep.subr.bf16.mxu0 %v3283
        %3498 = vmatpush1.bf16.msra.mxu0 %v3282
        %3499 = vmatprep.subr.bf16.mxu0 %v3286
        %3500 = vmatpush1.bf16.msra.mxu0 %v3285
        %3501 = vmatprep.subr.bf16.mxu0 %v3289
        %3502 = vmatpush1.bf16.msra.mxu0 %v3288
        %3503 = vmatprep.subr.bf16.mxu0 %v3292
        %3504 = vmatpush1.bf16.msra.mxu0 %v3291
        %3505 = vmatprep.subr.bf16.mxu0 %v3295
        %3506 = vmatpush1.bf16.msra.mxu0 %v3294
        %3507 = vmatprep.subr.bf16.mxu0 %v3298
        %3508 = vmatpush1.bf16.msra.mxu0 %v3297
        %3509 = vmatprep.subr.bf16.mxu0 %v3301
        %3510 = vmatpush1.bf16.msra.mxu0 %v3300
        %3511 = vmatprep.subr.bf16.mxu0 %v3304
        %3512 = vmatpush1.bf16.msra.mxu0 %v3303
        %3513 = vmatprep.subr.bf16.mxu0 %v3307
        %3514 = vmatpush1.bf16.msra.mxu0 %v3306
        %3515 = vmatprep.subr.bf16.mxu0 %v3310
        %3516 = vmatpush1.bf16.msra.mxu0 %v3309
        %3517 = vmatprep.mubr.bf16.mxu0 %v3437
        %3518 = vmatmul.mubr.bf16.gmra.mrb[0].mxu0 %v3436
        %v3519 = vpop.f32.mrb[0].mxu0
        %v3520 = vadd.f32 0.0, %v3519
        %v3521 = vpop.f32.mrb[0].mxu0
        %v3522 = vadd.f32 0.0, %v3521
        %v3523 = vpop.f32.mrb[0].mxu0
        %v3524 = vadd.f32 0.0, %v3523
        %v3525 = vpop.f32.mrb[0].mxu0
        %v3526 = vadd.f32 0.0, %v3525
        %3527 = vmatprep.mubr.bf16.mxu0 %v3442
        %3528 = vmatmul.mubr.bf16.gmra.mrb[0].mxu0 %v3441
        %v3529 = vpop.f32.mrb[0].mxu0
        %v3530 = vadd.f32 0.0, %v3529
        %v3531 = vpop.f32.mrb[0].mxu0
        %v3532 = vadd.f32 0.0, %v3531
        %v3533 = vpop.f32.mrb[0].mxu0
        %v3534 = vadd.f32 0.0, %v3533
        %v3535 = vpop.f32.mrb[0].mxu0
        %v3536 = vadd.f32 0.0, %v3535
        %3537 = vmatprep.mubr.bf16.mxu0 %v3447
        %3538 = vmatmul.mubr.bf16.gmra.mrb[0].mxu0 %v3446
        %v3539 = vpop.f32.mrb[0].mxu0
        %v3540 = vadd.f32 0.0, %v3539
        %v3541 = vpop.f32.mrb[0].mxu0
        %v3542 = vadd.f32 0.0, %v3541
        %v3543 = vpop.f32.mrb[0].mxu0
        %v3544 = vadd.f32 0.0, %v3543
        %v3545 = vpop.f32.mrb[0].mxu0
        %v3546 = vadd.f32 0.0, %v3545
        %3547 = vmatprep.mubr.bf16.mxu0 %v3452
        %3548 = vmatmul.mubr.bf16.gmra.mrb[0].mxu0 %v3451
        %v3549 = vpop.f32.mrb[0].mxu0
        %v3550 = vadd.f32 0.0, %v3549
        %v3551 = vpop.f32.mrb[0].mxu0
        %v3552 = vadd.f32 0.0, %v3551
        %v3553 = vpop.f32.mrb[0].mxu0
        %v3554 = vadd.f32 0.0, %v3553
        %v3555 = vpop.f32.mrb[0].mxu0
        %v3556 = vadd.f32 0.0, %v3555
        %3557 = vdwg.mxu0
        %3558 = vmatprep.subr.bf16.mxu0 %v3313
        %3559 = vmatpush1.bf16.msra.mxu0 %v3312
        %3560 = vmatprep.subr.bf16.mxu0 %v3316
        %3561 = vmatpush1.bf16.msra.mxu0 %v3315
        %3562 = vmatprep.subr.bf16.mxu0 %v3319
        %3563 = vmatpush1.bf16.msra.mxu0 %v3318
        %3564 = vmatprep.subr.bf16.mxu0 %v3322
        %3565 = vmatpush1.bf16.msra.mxu0 %v3321
        %3566 = vmatprep.subr.bf16.mxu0 %v3325
        %3567 = vmatpush1.bf16.msra.mxu0 %v3324
        %3568 = vmatprep.subr.bf16.mxu0 %v3328
        %3569 = vmatpush1.bf16.msra.mxu0 %v3327
        %3570 = vmatprep.subr.bf16.mxu0 %v3331
        %3571 = vmatpush1.bf16.msra.mxu0 %v3330
        %3572 = vmatprep.subr.bf16.mxu0 %v3334
        %3573 = vmatpush1.bf16.msra.mxu0 %v3333
        %3574 = vmatprep.subr.bf16.mxu0 %v3337
        %3575 = vmatpush1.bf16.msra.mxu0 %v3336
        %3576 = vmatprep.subr.bf16.mxu0 %v3340
        %3577 = vmatpush1.bf16.msra.mxu0 %v3339
        %3578 = vmatprep.subr.bf16.mxu0 %v3343
        %3579 = vmatpush1.bf16.msra.mxu0 %v3342
        %3580 = vmatprep.subr.bf16.mxu0 %v3346
        %3581 = vmatpush1.bf16.msra.mxu0 %v3345
        %3582 = vmatprep.subr.bf16.mxu0 %v3349
        %3583 = vmatpush1.bf16.msra.mxu0 %v3348
        %3584 = vmatprep.subr.bf16.mxu0 %v3352
        %3585 = vmatpush1.bf16.msra.mxu0 %v3351
        %3586 = vmatprep.subr.bf16.mxu0 %v3355
        %3587 = vmatpush1.bf16.msra.mxu0 %v3354
        %3588 = vmatprep.subr.bf16.mxu0 %v3358
        %3589 = vmatpush1.bf16.msra.mxu0 %v3357
        %3590 = vmatprep.mubr.bf16.mxu0 %v3439
        %3591 = vmatmul.mubr.bf16.gmra.mrb[0].mxu0 %v3438
        %v3592 = vpop.f32.mrb[0].mxu0
        %v3593 = vadd.f32 %v3520, %v3592
        %v3594 = vpop.f32.mrb[0].mxu0
        %v3595 = vadd.f32 %v3522, %v3594
        %v3596 = vpop.f32.mrb[0].mxu0
        %v3597 = vadd.f32 %v3524, %v3596
        %v3598 = vpop.f32.mrb[0].mxu0
        %v3599 = vadd.f32 %v3526, %v3598
        %3600 = vmatprep.mubr.bf16.mxu0 %v3444
        %3601 = vmatmul.mubr.bf16.gmra.mrb[0].mxu0 %v3443
        %v3602 = vpop.f32.mrb[0].mxu0
        %v3603 = vadd.f32 %v3530, %v3602
        %v3604 = vpop.f32.mrb[0].mxu0
        %v3605 = vadd.f32 %v3532, %v3604
        %v3606 = vpop.f32.mrb[0].mxu0
        %v3607 = vadd.f32 %v3534, %v3606
        %v3608 = vpop.f32.mrb[0].mxu0
        %v3609 = vadd.f32 %v3536, %v3608
        %3610 = vmatprep.mubr.bf16.mxu0 %v3449
        %3611 = vmatmul.mubr.bf16.gmra.mrb[0].mxu0 %v3448
        %v3612 = vpop.f32.mrb[0].mxu0
        %v3613 = vadd.f32 %v3540, %v3612
        %v3614 = vpop.f32.mrb[0].mxu0
        %v3615 = vadd.f32 %v3542, %v3614
        %v3616 = vpop.f32.mrb[0].mxu0
        %v3617 = vadd.f32 %v3544, %v3616
        %v3618 = vpop.f32.mrb[0].mxu0
        %v3619 = vadd.f32 %v3546, %v3618
        %3620 = vmatprep.mubr.bf16.mxu0 %v3454
        %3621 = vmatmul.mubr.bf16.gmra.mrb[0].mxu0 %v3453
        %v3622 = vpop.f32.mrb[0].mxu0
        %v3623 = vadd.f32 %v3550, %v3622
        %v3624 = vpop.f32.mrb[0].mxu0
        %v3625 = vadd.f32 %v3552, %v3624
        %v3626 = vpop.f32.mrb[0].mxu0
        %v3627 = vadd.f32 %v3554, %v3626
        %v3628 = vpop.f32.mrb[0].mxu0
        %v3629 = vadd.f32 %v3556, %v3628
        %3630 = vdwg.mxu0
        %3631 = vmatprep.subr.bf16.mxu0 %v3361
        %3632 = vmatpush1.bf16.msra.mxu0 %v3360
        %3633 = vmatprep.subr.bf16.mxu0 %v3364
        %3634 = vmatpush1.bf16.msra.mxu0 %v3363
        %3635 = vmatprep.subr.bf16.mxu0 %v3367
        %3636 = vmatpush1.bf16.msra.mxu0 %v3366
        %3637 = vmatprep.subr.bf16.mxu0 %v3370
        %3638 = vmatpush1.bf16.msra.mxu0 %v3369
        %3639 = vmatprep.subr.bf16.mxu0 0
        %3640 = vmatpush1.bf16.msra.mxu0 0
        %3641 = vmatprep.subr.bf16.mxu0 0
        %3642 = vmatpush1.bf16.msra.mxu0 0
        %3643 = vmatprep.subr.bf16.mxu0 0
        %3644 = vmatpush1.bf16.msra.mxu0 0
        %3645 = vmatprep.subr.bf16.mxu0 0
        %3646 = vmatpush1.bf16.msra.mxu0 0
        %3647 = vmatprep.subr.bf16.mxu0 0
        %3648 = vmatpush1.bf16.msra.mxu0 0
        %3649 = vmatprep.subr.bf16.mxu0 0
        %3650 = vmatpush1.bf16.msra.mxu0 0
        %3651 = vmatprep.subr.bf16.mxu0 0
        %3652 = vmatpush1.bf16.msra.mxu0 0
        %3653 = vmatprep.subr.bf16.mxu0 0
        %3654 = vmatpush1.bf16.msra.mxu0 0
        %3655 = vmatprep.subr.bf16.mxu0 0
        %3656 = vmatpush1.bf16.msra.mxu0 0
        %3657 = vmatprep.subr.bf16.mxu0 0
        %3658 = vmatpush1.bf16.msra.mxu0 0
        %3659 = vmatprep.subr.bf16.mxu0 0
        %3660 = vmatpush1.bf16.msra.mxu0 0
        %3661 = vmatprep.subr.bf16.mxu0 0
        %3662 = vmatpush1.bf16.msra.mxu0 0
        %3663 = vmatprep.mubr.bf16.mxu0 0
        %3664 = vmatmul.mubr.bf16.gmra.mrb[0].mxu0 %v3474
        %v3665 = vpop.f32.mrb[0].mxu0
        %v3666 = vadd.f32 %v3593, %v3665
        %v3667 = vpop.f32.mrb[0].mxu0
        %v3668 = vadd.f32 %v3595, %v3667
        %v3669 = vpop.f32.mrb[0].mxu0
        %v3670 = vadd.f32 %v3597, %v3669
        %v3671 = vpop.f32.mrb[0].mxu0
        %v3672 = vadd.f32 %v3599, %v3671
        %3673 = vmatprep.mubr.bf16.mxu0 0
        %3674 = vmatmul.mubr.bf16.gmra.mrb[0].mxu0 %v3477
        %v3675 = vpop.f32.mrb[0].mxu0
        %v3676 = vadd.f32 %v3603, %v3675
        %v3677 = vpop.f32.mrb[0].mxu0
        %v3678 = vadd.f32 %v3605, %v3677
        %v3679 = vpop.f32.mrb[0].mxu0
        %v3680 = vadd.f32 %v3607, %v3679
        %v3681 = vpop.f32.mrb[0].mxu0
        %v3682 = vadd.f32 %v3609, %v3681
        %3683 = vmatprep.mubr.bf16.mxu0 0
        %3684 = vmatmul.mubr.bf16.gmra.mrb[0].mxu0 %v3480
        %v3685 = vpop.f32.mrb[0].mxu0
        %v3686 = vadd.f32 %v3613, %v3685
        %v3687 = vpop.f32.mrb[0].mxu0
        %v3688 = vadd.f32 %v3615, %v3687
        %v3689 = vpop.f32.mrb[0].mxu0
        %v3690 = vadd.f32 %v3617, %v3689
        %v3691 = vpop.f32.mrb[0].mxu0
        %v3692 = vadd.f32 %v3619, %v3691
        %3693 = vmatprep.mubr.bf16.mxu0 0
        %3694 = vmatmul.mubr.bf16.gmra.mrb[0].mxu0 %v3483
        %v3695 = vpop.f32.mrb[0].mxu0
        %v3696 = vadd.f32 %v3623, %v3695
        %v3697 = vpop.f32.mrb[0].mxu0
        %v3698 = vadd.f32 %v3625, %v3697
        %v3699 = vpop.f32.mrb[0].mxu0
        %v3700 = vadd.f32 %v3627, %v3699
        %v3701 = vpop.f32.mrb[0].mxu0
        %v3702 = vadd.f32 %v3629, %v3701
        %3703 = vdwg.mxu0
        %3704 = vmatprep.subr.bf16.mxu0 0
        %3705 = vmatpush1.bf16.msra.mxu0 %v3266
        %3706 = vmatprep.subr.bf16.mxu0 0
        %3707 = vmatpush1.bf16.msra.mxu0 %v3269
        %3708 = vmatprep.subr.bf16.mxu0 0
        %3709 = vmatpush1.bf16.msra.mxu0 %v3272
        %3710 = vmatprep.subr.bf16.mxu0 0
        %3711 = vmatpush1.bf16.msra.mxu0 %v3275
        %3712 = vmatprep.subr.bf16.mxu0 0
        %3713 = vmatpush1.bf16.msra.mxu0 %v3278
        %3714 = vmatprep.subr.bf16.mxu0 0
        %3715 = vmatpush1.bf16.msra.mxu0 %v3281
        %3716 = vmatprep.subr.bf16.mxu0 0
        %3717 = vmatpush1.bf16.msra.mxu0 %v3284
        %3718 = vmatprep.subr.bf16.mxu0 0
        %3719 = vmatpush1.bf16.msra.mxu0 %v3287
        %3720 = vmatprep.subr.bf16.mxu0 0
        %3721 = vmatpush1.bf16.msra.mxu0 %v3290
        %3722 = vmatprep.subr.bf16.mxu0 0
        %3723 = vmatpush1.bf16.msra.mxu0 %v3293
        %3724 = vmatprep.subr.bf16.mxu0 0
        %3725 = vmatpush1.bf16.msra.mxu0 %v3296
        %3726 = vmatprep.subr.bf16.mxu0 0
        %3727 = vmatpush1.bf16.msra.mxu0 %v3299
        %3728 = vmatprep.subr.bf16.mxu0 0
        %3729 = vmatpush1.bf16.msra.mxu0 %v3302
        %3730 = vmatprep.subr.bf16.mxu0 0
        %3731 = vmatpush1.bf16.msra.mxu0 %v3305
        %3732 = vmatprep.subr.bf16.mxu0 0
        %3733 = vmatpush1.bf16.msra.mxu0 %v3308
        %3734 = vmatprep.subr.bf16.mxu0 0
        %3735 = vmatpush1.bf16.msra.mxu0 %v3311
        %3736 = vmatprep.mubr.bf16.mxu0 %v3437
        %3737 = vmatmul.mubr.bf16.gmra.mrb[0].mxu0 %v3436
        %v3738 = vpop.f32.mrb[0].mxu0
        %v3739 = vadd.f32 0.0, %v3738
        %v3740 = vpop.f32.mrb[0].mxu0
        %v3741 = vpop.f32.mrb[0].mxu0
        %v3742 = vadd.f32 0.0, %v3741
        %v3743 = vpop.f32.mrb[0].mxu0
        %3744 = vmatprep.mubr.bf16.mxu0 %v3442
        %3745 = vmatmul.mubr.bf16.gmra.mrb[0].mxu0 %v3441
        %v3746 = vpop.f32.mrb[0].mxu0
        %v3747 = vadd.f32 0.0, %v3746
        %v3748 = vpop.f32.mrb[0].mxu0
        %v3749 = vpop.f32.mrb[0].mxu0
        %v3750 = vadd.f32 0.0, %v3749
        %v3751 = vpop.f32.mrb[0].mxu0
        %3752 = vmatprep.mubr.bf16.mxu0 %v3447
        %3753 = vmatmul.mubr.bf16.gmra.mrb[0].mxu0 %v3446
        %v3754 = vpop.f32.mrb[0].mxu0
        %v3755 = vadd.f32 0.0, %v3754
        %v3756 = vpop.f32.mrb[0].mxu0
        %v3757 = vpop.f32.mrb[0].mxu0
        %v3758 = vadd.f32 0.0, %v3757
        %v3759 = vpop.f32.mrb[0].mxu0
        %3760 = vmatprep.mubr.bf16.mxu0 %v3452
        %3761 = vmatmul.mubr.bf16.gmra.mrb[0].mxu0 %v3451
        %v3762 = vpop.f32.mrb[0].mxu0
        %v3763 = vadd.f32 0.0, %v3762
        %v3764 = vpop.f32.mrb[0].mxu0
        %v3765 = vpop.f32.mrb[0].mxu0
        %v3766 = vadd.f32 0.0, %v3765
        %v3767 = vpop.f32.mrb[0].mxu0
        %3768 = vdwg.mxu0
        %3769 = vmatprep.subr.bf16.mxu0 0
        %3770 = vmatpush1.bf16.msra.mxu0 %v3314
        %3771 = vmatprep.subr.bf16.mxu0 0
        %3772 = vmatpush1.bf16.msra.mxu0 %v3317
        %3773 = vmatprep.subr.bf16.mxu0 0
        %3774 = vmatpush1.bf16.msra.mxu0 %v3320
        %3775 = vmatprep.subr.bf16.mxu0 0
        %3776 = vmatpush1.bf16.msra.mxu0 %v3323
        %3777 = vmatprep.subr.bf16.mxu0 0
        %3778 = vmatpush1.bf16.msra.mxu0 %v3326
        %3779 = vmatprep.subr.bf16.mxu0 0
        %3780 = vmatpush1.bf16.msra.mxu0 %v3329
        %3781 = vmatprep.subr.bf16.mxu0 0
        %3782 = vmatpush1.bf16.msra.mxu0 %v3332
        %3783 = vmatprep.subr.bf16.mxu0 0
        %3784 = vmatpush1.bf16.msra.mxu0 %v3335
        %3785 = vmatprep.subr.bf16.mxu0 0
        %3786 = vmatpush1.bf16.msra.mxu0 %v3338
        %3787 = vmatprep.subr.bf16.mxu0 0
        %3788 = vmatpush1.bf16.msra.mxu0 %v3341
        %3789 = vmatprep.subr.bf16.mxu0 0
        %3790 = vmatpush1.bf16.msra.mxu0 %v3344
        %3791 = vmatprep.subr.bf16.mxu0 0
        %3792 = vmatpush1.bf16.msra.mxu0 %v3347
        %3793 = vmatprep.subr.bf16.mxu0 0
        %3794 = vmatpush1.bf16.msra.mxu0 %v3350
        %3795 = vmatprep.subr.bf16.mxu0 0
        %3796 = vmatpush1.bf16.msra.mxu0 %v3353
        %3797 = vmatprep.subr.bf16.mxu0 0
        %3798 = vmatpush1.bf16.msra.mxu0 %v3356
        %3799 = vmatprep.subr.bf16.mxu0 0
        %3800 = vmatpush1.bf16.msra.mxu0 %v3359
        %3801 = vmatprep.mubr.bf16.mxu0 %v3439
        %3802 = vmatmul.mubr.bf16.gmra.mrb[0].mxu0 %v3438
        %v3803 = vpop.f32.mrb[0].mxu0
        %v3804 = vadd.f32 %v3739, %v3803
        %v3805 = vpop.f32.mrb[0].mxu0
        %v3806 = vpop.f32.mrb[0].mxu0
        %v3807 = vadd.f32 %v3742, %v3806
        %v3808 = vpop.f32.mrb[0].mxu0
        %3809 = vmatprep.mubr.bf16.mxu0 %v3444
        %3810 = vmatmul.mubr.bf16.gmra.mrb[0].mxu0 %v3443
        %v3811 = vpop.f32.mrb[0].mxu0
        %v3812 = vadd.f32 %v3747, %v3811
        %v3813 = vpop.f32.mrb[0].mxu0
        %v3814 = vpop.f32.mrb[0].mxu0
        %v3815 = vadd.f32 %v3750, %v3814
        %v3816 = vpop.f32.mrb[0].mxu0
        %3817 = vmatprep.mubr.bf16.mxu0 %v3449
        %3818 = vmatmul.mubr.bf16.gmra.mrb[0].mxu0 %v3448
        %v3819 = vpop.f32.mrb[0].mxu0
        %v3820 = vadd.f32 %v3755, %v3819
        %v3821 = vpop.f32.mrb[0].mxu0
        %v3822 = vpop.f32.mrb[0].mxu0
        %v3823 = vadd.f32 %v3758, %v3822
        %v3824 = vpop.f32.mrb[0].mxu0
        %3825 = vmatprep.mubr.bf16.mxu0 %v3454
        %3826 = vmatmul.mubr.bf16.gmra.mrb[0].mxu0 %v3453
        %v3827 = vpop.f32.mrb[0].mxu0
        %v3828 = vadd.f32 %v3763, %v3827
        %v3829 = vpop.f32.mrb[0].mxu0
        %v3830 = vpop.f32.mrb[0].mxu0
        %v3831 = vadd.f32 %v3766, %v3830
        %v3832 = vpop.f32.mrb[0].mxu0
        %3833 = vdwg.mxu0
        %3834 = vmatprep.subr.bf16.mxu0 0
        %3835 = vmatpush1.bf16.msra.mxu0 %v3362
        %3836 = vmatprep.subr.bf16.mxu0 0
        %3837 = vmatpush1.bf16.msra.mxu0 %v3365
        %3838 = vmatprep.subr.bf16.mxu0 0
        %3839 = vmatpush1.bf16.msra.mxu0 %v3368
        %3840 = vmatprep.subr.bf16.mxu0 0
        %3841 = vmatpush1.bf16.msra.mxu0 %v3371
        %3842 = vmatprep.subr.bf16.mxu0 0
        %3843 = vmatpush1.bf16.msra.mxu0 0
        %3844 = vmatprep.subr.bf16.mxu0 0
        %3845 = vmatpush1.bf16.msra.mxu0 0
        %3846 = vmatprep.subr.bf16.mxu0 0
        %3847 = vmatpush1.bf16.msra.mxu0 0
        %3848 = vmatprep.subr.bf16.mxu0 0
        %3849 = vmatpush1.bf16.msra.mxu0 0
        %3850 = vmatprep.subr.bf16.mxu0 0
        %3851 = vmatpush1.bf16.msra.mxu0 0
        %3852 = vmatprep.subr.bf16.mxu0 0
        %3853 = vmatpush1.bf16.msra.mxu0 0
        %3854 = vmatprep.subr.bf16.mxu0 0
        %3855 = vmatpush1.bf16.msra.mxu0 0
        %3856 = vmatprep.subr.bf16.mxu0 0
        %3857 = vmatpush1.bf16.msra.mxu0 0
        %3858 = vmatprep.subr.bf16.mxu0 0
        %3859 = vmatpush1.bf16.msra.mxu0 0
        %3860 = vmatprep.subr.bf16.mxu0 0
        %3861 = vmatpush1.bf16.msra.mxu0 0
        %3862 = vmatprep.subr.bf16.mxu0 0
        %3863 = vmatpush1.bf16.msra.mxu0 0
        %3864 = vmatprep.subr.bf16.mxu0 0
        %3865 = vmatpush1.bf16.msra.mxu0 0
        %3866 = vmatprep.mubr.bf16.mxu0 0
        %3867 = vmatmul.mubr.bf16.gmra.mrb[0].mxu0 %v3474
        %v3868 = vpop.f32.mrb[0].mxu0
        %v3869 = vadd.f32 %v3804, %v3868
        %v3870 = vpop.f32.mrb[0].mxu0
        %v3871 = vpop.f32.mrb[0].mxu0
        %v3872 = vadd.f32 %v3807, %v3871
        %v3873 = vpop.f32.mrb[0].mxu0
        %3874 = vmatprep.mubr.bf16.mxu0 0
        %3875 = vmatmul.mubr.bf16.gmra.mrb[0].mxu0 %v3477
        %v3876 = vpop.f32.mrb[0].mxu0
        %v3877 = vadd.f32 %v3812, %v3876
        %v3878 = vpop.f32.mrb[0].mxu0
        %v3879 = vpop.f32.mrb[0].mxu0
        %v3880 = vadd.f32 %v3815, %v3879
        %v3881 = vpop.f32.mrb[0].mxu0
        %3882 = vmatprep.mubr.bf16.mxu0 0
        %3883 = vmatmul.mubr.bf16.gmra.mrb[0].mxu0 %v3480
        %v3884 = vpop.f32.mrb[0].mxu0
        %v3885 = vadd.f32 %v3820, %v3884
        %v3886 = vpop.f32.mrb[0].mxu0
        %v3887 = vpop.f32.mrb[0].mxu0
        %v3888 = vadd.f32 %v3823, %v3887
        %v3889 = vpop.f32.mrb[0].mxu0
        %3890 = vmatprep.mubr.bf16.mxu0 0
        %3891 = vmatmul.mubr.bf16.gmra.mrb[0].mxu0 %v3483
        %v3892 = vpop.f32.mrb[0].mxu0
        %v3893 = vadd.f32 %v3828, %v3892
        %v3894 = vpop.f32.mrb[0].mxu0
        %v3895 = vpop.f32.mrb[0].mxu0
        %v3896 = vadd.f32 %v3831, %v3895
        %v3897 = vpop.f32.mrb[0].mxu0
        %3898 = vdwg.mxu0
        %v3899 = vld [vmem:[%s8] sm:$0xff]
        %v3900 = vld [vmem:[%s8 + $0x8] sm:$0xff]
        %v3901 = vld [vmem:[%s8 + $0x10] sm:$0xff]
        %v3902 = vld [vmem:[%s8 + $0x18] sm:$0xff]
        %v3903 = vld [vmem:[%s8 + $0x20] sm:$0xff]
        %v3904 = vld [vmem:[%s8 + $0x28] sm:$0xff]
        %v3905 = vld [vmem:[%s8 + $0x30] sm:$0xff]
        %v3906 = vld [vmem:[%s8 + $0x38] sm:$0xff]
        %3908 = vset.pattern.permute.xlu0 0
        %3909 = vperm.xlu0 %3908, %v3899
        %v3910 = vpop.permute.xlu0 %3909
        %3913 = vset.pattern.permute.xlu0 0
        %3914 = vperm.xlu0 %3913, %v3900
        %v3915 = vpop.permute.xlu0 %3914
        %3918 = vset.pattern.permute.xlu0 0
        %3919 = vperm.xlu0 %3918, %v3901
        %v3920 = vpop.permute.xlu0 %3919
        %3923 = vset.pattern.permute.xlu0 0
        %3924 = vperm.xlu0 %3923, %v3902
        %v3925 = vpop.permute.xlu0 %3924
        %3928 = vset.pattern.permute.xlu0 0
        %3929 = vperm.xlu0 %3928, %v3903
        %v3930 = vpop.permute.xlu0 %3929
        %3933 = vset.pattern.permute.xlu0 0
        %3934 = vperm.xlu0 %3933, %v3904
        %v3935 = vpop.permute.xlu0 %3934
        %3938 = vset.pattern.permute.xlu0 0
        %3939 = vperm.xlu0 %3938, %v3905
        %v3940 = vpop.permute.xlu0 %3939
        %3943 = vset.pattern.permute.xlu0 0
        %3944 = vperm.xlu0 %3943, %v3906
        %v3945 = vpop.permute.xlu0 %3944
        %v3947 = vmul.f32 %v3666, %v3910
        %v3948 = vmul.f32 %v3668, %v3910
        %v3949 = vmul.f32 %v3869, %v3910
        %v3950 = vmul.f32 %v3670, %v3915
        %v3951 = vmul.f32 %v3672, %v3915
        %v3952 = vmul.f32 %v3872, %v3915
        %v3953 = vmul.f32 %v3676, %v3920
        %v3954 = vmul.f32 %v3678, %v3920
        %v3955 = vmul.f32 %v3877, %v3920
        %v3956 = vmul.f32 %v3680, %v3925
        %v3957 = vmul.f32 %v3682, %v3925
        %v3958 = vmul.f32 %v3880, %v3925
        %v3959 = vmul.f32 %v3686, %v3930
        %v3960 = vmul.f32 %v3688, %v3930
        %v3961 = vmul.f32 %v3885, %v3930
        %v3962 = vmul.f32 %v3690, %v3935
        %v3963 = vmul.f32 %v3692, %v3935
        %v3964 = vmul.f32 %v3888, %v3935
        %v3965 = vmul.f32 %v3696, %v3940
        %v3966 = vmul.f32 %v3698, %v3940
        %v3967 = vmul.f32 %v3893, %v3940
        %v3968 = vmul.f32 %v3700, %v3945
        %v3969 = vmul.f32 %v3702, %v3945
        %v3970 = vmul.f32 %v3896, %v3945
        %v3971 = vld [vmem:[%s9] sm:$0xff]
        %v3972 = vld [vmem:[%s9 + $0x8] sm:$0xff]
        %v3973 = vld [vmem:[%s9 + $0x10] sm:$0xff]
        %v3974 = vld [vmem:[%s9 + $0x18] sm:$0xff]
        %v3975 = vld [vmem:[%s9 + $0x20] sm:$0xff]
        %v3976 = vld [vmem:[%s9 + $0x28] sm:$0xff]
        %v3977 = vld [vmem:[%s9 + $0x30] sm:$0xff]
        %v3978 = vld [vmem:[%s9 + $0x38] sm:$0xff]
        %3980 = vset.pattern.permute.xlu0 0
        %3981 = vperm.xlu0 %3980, %v3971
        %v3982 = vpop.permute.xlu0 %3981
        %3985 = vset.pattern.permute.xlu0 0
        %3986 = vperm.xlu0 %3985, %v3972
        %v3987 = vpop.permute.xlu0 %3986
        %3990 = vset.pattern.permute.xlu0 0
        %3991 = vperm.xlu0 %3990, %v3973
        %v3992 = vpop.permute.xlu0 %3991
        %3995 = vset.pattern.permute.xlu0 0
        %3996 = vperm.xlu0 %3995, %v3974
        %v3997 = vpop.permute.xlu0 %3996
        %4000 = vset.pattern.permute.xlu0 0
        %4001 = vperm.xlu0 %4000, %v3975
        %v4002 = vpop.permute.xlu0 %4001
        %4005 = vset.pattern.permute.xlu0 0
        %4006 = vperm.xlu0 %4005, %v3976
        %v4007 = vpop.permute.xlu0 %4006
        %4010 = vset.pattern.permute.xlu0 0
        %4011 = vperm.xlu0 %4010, %v3977
        %v4012 = vpop.permute.xlu0 %4011
        %4015 = vset.pattern.permute.xlu0 0
        %4016 = vperm.xlu0 %4015, %v3978
        %v4017 = vpop.permute.xlu0 %4016
        %v4019 = vadd.f32 %v3947, %v3982
        %v4020 = vadd.f32 %v3948, %v3982
        %v4021 = vadd.f32 %v3949, %v3982
        %v4022 = vadd.f32 %v3950, %v3987
        %v4023 = vadd.f32 %v3951, %v3987
        %v4024 = vadd.f32 %v3952, %v3987
        %v4025 = vadd.f32 %v3953, %v3992
        %v4026 = vadd.f32 %v3954, %v3992
        %v4027 = vadd.f32 %v3955, %v3992
        %v4028 = vadd.f32 %v3956, %v3997
        %v4029 = vadd.f32 %v3957, %v3997
        %v4030 = vadd.f32 %v3958, %v3997
        %v4031 = vadd.f32 %v3959, %v4002
        %v4032 = vadd.f32 %v3960, %v4002
        %v4033 = vadd.f32 %v3961, %v4002
        %v4034 = vadd.f32 %v3962, %v4007
        %v4035 = vadd.f32 %v3963, %v4007
        %v4036 = vadd.f32 %v3964, %v4007
        %v4037 = vadd.f32 %v3965, %v4012
        %v4038 = vadd.f32 %v3966, %v4012
        %v4039 = vadd.f32 %v3967, %v4012
        %v4040 = vadd.f32 %v3968, %v4017
        %v4041 = vadd.f32 %v3969, %v4017
        %v4042 = vadd.f32 %v3970, %v4017
        %v4043 = vmax.f32 %v4019, 0.0
        %v4044 = vmax.f32 %v4020, 0.0
        %v4045 = vmax.f32 %v4021, 0.0
        %v4046 = vmax.f32 %v4022, 0.0
        %v4047 = vmax.f32 %v4023, 0.0
        %v4048 = vmax.f32 %v4024, 0.0
        %v4049 = vmax.f32 %v4025, 0.0
        %v4050 = vmax.f32 %v4026, 0.0
        %v4051 = vmax.f32 %v4027, 0.0
        %v4052 = vmax.f32 %v4028, 0.0
        %v4053 = vmax.f32 %v4029, 0.0
        %v4054 = vmax.f32 %v4030, 0.0
        %v4055 = vmax.f32 %v4031, 0.0
        %v4056 = vmax.f32 %v4032, 0.0
        %v4057 = vmax.f32 %v4033, 0.0
        %v4058 = vmax.f32 %v4034, 0.0
        %v4059 = vmax.f32 %v4035, 0.0
        %v4060 = vmax.f32 %v4036, 0.0
        %v4061 = vmax.f32 %v4037, 0.0
        %v4062 = vmax.f32 %v4038, 0.0
        %v4063 = vmax.f32 %v4039, 0.0
        %v4064 = vmax.f32 %v4040, 0.0
        %v4065 = vmax.f32 %v4041, 0.0
        %v4066 = vmax.f32 %v4042, 0.0
        %v4067 = vpack.c.bf16 %v4046, %v4043
        %v4068 = vpack.c.bf16 %v4047, %v4044
        %v4069 = vpack.c.bf16 %v4048, %v4045
        %v4070 = vpack.c.bf16 %v4052, %v4049
        %v4071 = vpack.c.bf16 %v4053, %v4050
        %v4072 = vpack.c.bf16 %v4054, %v4051
        %v4073 = vpack.c.bf16 %v4058, %v4055
        %v4074 = vpack.c.bf16 %v4059, %v4056
        %v4075 = vpack.c.bf16 %v4060, %v4057
        %v4076 = vpack.c.bf16 %v4064, %v4061
        %v4077 = vpack.c.bf16 %v4065, %v4062
        %v4078 = vpack.c.bf16 %v4066, %v4063
        %v4079 = vld [vmem:[%s10] sm:$0x3]
        %v4081 = vsel %vm3472, %v4079, 0
        %4083 = vmatprep.subr.bf16.mxu0 %v4068
        %4084 = vmatpush1.bf16.msra.mxu0 %v4067
        %4085 = vmatprep.subr.bf16.mxu0 %v4071
        %4086 = vmatpush1.bf16.msra.mxu0 %v4070
        %4087 = vmatprep.subr.bf16.mxu0 %v4074
        %4088 = vmatpush1.bf16.msra.mxu0 %v4073
        %4089 = vmatprep.subr.bf16.mxu0 %v4077
        %4090 = vmatpush1.bf16.msra.mxu0 %v4076
        %4091 = vmatprep.subr.bf16.mxu0 0
        %4092 = vmatpush1.bf16.msra.mxu0 0
        %4093 = vmatprep.subr.bf16.mxu0 0
        %4094 = vmatpush1.bf16.msra.mxu0 0
        %4095 = vmatprep.subr.bf16.mxu0 0
        %4096 = vmatpush1.bf16.msra.mxu0 0
        %4097 = vmatprep.subr.bf16.mxu0 0
        %4098 = vmatpush1.bf16.msra.mxu0 0
        %4099 = vmatprep.subr.bf16.mxu0 0
        %4100 = vmatpush1.bf16.msra.mxu0 0
        %4101 = vmatprep.subr.bf16.mxu0 0
        %4102 = vmatpush1.bf16.msra.mxu0 0
        %4103 = vmatprep.subr.bf16.mxu0 0
        %4104 = vmatpush1.bf16.msra.mxu0 0
        %4105 = vmatprep.subr.bf16.mxu0 0
        %4106 = vmatpush1.bf16.msra.mxu0 0
        %4107 = vmatprep.subr.bf16.mxu0 0
        %4108 = vmatpush1.bf16.msra.mxu0 0
        %4109 = vmatprep.subr.bf16.mxu0 0
        %4110 = vmatpush1.bf16.msra.mxu0 0
        %4111 = vmatprep.subr.bf16.mxu0 0
        %4112 = vmatpush1.bf16.msra.mxu0 0
        %4113 = vmatprep.subr.bf16.mxu0 0
        %4114 = vmatpush1.bf16.msra.mxu0 0
        %4115 = vmatprep.mubr.bf16.mxu0 0
        %4116 = vmatmul.mubr.bf16.gmra.mrb[0].mxu0 %v4081
        %v4117 = vpop.f32.mrb[0].mxu0
        %v4118 = vadd.f32 0.0, %v4117
        %v4119 = vpop.f32.mrb[0].mxu0
        %v4120 = vadd.f32 0.0, %v4119
        %v4121 = vpop.f32.mrb[0].mxu0
        %v4122 = vpop.f32.mrb[0].mxu0
        %4123 = vdwg.mxu0
        %4124 = vmatprep.subr.bf16.mxu0 0
        %4125 = vmatpush1.bf16.msra.mxu0 %v4069
        %4126 = vmatprep.subr.bf16.mxu0 0
        %4127 = vmatpush1.bf16.msra.mxu0 %v4072
        %4128 = vmatprep.subr.bf16.mxu0 0
        %4129 = vmatpush1.bf16.msra.mxu0 %v4075
        %4130 = vmatprep.subr.bf16.mxu0 0
        %4131 = vmatpush1.bf16.msra.mxu0 %v4078
        %4132 = vmatprep.subr.bf16.mxu0 0
        %4133 = vmatpush1.bf16.msra.mxu0 0
        %4134 = vmatprep.subr.bf16.mxu0 0
        %4135 = vmatpush1.bf16.msra.mxu0 0
        %4136 = vmatprep.subr.bf16.mxu0 0
        %4137 = vmatpush1.bf16.msra.mxu0 0
        %4138 = vmatprep.subr.bf16.mxu0 0
        %4139 = vmatpush1.bf16.msra.mxu0 0
        %4140 = vmatprep.subr.bf16.mxu0 0
        %4141 = vmatpush1.bf16.msra.mxu0 0
        %4142 = vmatprep.subr.bf16.mxu0 0
        %4143 = vmatpush1.bf16.msra.mxu0 0
        %4144 = vmatprep.subr.bf16.mxu0 0
        %4145 = vmatpush1.bf16.msra.mxu0 0
        %4146 = vmatprep.subr.bf16.mxu0 0
        %4147 = vmatpush1.bf16.msra.mxu0 0
        %4148 = vmatprep.subr.bf16.mxu0 0
        %4149 = vmatpush1.bf16.msra.mxu0 0
        %4150 = vmatprep.subr.bf16.mxu0 0
        %4151 = vmatpush1.bf16.msra.mxu0 0
        %4152 = vmatprep.subr.bf16.mxu0 0
        %4153 = vmatpush1.bf16.msra.mxu0 0
        %4154 = vmatprep.subr.bf16.mxu0 0
        %4155 = vmatpush1.bf16.msra.mxu0 0
        %4156 = vmatprep.mubr.bf16.mxu0 0
        %4157 = vmatmul.mubr.bf16.gmra.mrb[0].mxu0 %v4081
        %v4158 = vpop.f32.mrb[0].mxu0
        %v4159 = vadd.f32 0.0, %v4158
        %v4160 = vpop.f32.mrb[0].mxu0
        %v4161 = vpop.f32.mrb[0].mxu0
        %v4162 = vpop.f32.mrb[0].mxu0
        %4163 = vdwg.mxu0
        %v4164 = vld [vmem:[%s11] sm:$0xf]
        %4166 = vset.pattern.permute.xlu0 0
        %4167 = vperm.xlu0 %4166, %v4164
        %v4168 = vpop.permute.xlu0 %4167
        %v4170 = vmul.f32 %v4118, %v4168
        %v4171 = vmul.f32 %v4120, %v4168
        %v4172 = vmul.f32 %v4159, %v4168
        %v4173 = vld [vmem:[%s12] sm:$0xf]
        %4175 = vset.pattern.permute.xlu0 0
        %4176 = vperm.xlu0 %4175, %v4173
        %v4177 = vpop.permute.xlu0 %4176
        %v4179 = vadd.f32 %v4170, %v4177
        %v4180 = vadd.f32 %v4171, %v4177
        %v4181 = vadd.f32 %v4172, %v4177
        %v4184 = vcombine.low %v4179, %v4180
        %4186 = vst [vmem:[%s457] sm:$0xff] %v4184
        %vm4187 = vcmask 257024
        %4188 = vst.msk [vmem:[%s457 + $0x8] sm:$0xf] %vm4187, %v4181
        %s4189 = sand.u32 %s329, 1
        %s4190 = scalar_lea.sflag [#allocation5], %s4189
        %s4191 = sand.u32 %s329, 1
        %s4192 = smul.addr %s4191, 12
        %s4193 = scalar_lea.vmem [#allocation4], %s4192
        // Predicated region
        $region73: #{tpu_custom_call.1} parent=71 // pred_check
          %p4194 = pneg %p339
        $region74: #{tpu_custom_call.1} parent=71 // pred_check_branch
          %4196 = sbr.rel (%p4194) target = $region76
        $region75: #{tpu_custom_call.1} parent=71 // pred_region
          %s4197 = smul.u32 3, %s32
          %s4199 = ssub.s32 192, 192
          %4200 = vsyncadd %s4190, %s4199
          %s4201 = smul.addr %s31, 3
          %s4202 = sadd.s32 %s4197, %s4201
          %s4203 = smul.addr %s4202, 64
          %s4204 = scalar_lea.hbm %s13, %s4203
          %s4206 = sshll.u32 %s4193, 4
          %s4207 = int_to_ptr.vmem [resolvable:$true] %s4206
          %4209 = dma.vmem_to_hbm [thread:$0]  %s4207, 192, %s4204, %s4190
        $region76: #{tpu_custom_call.1} parent=71 // pred_fallthru
          _
      $region72: #{tpu_custom_call.1} parent=5 // pred_fallthru
        _
      %p4210 = scmp.le.s32.totalorder 2, %s22
      // Predicated region
      $region77: #{tpu_custom_call.1} parent=5 // pred_check
        %p4211 = pneg %p4210
      $region78: #{tpu_custom_call.1} parent=5 // pred_check_branch
        %4213 = sbr.rel (%p4211) target = $region80
      $region79: #{tpu_custom_call.1} parent=5 // pred_region
        %s4214 = ssub.s32 %s22, 2
        // Predicated region
        $region81: #{tpu_custom_call.1} parent=79 // pred_check
          %p4215 = pneg %p345
        $region82: #{tpu_custom_call.1} parent=79 // pred_check_branch
          %4217 = sbr.rel (%p4215) target = $region84
        $region83: #{tpu_custom_call.1} parent=79 // pred_region
          %s4218 = sand.u32 %s330, 1
          %s4219 = scalar_lea.sflag [#allocation5], %s4218
          %s4220 = sand.u32 %s330, 1
          %s4221 = smul.addr %s4220, 12
          %s4222 = scalar_lea.vmem [#allocation4], %s4221
          %4223 = dma.done %s4219, 192
        $region84: #{tpu_custom_call.1} parent=79 // pred_fallthru
          _
      $region80: #{tpu_custom_call.1} parent=5 // pred_fallthru
        _
    $region6: #{tpu_custom_call.1} parent=1 // loop_footer
      %s26 = sadd.s32 1, %s22
    $region7: #{tpu_custom_call.1} parent=1 // loop_footer_branch
      %21 = sbr.rel target = $region3
    $region8: #{tpu_custom_call.1} parent=1 // loop_exit
      _
    %4224 = vsyncpa [#allocation5], 1
    %s4225 = scalar_lea.sflag [#allocation5], 1
    %4226 = vsyncpa %s4225, 1

</llo_original>
